<compile_context>
chip_gen: v5e
topology: v5e:2x2
jax: 0.10.0
libtpu: 0.0.40
codegen_flags: <defaults>
</compile_context>

<pallas_src>
import jax
import jax.numpy as jnp
from jax import lax
from jax.experimental import pallas as pl
from jax.experimental.pallas import tpu as pltpu


def _round_up(x, m):
    return ((x + m - 1) // m) * m


# --------------------------- fused forward kernel ----------------------------
def _make_grunet_kernel(n_layers, T, B, H, G):
    """Build the fused wavefront GRU(n_layers) + ReLU + Linear kernel."""
    L = n_layers
    GW = 3 * G  # packed gate width: each gate in its own 128-lane block

    def kernel(*refs):
        # refs layout (positional):
        #   inputs : x2d(T*B,Din), h0(L,B,H),
        #            [wih_l(Din_l,GW), whh_l(H,GW), bx_l(1,GW), bhn_l(1,H)] * L,
        #            fc_w(H,O), fc_b(1,O)
        #   outputs: out(B,O), hT(L,B,H)
        #   scratch: xp_sc(T*B,GW)   -- layer-0 input-side gate projections
        it = iter(refs)
        x_ref = next(it)
        h0_ref = next(it)
        layer_refs = [(next(it), next(it), next(it), next(it))
                      for _ in range(L)]
        fcw_ref = next(it)
        fcb_ref = next(it)
        out_ref = next(it)
        hT_ref = next(it)
        xp_sc = next(it)

        # --- prologue: layer-0 input-side gate projections for ALL timesteps -
        xp_sc[...] = (jnp.dot(x_ref[...], layer_refs[0][0][...],
                              preferred_element_type=jnp.float32)
                      + layer_refs[0][2][...])

        # --- hoisted per-layer broadcasts (not CSE'd if left in the loop) ----
        bhn_b = [jnp.broadcast_to(layer_refs[l][3][...], (B, H))
                 for l in range(L)]
        bx_b = [None] + [jnp.broadcast_to(layer_refs[l][2][...], (B, GW))
                         for l in range(1, L)]

        def cell(l, gi, h):
            """One GRU cell; all gate slices are lane-tile aligned views."""
            hp = jnp.dot(h, layer_refs[l][1][...],
                         preferred_element_type=jnp.float32)      # (B, GW)
            r = jax.nn.sigmoid(gi[:, 0:H] + hp[:, 0:H])
            z = jax.nn.sigmoid(gi[:, G:G + H] + hp[:, G:G + H])
            n = jnp.tanh(gi[:, 2 * G:2 * G + H]
                         + r * (hp[:, 2 * G:2 * G + H] + bhn_b[l]))
            return (1.0 - z) * n + z * h

        def superstep(s, hs, active):
            """Wavefront step: layer l processes timestep s - l."""
            new_hs = list(hs)
            for l in active:
                if l == 0:
                    row = (s * B if isinstance(s, int)
                           else pl.multiple_of(s * B, B))
                    gi = xp_sc[pl.ds(row, B), :]
                else:
                    # input projection for layer l, from layer l-1's carried h
                    gi = (jnp.dot(hs[l - 1], layer_refs[l][0][...],
                                  preferred_element_type=jnp.float32)
                          + bx_b[l])
                new_hs[l] = cell(l, gi, hs[l])
            return tuple(new_hs)

        hs = tuple(h0_ref[l] for l in range(L))

        # ramp-up supersteps (Python-peeled, partial wavefront)
        for s in range(L - 1):
            hs = superstep(s, hs,
                           [l for l in range(L) if 0 <= s - l <= T - 1])

        # steady state: all layers active, no predication in the body
        steady = T - (L - 1)
        if steady > 0:
            # Full unroll only while the live hidden/intermediate set stays in
            # a few vregs; otherwise cap to avoid flipping into spill-bound.
            unroll = steady if (steady <= 16 and B * H <= 8 * 128) else 4
            hs = lax.fori_loop(L - 1, T,
                               lambda s, c: superstep(s, c, range(L)),
                               hs, unroll=unroll)

        # ramp-down supersteps (Python-peeled)
        for s in range(max(T, L - 1), T + L - 1):
            hs = superstep(s, hs,
                           [l for l in range(L) if 0 <= s - l <= T - 1])

        for l in range(L):
            hT_ref[l] = hs[l]

        # --- FC head: fc(relu(out[:, -1])); out[:, -1] == h_T of top layer ---
        out_ref[...] = (jnp.dot(jnp.maximum(hs[L - 1], 0.0), fcw_ref[...],
                                preferred_element_type=jnp.float32)
                        + fcb_ref[...])

    return kernel


# ------------------------------ packing helpers -------------------------------
def _pack_gates(w, H, G):
    """(..., 3H) gate-fused [r,z,n] -> (..., 3G): each gate lane-tile aligned."""
    if G == H:
        return w
    pad = G - H
    parts = []
    for g in range(3):
        parts.append(w[..., g * H:(g + 1) * H])
        parts.append(jnp.zeros(w.shape[:-1] + (pad,), w.dtype))
    return jnp.concatenate(parts, axis=-1)


# ------------------------------- public wrapper -------------------------------
@jax.jit
def grunet_forward(x_btd, h0, params):
    """x_btd: (B, T, input_dim) batch-first; h0: (n_layers, B, H).
       Returns (out (B, output_dim), h (n_layers, B, H)).
       Note: B should be a multiple of 8 for aligned sublane slices."""
    B, T, Din = x_btd.shape
    L, _, H = h0.shape
    O = params["fc_w"].shape[-1]
    G = _round_up(H, 128)          # per-gate lane-tile width
    GW = 3 * G

    # Wrapper glue: time-major flattened rows so each timestep is a contiguous
    # (B, GW) sublane block of the layer-0 projection scratch.
    x2d = jnp.transpose(x_btd, (1, 0, 2)).reshape(T * B, Din)

    inputs = [x2d, h0]
    for p in params["gru"]:
        bhh = p["bhh"]
        # Fold b_ih (all gates) + b_hh (r, z) into the input-side bias;
        # b_hh_n stays separate because PyTorch computes r * (W_hn h + b_hn).
        bx = p["bih"] + jnp.concatenate(
            [bhh[:, :2 * H], jnp.zeros_like(bhh[:, 2 * H:])], axis=1)
        inputs += [_pack_gates(p["wih"], H, G), _pack_gates(p["whh"], H, G),
                   _pack_gates(bx, H, G), bhh[:, 2 * H:]]
    inputs += [params["fc_w"], params["fc_b"]]

    # Explicit (generous but bounded) scoped-VMEM budget: everything resident.
    resident_f32 = sum(a.size for a in inputs) + T * B * GW + L * B * H + B * O
    vmem_limit = int(min(64 * 2**20, max(8 * 2**20, 8 * 4 * resident_f32)))

    out, hT = pl.pallas_call(
        _make_grunet_kernel(L, T, B, H, G),
        out_shape=(jax.ShapeDtypeStruct((B, O), jnp.float32),
                   jax.ShapeDtypeStruct((L, B, H), jnp.float32)),
        in_specs=[pl.BlockSpec(memory_space=pltpu.MemorySpace.VMEM)
                  for _ in inputs],
        out_specs=(pl.BlockSpec(memory_space=pltpu.MemorySpace.VMEM),
                   pl.BlockSpec(memory_space=pltpu.MemorySpace.VMEM)),
        scratch_shapes=[pltpu.VMEM((T * B, GW), jnp.float32)],
        compiler_params=pltpu.CompilerParams(vmem_limit_bytes=vmem_limit),
    )(*inputs)
    return out, hT


# -------------------------------- param init ----------------------------------
def init_params(key, input_dim, hidden_dim, output_dim, n_layers):
    params = {"gru": []}
    k = 1.0 / jnp.sqrt(hidden_dim)
    for l in range(n_layers):
        din = input_dim if l == 0 else hidden_dim
        key, k1, k2, k3, k4 = jax.random.split(key, 5)
        # fused, transposed layout: (Din, 3H) / (H, 3H), gate order [r, z, n]
        wih = jax.random.uniform(k1, (din, 3 * hidden_dim), jnp.float32, -k, k)
        whh = jax.random.uniform(k2, (hidden_dim, 3 * hidden_dim), jnp.float32, -k, k)
        bih = jax.random.uniform(k3, (1, 3 * hidden_dim), jnp.float32, -k, k)
        bhh = jax.random.uniform(k4, (1, 3 * hidden_dim), jnp.float32, -k, k)
        params["gru"].append({"wih": wih, "whh": whh, "bih": bih, "bhh": bhh})
    key, k5, k6 = jax.random.split(key, 3)
    params["fc_w"] = jax.random.uniform(k5, (hidden_dim, output_dim), jnp.float32, -k, k)
    params["fc_b"] = jax.random.uniform(k6, (1, output_dim), jnp.float32, -k, k)
    return params


# ---------------------------- pure-JAX reference -------------------------------
def grunet_reference(x_btd, h0, params):
    B, T, _ = x_btd.shape
    H = h0.shape[-1]
    x = jnp.transpose(x_btd, (1, 0, 2))                  # (T, B, Din)
    h_finals = []
    for l, p in enumerate(params["gru"]):
        h = h0[l]
        outs = []
        for t in range(T):
            gi = x[t] @ p["wih"] + p["bih"]
            gh = h @ p["whh"] + p["bhh"]
            r = jax.nn.sigmoid(gi[:, :H] + gh[:, :H])
            z = jax.nn.sigmoid(gi[:, H:2 * H] + gh[:, H:2 * H])
            n = jnp.tanh(gi[:, 2 * H:] + r * gh[:, 2 * H:])
            h = (1.0 - z) * n + z * h
            outs.append(h)
        x = jnp.stack(outs, axis=0)
        h_finals.append(h)
    out = jnp.maximum(x[-1], 0.0) @ params["fc_w"] + params["fc_b"]
    return out, jnp.stack(h_finals, axis=0)


if __name__ == "__main__":
    # Small shapes consistent with the module's forward.
    B, T, INPUT_DIM, HIDDEN_DIM, OUTPUT_DIM, N_LAYERS = 8, 8, 16, 32, 4, 2

    key = jax.random.PRNGKey(0)
    key, kx = jax.random.split(key)
    x = jax.random.normal(kx, (B, T, INPUT_DIM), jnp.float32)
    h0 = jnp.zeros((N_LAYERS, B, HIDDEN_DIM), jnp.float32)   # init_hidden()
    params = init_params(key, INPUT_DIM, HIDDEN_DIM, OUTPUT_DIM, N_LAYERS)

    out, h = jax.block_until_ready(grunet_forward(x, h0, params))

    out_ref, h_ref = grunet_reference(x, h0, params)
    assert out.shape == (B, OUTPUT_DIM) and h.shape == (N_LAYERS, B, HIDDEN_DIM)
    assert jnp.allclose(out, out_ref, atol=2e-3, rtol=2e-3)
    assert jnp.allclose(h, h_ref, atol=2e-3, rtol=2e-3)

    print("KERNEL_OK")
</pallas_src>

<mosaic_0001>
module attributes {stable_mosaic.version = 11 : i64} {
  func.func @kernel(%arg0: memref<64x16xf32, #tpu.memory_space<vmem>>, %arg1: memref<2x8x32xf32, #tpu.memory_space<vmem>>, %arg2: memref<16x384xf32, #tpu.memory_space<vmem>>, %arg3: memref<32x384xf32, #tpu.memory_space<vmem>>, %arg4: memref<1x384xf32, #tpu.memory_space<vmem>>, %arg5: memref<1x32xf32, #tpu.memory_space<vmem>>, %arg6: memref<32x384xf32, #tpu.memory_space<vmem>>, %arg7: memref<32x384xf32, #tpu.memory_space<vmem>>, %arg8: memref<1x384xf32, #tpu.memory_space<vmem>>, %arg9: memref<1x32xf32, #tpu.memory_space<vmem>>, %arg10: memref<32x4xf32, #tpu.memory_space<vmem>>, %arg11: memref<1x4xf32, #tpu.memory_space<vmem>>, %arg12: memref<8x4xf32, #tpu.memory_space<vmem>>, %arg13: memref<2x8x32xf32, #tpu.memory_space<vmem>>, %arg14: memref<64x384xf32, #tpu.memory_space<vmem>>) attributes {dimension_semantics = [], scalar_prefetch = 0 : i64, scratch_operands = 1 : i64, tpu.core_type = #tpu.core_type<tc>} {
    %c0 = arith.constant 0 : index
    %c0_0 = arith.constant 0 : index
    %0 = vector.load %arg0[%c0, %c0_0] : memref<64x16xf32, #tpu.memory_space<vmem>>, vector<64x16xf32>
    %c0_1 = arith.constant 0 : index
    %c0_2 = arith.constant 0 : index
    %1 = vector.load %arg2[%c0_1, %c0_2] : memref<16x384xf32, #tpu.memory_space<vmem>>, vector<16x384xf32>
    %cst = arith.constant dense<0.000000e+00> : vector<64x384xf32>
    %2 = tpu.matmul %0, %1, %cst {dimension_numbers = #tpu.dot_dimension_numbers<[1], [0], [0], [1], [0, 0, 1, 1], [], []>} : vector<64x16xf32>, vector<16x384xf32>, vector<64x384xf32> -> vector<64x384xf32>
    %c0_3 = arith.constant 0 : index
    %c0_4 = arith.constant 0 : index
    %3 = vector.load %arg4[%c0_3, %c0_4] : memref<1x384xf32, #tpu.memory_space<vmem>>, vector<1x384xf32>
    %4 = vector.broadcast %3 : vector<1x384xf32> to vector<64x384xf32>
    %5 = arith.addf %2, %4 : vector<64x384xf32>
    %c0_5 = arith.constant 0 : index
    %c0_6 = arith.constant 0 : index
    %6 = vector.load %arg14[%c0_5, %c0_6] : memref<64x384xf32, #tpu.memory_space<vmem>>, vector<64x384xf32>
    tpu.vector_store %arg14[%c0_5, %c0_6], %5 {strides = array<i32>} : memref<64x384xf32, #tpu.memory_space<vmem>>, vector<64x384xf32>,
    %c0_7 = arith.constant 0 : index
    %c0_8 = arith.constant 0 : index
    %7 = vector.load %arg5[%c0_7, %c0_8] : memref<1x32xf32, #tpu.memory_space<vmem>>, vector<1x32xf32>
    %8 = vector.shape_cast %7 : vector<1x32xf32> to vector<1x32xf32>
    %9 = vector.broadcast %8 : vector<1x32xf32> to vector<8x32xf32>
    %c0_9 = arith.constant 0 : index
    %c0_10 = arith.constant 0 : index
    %10 = vector.load %arg9[%c0_9, %c0_10] : memref<1x32xf32, #tpu.memory_space<vmem>>, vector<1x32xf32>
    %11 = vector.shape_cast %10 : vector<1x32xf32> to vector<1x32xf32>
    %12 = vector.broadcast %11 : vector<1x32xf32> to vector<8x32xf32>
    %c0_11 = arith.constant 0 : index
    %c0_12 = arith.constant 0 : index
    %13 = vector.load %arg8[%c0_11, %c0_12] : memref<1x384xf32, #tpu.memory_space<vmem>>, vector<1x384xf32>
    %14 = vector.shape_cast %13 : vector<1x384xf32> to vector<1x384xf32>
    %15 = vector.broadcast %14 : vector<1x384xf32> to vector<8x384xf32>
    %c0_13 = arith.constant 0 : index
    %c0_14 = arith.constant 0 : index
    %c0_15 = arith.constant 0 : index
    %16 = vector.load %arg1[%c0_13, %c0_14, %c0_15] : memref<2x8x32xf32, #tpu.memory_space<vmem>>, vector<1x8x32xf32>
    %17 = vector.shape_cast %16 : vector<1x8x32xf32> to vector<8x32xf32>
    %c1 = arith.constant 1 : index
    %c0_16 = arith.constant 0 : index
    %c0_17 = arith.constant 0 : index
    %18 = vector.load %arg1[%c1, %c0_16, %c0_17] : memref<2x8x32xf32, #tpu.memory_space<vmem>>, vector<1x8x32xf32>
    %19 = vector.shape_cast %18 : vector<1x8x32xf32> to vector<8x32xf32>
    %c0_18 = arith.constant 0 : index
    %c0_19 = arith.constant 0 : index
    %20 = vector.load %arg14[%c0_18, %c0_19] : memref<64x384xf32, #tpu.memory_space<vmem>>, vector<8x384xf32>
    %c0_20 = arith.constant 0 : index
    %c0_21 = arith.constant 0 : index
    %21 = vector.load %arg3[%c0_20, %c0_21] : memref<32x384xf32, #tpu.memory_space<vmem>>, vector<32x384xf32>
    %cst_22 = arith.constant dense<0.000000e+00> : vector<8x384xf32>
    %22 = tpu.matmul %17, %21, %cst_22 {dimension_numbers = #tpu.dot_dimension_numbers<[1], [0], [0], [1], [0, 0, 1, 1], [], []>} : vector<8x32xf32>, vector<32x384xf32>, vector<8x384xf32> -> vector<8x384xf32>
    %23 = vector.extract_strided_slice %20 {offsets = [0, 0], sizes = [8, 32], strides = [1, 1]} : vector<8x384xf32> to vector<8x32xf32>
    %24 = vector.extract_strided_slice %22 {offsets = [0, 0], sizes = [8, 32], strides = [1, 1]} : vector<8x384xf32> to vector<8x32xf32>
    %25 = arith.addf %23, %24 : vector<8x32xf32>
    %26 = arith.negf %25 : vector<8x32xf32>
    %27 = math.exp %26 : vector<8x32xf32>
    %cst_23 = arith.constant 1.000000e+00 : f32
    %28 = vector.broadcast %cst_23 : f32 to vector<8x32xf32>
    %29 = arith.addf %28, %27 : vector<8x32xf32>
    %30 = arith.divf %28, %29 : vector<8x32xf32>
    %31 = vector.extract_strided_slice %20 {offsets = [0, 128], sizes = [8, 32], strides = [1, 1]} : vector<8x384xf32> to vector<8x32xf32>
    %32 = vector.extract_strided_slice %22 {offsets = [0, 128], sizes = [8, 32], strides = [1, 1]} : vector<8x384xf32> to vector<8x32xf32>
    %33 = arith.addf %31, %32 : vector<8x32xf32>
    %34 = arith.negf %33 : vector<8x32xf32>
    %35 = math.exp %34 : vector<8x32xf32>
    %cst_24 = arith.constant 1.000000e+00 : f32
    %36 = vector.broadcast %cst_24 : f32 to vector<8x32xf32>
    %37 = arith.addf %36, %35 : vector<8x32xf32>
    %38 = arith.divf %36, %37 : vector<8x32xf32>
    %39 = vector.extract_strided_slice %20 {offsets = [0, 256], sizes = [8, 32], strides = [1, 1]} : vector<8x384xf32> to vector<8x32xf32>
    %40 = vector.extract_strided_slice %22 {offsets = [0, 256], sizes = [8, 32], strides = [1, 1]} : vector<8x384xf32> to vector<8x32xf32>
    %41 = arith.addf %40, %9 : vector<8x32xf32>
    %42 = arith.mulf %30, %41 : vector<8x32xf32>
    %43 = arith.addf %39, %42 : vector<8x32xf32>
    %44 = math.tanh %43 : vector<8x32xf32>
    %cst_25 = arith.constant 1.000000e+00 : f32
    %45 = vector.broadcast %cst_25 : f32 to vector<8x32xf32>
    %46 = arith.subf %45, %38 : vector<8x32xf32>
    %47 = arith.mulf %46, %44 : vector<8x32xf32>
    %48 = arith.mulf %38, %17 : vector<8x32xf32>
    %49 = arith.addf %47, %48 : vector<8x32xf32>
    %c1_i32 = arith.constant 1 : i32
    %c8_i32 = arith.constant 8 : i32
    %50 = arith.muli %c1_i32, %c8_i32 : i32
    %51 = tpu.assume_multiple %50, 8 : i32
    %52 = arith.index_cast %51 : i32 to index
    %c0_26 = arith.constant 0 : index
    %53 = vector.load %arg14[%52, %c0_26] : memref<64x384xf32, #tpu.memory_space<vmem>>, vector<8x384xf32>
    %c0_27 = arith.constant 0 : index
    %c0_28 = arith.constant 0 : index
    %54 = vector.load %arg3[%c0_27, %c0_28] : memref<32x384xf32, #tpu.memory_space<vmem>>, vector<32x384xf32>
    %cst_29 = arith.constant dense<0.000000e+00> : vector<8x384xf32>
    %55 = tpu.matmul %49, %54, %cst_29 {dimension_numbers = #tpu.dot_dimension_numbers<[1], [0], [0], [1], [0, 0, 1, 1], [], []>} : vector<8x32xf32>, vector<32x384xf32>, vector<8x384xf32> -> vector<8x384xf32>
    %56 = vector.extract_strided_slice %53 {offsets = [0, 0], sizes = [8, 32], strides = [1, 1]} : vector<8x384xf32> to vector<8x32xf32>
    %57 = vector.extract_strided_slice %55 {offsets = [0, 0], sizes = [8, 32], strides = [1, 1]} : vector<8x384xf32> to vector<8x32xf32>
    %58 = arith.addf %56, %57 : vector<8x32xf32>
    %59 = arith.negf %58 : vector<8x32xf32>
    %60 = math.exp %59 : vector<8x32xf32>
    %cst_30 = arith.constant 1.000000e+00 : f32
    %61 = vector.broadcast %cst_30 : f32 to vector<8x32xf32>
    %62 = arith.addf %61, %60 : vector<8x32xf32>
    %63 = arith.divf %61, %62 : vector<8x32xf32>
    %64 = vector.extract_strided_slice %53 {offsets = [0, 128], sizes = [8, 32], strides = [1, 1]} : vector<8x384xf32> to vector<8x32xf32>
    %65 = vector.extract_strided_slice %55 {offsets = [0, 128], sizes = [8, 32], strides = [1, 1]} : vector<8x384xf32> to vector<8x32xf32>
    %66 = arith.addf %64, %65 : vector<8x32xf32>
    %67 = arith.negf %66 : vector<8x32xf32>
    %68 = math.exp %67 : vector<8x32xf32>
    %cst_31 = arith.constant 1.000000e+00 : f32
    %69 = vector.broadcast %cst_31 : f32 to vector<8x32xf32>
    %70 = arith.addf %69, %68 : vector<8x32xf32>
    %71 = arith.divf %69, %70 : vector<8x32xf32>
    %72 = vector.extract_strided_slice %53 {offsets = [0, 256], sizes = [8, 32], strides = [1, 1]} : vector<8x384xf32> to vector<8x32xf32>
    %73 = vector.extract_strided_slice %55 {offsets = [0, 256], sizes = [8, 32], strides = [1, 1]} : vector<8x384xf32> to vector<8x32xf32>
    %74 = arith.addf %73, %9 : vector<8x32xf32>
    %75 = arith.mulf %63, %74 : vector<8x32xf32>
    %76 = arith.addf %72, %75 : vector<8x32xf32>
    %77 = math.tanh %76 : vector<8x32xf32>
    %cst_32 = arith.constant 1.000000e+00 : f32
    %78 = vector.broadcast %cst_32 : f32 to vector<8x32xf32>
    %79 = arith.subf %78, %71 : vector<8x32xf32>
    %80 = arith.mulf %79, %77 : vector<8x32xf32>
    %81 = arith.mulf %71, %49 : vector<8x32xf32>
    %82 = arith.addf %80, %81 : vector<8x32xf32>
    %c0_33 = arith.constant 0 : index
    %c0_34 = arith.constant 0 : index
    %83 = vector.load %arg6[%c0_33, %c0_34] : memref<32x384xf32, #tpu.memory_space<vmem>>, vector<32x384xf32>
    %cst_35 = arith.constant dense<0.000000e+00> : vector<8x384xf32>
    %84 = tpu.matmul %49, %83, %cst_35 {dimension_numbers = #tpu.dot_dimension_numbers<[1], [0], [0], [1], [0, 0, 1, 1], [], []>} : vector<8x32xf32>, vector<32x384xf32>, vector<8x384xf32> -> vector<8x384xf32>
    %85 = arith.addf %84, %15 : vector<8x384xf32>
    %c0_36 = arith.constant 0 : index
    %c0_37 = arith.constant 0 : index
    %86 = vector.load %arg7[%c0_36, %c0_37] : memref<32x384xf32, #tpu.memory_space<vmem>>, vector<32x384xf32>
    %cst_38 = arith.constant dense<0.000000e+00> : vector<8x384xf32>
    %87 = tpu.matmul %19, %86, %cst_38 {dimension_numbers = #tpu.dot_dimension_numbers<[1], [0], [0], [1], [0, 0, 1, 1], [], []>} : vector<8x32xf32>, vector<32x384xf32>, vector<8x384xf32> -> vector<8x384xf32>
    %88 = vector.extract_strided_slice %85 {offsets = [0, 0], sizes = [8, 32], strides = [1, 1]} : vector<8x384xf32> to vector<8x32xf32>
    %89 = vector.extract_strided_slice %87 {offsets = [0, 0], sizes = [8, 32], strides = [1, 1]} : vector<8x384xf32> to vector<8x32xf32>
    %90 = arith.addf %88, %89 : vector<8x32xf32>
    %91 = arith.negf %90 : vector<8x32xf32>
    %92 = math.exp %91 : vector<8x32xf32>
    %cst_39 = arith.constant 1.000000e+00 : f32
    %93 = vector.broadcast %cst_39 : f32 to vector<8x32xf32>
    %94 = arith.addf %93, %92 : vector<8x32xf32>
    %95 = arith.divf %93, %94 : vector<8x32xf32>
    %96 = vector.extract_strided_slice %85 {offsets = [0, 128], sizes = [8, 32], strides = [1, 1]} : vector<8x384xf32> to vector<8x32xf32>
    %97 = vector.extract_strided_slice %87 {offsets = [0, 128], sizes = [8, 32], strides = [1, 1]} : vector<8x384xf32> to vector<8x32xf32>
    %98 = arith.addf %96, %97 : vector<8x32xf32>
    %99 = arith.negf %98 : vector<8x32xf32>
    %100 = math.exp %99 : vector<8x32xf32>
    %cst_40 = arith.constant 1.000000e+00 : f32
    %101 = vector.broadcast %cst_40 : f32 to vector<8x32xf32>
    %102 = arith.addf %101, %100 : vector<8x32xf32>
    %103 = arith.divf %101, %102 : vector<8x32xf32>
    %104 = vector.extract_strided_slice %85 {offsets = [0, 256], sizes = [8, 32], strides = [1, 1]} : vector<8x384xf32> to vector<8x32xf32>
    %105 = vector.extract_strided_slice %87 {offsets = [0, 256], sizes = [8, 32], strides = [1, 1]} : vector<8x384xf32> to vector<8x32xf32>
    %106 = arith.addf %105, %12 : vector<8x32xf32>
    %107 = arith.mulf %95, %106 : vector<8x32xf32>
    %108 = arith.addf %104, %107 : vector<8x32xf32>
    %109 = math.tanh %108 : vector<8x32xf32>
    %cst_41 = arith.constant 1.000000e+00 : f32
    %110 = vector.broadcast %cst_41 : f32 to vector<8x32xf32>
    %111 = arith.subf %110, %103 : vector<8x32xf32>
    %112 = arith.mulf %111, %109 : vector<8x32xf32>
    %113 = arith.mulf %103, %19 : vector<8x32xf32>
    %114 = arith.addf %112, %113 : vector<8x32xf32>
    %c2_i32 = arith.constant 2 : i32
    %c8_i32_42 = arith.constant 8 : i32
    %115 = arith.muli %c2_i32, %c8_i32_42 : i32
    %116 = tpu.assume_multiple %115, 8 : i32
    %117 = arith.index_cast %116 : i32 to index
    %c0_43 = arith.constant 0 : index
    %118 = vector.load %arg14[%117, %c0_43] : memref<64x384xf32, #tpu.memory_space<vmem>>, vector<8x384xf32>
    %c0_44 = arith.constant 0 : index
    %c0_45 = arith.constant 0 : index
    %119 = vector.load %arg3[%c0_44, %c0_45] : memref<32x384xf32, #tpu.memory_space<vmem>>, vector<32x384xf32>
    %cst_46 = arith.constant dense<0.000000e+00> : vector<8x384xf32>
    %120 = tpu.matmul %82, %119, %cst_46 {dimension_numbers = #tpu.dot_dimension_numbers<[1], [0], [0], [1], [0, 0, 1, 1], [], []>} : vector<8x32xf32>, vector<32x384xf32>, vector<8x384xf32> -> vector<8x384xf32>
    %121 = vector.extract_strided_slice %118 {offsets = [0, 0], sizes = [8, 32], strides = [1, 1]} : vector<8x384xf32> to vector<8x32xf32>
    %122 = vector.extract_strided_slice %120 {offsets = [0, 0], sizes = [8, 32], strides = [1, 1]} : vector<8x384xf32> to vector<8x32xf32>
    %123 = arith.addf %121, %122 : vector<8x32xf32>
    %124 = arith.negf %123 : vector<8x32xf32>
    %125 = math.exp %124 : vector<8x32xf32>
    %cst_47 = arith.constant 1.000000e+00 : f32
    %126 = vector.broadcast %cst_47 : f32 to vector<8x32xf32>
    %127 = arith.addf %126, %125 : vector<8x32xf32>
    %128 = arith.divf %126, %127 : vector<8x32xf32>
    %129 = vector.extract_strided_slice %118 {offsets = [0, 128], sizes = [8, 32], strides = [1, 1]} : vector<8x384xf32> to vector<8x32xf32>
    %130 = vector.extract_strided_slice %120 {offsets = [0, 128], sizes = [8, 32], strides = [1, 1]} : vector<8x384xf32> to vector<8x32xf32>
    %131 = arith.addf %129, %130 : vector<8x32xf32>
    %132 = arith.negf %131 : vector<8x32xf32>
    %133 = math.exp %132 : vector<8x32xf32>
    %cst_48 = arith.constant 1.000000e+00 : f32
    %134 = vector.broadcast %cst_48 : f32 to vector<8x32xf32>
    %135 = arith.addf %134, %133 : vector<8x32xf32>
    %136 = arith.divf %134, %135 : vector<8x32xf32>
    %137 = vector.extract_strided_slice %118 {offsets = [0, 256], sizes = [8, 32], strides = [1, 1]} : vector<8x384xf32> to vector<8x32xf32>
    %138 = vector.extract_strided_slice %120 {offsets = [0, 256], sizes = [8, 32], strides = [1, 1]} : vector<8x384xf32> to vector<8x32xf32>
    %139 = arith.addf %138, %9 : vector<8x32xf32>
    %140 = arith.mulf %128, %139 : vector<8x32xf32>
    %141 = arith.addf %137, %140 : vector<8x32xf32>
    %142 = math.tanh %141 : vector<8x32xf32>
    %cst_49 = arith.constant 1.000000e+00 : f32
    %143 = vector.broadcast %cst_49 : f32 to vector<8x32xf32>
    %144 = arith.subf %143, %136 : vector<8x32xf32>
    %145 = arith.mulf %144, %142 : vector<8x32xf32>
    %146 = arith.mulf %136, %82 : vector<8x32xf32>
    %147 = arith.addf %145, %146 : vector<8x32xf32>
    %c0_50 = arith.constant 0 : index
    %c0_51 = arith.constant 0 : index
    %148 = vector.load %arg6[%c0_50, %c0_51] : memref<32x384xf32, #tpu.memory_space<vmem>>, vector<32x384xf32>
    %cst_52 = arith.constant dense<0.000000e+00> : vector<8x384xf32>
    %149 = tpu.matmul %82, %148, %cst_52 {dimension_numbers = #tpu.dot_dimension_numbers<[1], [0], [0], [1], [0, 0, 1, 1], [], []>} : vector<8x32xf32>, vector<32x384xf32>, vector<8x384xf32> -> vector<8x384xf32>
    %150 = arith.addf %149, %15 : vector<8x384xf32>
    %c0_53 = arith.constant 0 : index
    %c0_54 = arith.constant 0 : index
    %151 = vector.load %arg7[%c0_53, %c0_54] : memref<32x384xf32, #tpu.memory_space<vmem>>, vector<32x384xf32>
    %cst_55 = arith.constant dense<0.000000e+00> : vector<8x384xf32>
    %152 = tpu.matmul %114, %151, %cst_55 {dimension_numbers = #tpu.dot_dimension_numbers<[1], [0], [0], [1], [0, 0, 1, 1], [], []>} : vector<8x32xf32>, vector<32x384xf32>, vector<8x384xf32> -> vector<8x384xf32>
    %153 = vector.extract_strided_slice %150 {offsets = [0, 0], sizes = [8, 32], strides = [1, 1]} : vector<8x384xf32> to vector<8x32xf32>
    %154 = vector.extract_strided_slice %152 {offsets = [0, 0], sizes = [8, 32], strides = [1, 1]} : vector<8x384xf32> to vector<8x32xf32>
    %155 = arith.addf %153, %154 : vector<8x32xf32>
    %156 = arith.negf %155 : vector<8x32xf32>
    %157 = math.exp %156 : vector<8x32xf32>
    %cst_56 = arith.constant 1.000000e+00 : f32
    %158 = vector.broadcast %cst_56 : f32 to vector<8x32xf32>
    %159 = arith.addf %158, %157 : vector<8x32xf32>
    %160 = arith.divf %158, %159 : vector<8x32xf32>
    %161 = vector.extract_strided_slice %150 {offsets = [0, 128], sizes = [8, 32], strides = [1, 1]} : vector<8x384xf32> to vector<8x32xf32>
    %162 = vector.extract_strided_slice %152 {offsets = [0, 128], sizes = [8, 32], strides = [1, 1]} : vector<8x384xf32> to vector<8x32xf32>
    %163 = arith.addf %161, %162 : vector<8x32xf32>
    %164 = arith.negf %163 : vector<8x32xf32>
    %165 = math.exp %164 : vector<8x32xf32>
    %cst_57 = arith.constant 1.000000e+00 : f32
    %166 = vector.broadcast %cst_57 : f32 to vector<8x32xf32>
    %167 = arith.addf %166, %165 : vector<8x32xf32>
    %168 = arith.divf %166, %167 : vector<8x32xf32>
    %169 = vector.extract_strided_slice %150 {offsets = [0, 256], sizes = [8, 32], strides = [1, 1]} : vector<8x384xf32> to vector<8x32xf32>
    %170 = vector.extract_strided_slice %152 {offsets = [0, 256], sizes = [8, 32], strides = [1, 1]} : vector<8x384xf32> to vector<8x32xf32>
    %171 = arith.addf %170, %12 : vector<8x32xf32>
    %172 = arith.mulf %160, %171 : vector<8x32xf32>
    %173 = arith.addf %169, %172 : vector<8x32xf32>
    %174 = math.tanh %173 : vector<8x32xf32>
    %cst_58 = arith.constant 1.000000e+00 : f32
    %175 = vector.broadcast %cst_58 : f32 to vector<8x32xf32>
    %176 = arith.subf %175, %168 : vector<8x32xf32>
    %177 = arith.mulf %176, %174 : vector<8x32xf32>
    %178 = arith.mulf %168, %114 : vector<8x32xf32>
    %179 = arith.addf %177, %178 : vector<8x32xf32>
    %c3_i32 = arith.constant 3 : i32
    %c8_i32_59 = arith.constant 8 : i32
    %180 = arith.muli %c3_i32, %c8_i32_59 : i32
    %181 = tpu.assume_multiple %180, 8 : i32
    %182 = arith.index_cast %181 : i32 to index
    %c0_60 = arith.constant 0 : index
    %183 = vector.load %arg14[%182, %c0_60] : memref<64x384xf32, #tpu.memory_space<vmem>>, vector<8x384xf32>
    %c0_61 = arith.constant 0 : index
    %c0_62 = arith.constant 0 : index
    %184 = vector.load %arg3[%c0_61, %c0_62] : memref<32x384xf32, #tpu.memory_space<vmem>>, vector<32x384xf32>
    %cst_63 = arith.constant dense<0.000000e+00> : vector<8x384xf32>
    %185 = tpu.matmul %147, %184, %cst_63 {dimension_numbers = #tpu.dot_dimension_numbers<[1], [0], [0], [1], [0, 0, 1, 1], [], []>} : vector<8x32xf32>, vector<32x384xf32>, vector<8x384xf32> -> vector<8x384xf32>
    %186 = vector.extract_strided_slice %183 {offsets = [0, 0], sizes = [8, 32], strides = [1, 1]} : vector<8x384xf32> to vector<8x32xf32>
    %187 = vector.extract_strided_slice %185 {offsets = [0, 0], sizes = [8, 32], strides = [1, 1]} : vector<8x384xf32> to vector<8x32xf32>
    %188 = arith.addf %186, %187 : vector<8x32xf32>
    %189 = arith.negf %188 : vector<8x32xf32>
    %190 = math.exp %189 : vector<8x32xf32>
    %cst_64 = arith.constant 1.000000e+00 : f32
    %191 = vector.broadcast %cst_64 : f32 to vector<8x32xf32>
    %192 = arith.addf %191, %190 : vector<8x32xf32>
    %193 = arith.divf %191, %192 : vector<8x32xf32>
    %194 = vector.extract_strided_slice %183 {offsets = [0, 128], sizes = [8, 32], strides = [1, 1]} : vector<8x384xf32> to vector<8x32xf32>
    %195 = vector.extract_strided_slice %185 {offsets = [0, 128], sizes = [8, 32], strides = [1, 1]} : vector<8x384xf32> to vector<8x32xf32>
    %196 = arith.addf %194, %195 : vector<8x32xf32>
    %197 = arith.negf %196 : vector<8x32xf32>
    %198 = math.exp %197 : vector<8x32xf32>
    %cst_65 = arith.constant 1.000000e+00 : f32
    %199 = vector.broadcast %cst_65 : f32 to vector<8x32xf32>
    %200 = arith.addf %199, %198 : vector<8x32xf32>
    %201 = arith.divf %199, %200 : vector<8x32xf32>
    %202 = vector.extract_strided_slice %183 {offsets = [0, 256], sizes = [8, 32], strides = [1, 1]} : vector<8x384xf32> to vector<8x32xf32>
    %203 = vector.extract_strided_slice %185 {offsets = [0, 256], sizes = [8, 32], strides = [1, 1]} : vector<8x384xf32> to vector<8x32xf32>
    %204 = arith.addf %203, %9 : vector<8x32xf32>
    %205 = arith.mulf %193, %204 : vector<8x32xf32>
    %206 = arith.addf %202, %205 : vector<8x32xf32>
    %207 = math.tanh %206 : vector<8x32xf32>
    %cst_66 = arith.constant 1.000000e+00 : f32
    %208 = vector.broadcast %cst_66 : f32 to vector<8x32xf32>
    %209 = arith.subf %208, %201 : vector<8x32xf32>
    %210 = arith.mulf %209, %207 : vector<8x32xf32>
    %211 = arith.mulf %201, %147 : vector<8x32xf32>
    %212 = arith.addf %210, %211 : vector<8x32xf32>
    %c0_67 = arith.constant 0 : index
    %c0_68 = arith.constant 0 : index
    %213 = vector.load %arg6[%c0_67, %c0_68] : memref<32x384xf32, #tpu.memory_space<vmem>>, vector<32x384xf32>
    %cst_69 = arith.constant dense<0.000000e+00> : vector<8x384xf32>
    %214 = tpu.matmul %147, %213, %cst_69 {dimension_numbers = #tpu.dot_dimension_numbers<[1], [0], [0], [1], [0, 0, 1, 1], [], []>} : vector<8x32xf32>, vector<32x384xf32>, vector<8x384xf32> -> vector<8x384xf32>
    %215 = arith.addf %214, %15 : vector<8x384xf32>
    %c0_70 = arith.constant 0 : index
    %c0_71 = arith.constant 0 : index
    %216 = vector.load %arg7[%c0_70, %c0_71] : memref<32x384xf32, #tpu.memory_space<vmem>>, vector<32x384xf32>
    %cst_72 = arith.constant dense<0.000000e+00> : vector<8x384xf32>
    %217 = tpu.matmul %179, %216, %cst_72 {dimension_numbers = #tpu.dot_dimension_numbers<[1], [0], [0], [1], [0, 0, 1, 1], [], []>} : vector<8x32xf32>, vector<32x384xf32>, vector<8x384xf32> -> vector<8x384xf32>
    %218 = vector.extract_strided_slice %215 {offsets = [0, 0], sizes = [8, 32], strides = [1, 1]} : vector<8x384xf32> to vector<8x32xf32>
    %219 = vector.extract_strided_slice %217 {offsets = [0, 0], sizes = [8, 32], strides = [1, 1]} : vector<8x384xf32> to vector<8x32xf32>
    %220 = arith.addf %218, %219 : vector<8x32xf32>
    %221 = arith.negf %220 : vector<8x32xf32>
    %222 = math.exp %221 : vector<8x32xf32>
    %cst_73 = arith.constant 1.000000e+00 : f32
    %223 = vector.broadcast %cst_73 : f32 to vector<8x32xf32>
    %224 = arith.addf %223, %222 : vector<8x32xf32>
    %225 = arith.divf %223, %224 : vector<8x32xf32>
    %226 = vector.extract_strided_slice %215 {offsets = [0, 128], sizes = [8, 32], strides = [1, 1]} : vector<8x384xf32> to vector<8x32xf32>
    %227 = vector.extract_strided_slice %217 {offsets = [0, 128], sizes = [8, 32], strides = [1, 1]} : vector<8x384xf32> to vector<8x32xf32>
    %228 = arith.addf %226, %227 : vector<8x32xf32>
    %229 = arith.negf %228 : vector<8x32xf32>
    %230 = math.exp %229 : vector<8x32xf32>
    %cst_74 = arith.constant 1.000000e+00 : f32
    %231 = vector.broadcast %cst_74 : f32 to vector<8x32xf32>
    %232 = arith.addf %231, %230 : vector<8x32xf32>
    %233 = arith.divf %231, %232 : vector<8x32xf32>
    %234 = vector.extract_strided_slice %215 {offsets = [0, 256], sizes = [8, 32], strides = [1, 1]} : vector<8x384xf32> to vector<8x32xf32>
    %235 = vector.extract_strided_slice %217 {offsets = [0, 256], sizes = [8, 32], strides = [1, 1]} : vector<8x384xf32> to vector<8x32xf32>
    %236 = arith.addf %235, %12 : vector<8x32xf32>
    %237 = arith.mulf %225, %236 : vector<8x32xf32>
    %238 = arith.addf %234, %237 : vector<8x32xf32>
    %239 = math.tanh %238 : vector<8x32xf32>
    %cst_75 = arith.constant 1.000000e+00 : f32
    %240 = vector.broadcast %cst_75 : f32 to vector<8x32xf32>
    %241 = arith.subf %240, %233 : vector<8x32xf32>
    %242 = arith.mulf %241, %239 : vector<8x32xf32>
    %243 = arith.mulf %233, %179 : vector<8x32xf32>
    %244 = arith.addf %242, %243 : vector<8x32xf32>
    %c4_i32 = arith.constant 4 : i32
    %c8_i32_76 = arith.constant 8 : i32
    %245 = arith.muli %c4_i32, %c8_i32_76 : i32
    %246 = tpu.assume_multiple %245, 8 : i32
    %247 = arith.index_cast %246 : i32 to index
    %c0_77 = arith.constant 0 : index
    %248 = vector.load %arg14[%247, %c0_77] : memref<64x384xf32, #tpu.memory_space<vmem>>, vector<8x384xf32>
    %c0_78 = arith.constant 0 : index
    %c0_79 = arith.constant 0 : index
    %249 = vector.load %arg3[%c0_78, %c0_79] : memref<32x384xf32, #tpu.memory_space<vmem>>, vector<32x384xf32>
    %cst_80 = arith.constant dense<0.000000e+00> : vector<8x384xf32>
    %250 = tpu.matmul %212, %249, %cst_80 {dimension_numbers = #tpu.dot_dimension_numbers<[1], [0], [0], [1], [0, 0, 1, 1], [], []>} : vector<8x32xf32>, vector<32x384xf32>, vector<8x384xf32> -> vector<8x384xf32>
    %251 = vector.extract_strided_slice %248 {offsets = [0, 0], sizes = [8, 32], strides = [1, 1]} : vector<8x384xf32> to vector<8x32xf32>
    %252 = vector.extract_strided_slice %250 {offsets = [0, 0], sizes = [8, 32], strides = [1, 1]} : vector<8x384xf32> to vector<8x32xf32>
    %253 = arith.addf %251, %252 : vector<8x32xf32>
    %254 = arith.negf %253 : vector<8x32xf32>
    %255 = math.exp %254 : vector<8x32xf32>
    %cst_81 = arith.constant 1.000000e+00 : f32
    %256 = vector.broadcast %cst_81 : f32 to vector<8x32xf32>
    %257 = arith.addf %256, %255 : vector<8x32xf32>
    %258 = arith.divf %256, %257 : vector<8x32xf32>
    %259 = vector.extract_strided_slice %248 {offsets = [0, 128], sizes = [8, 32], strides = [1, 1]} : vector<8x384xf32> to vector<8x32xf32>
    %260 = vector.extract_strided_slice %250 {offsets = [0, 128], sizes = [8, 32], strides = [1, 1]} : vector<8x384xf32> to vector<8x32xf32>
    %261 = arith.addf %259, %260 : vector<8x32xf32>
    %262 = arith.negf %261 : vector<8x32xf32>
    %263 = math.exp %262 : vector<8x32xf32>
    %cst_82 = arith.constant 1.000000e+00 : f32
    %264 = vector.broadcast %cst_82 : f32 to vector<8x32xf32>
    %265 = arith.addf %264, %263 : vector<8x32xf32>
    %266 = arith.divf %264, %265 : vector<8x32xf32>
    %267 = vector.extract_strided_slice %248 {offsets = [0, 256], sizes = [8, 32], strides = [1, 1]} : vector<8x384xf32> to vector<8x32xf32>
    %268 = vector.extract_strided_slice %250 {offsets = [0, 256], sizes = [8, 32], strides = [1, 1]} : vector<8x384xf32> to vector<8x32xf32>
    %269 = arith.addf %268, %9 : vector<8x32xf32>
    %270 = arith.mulf %258, %269 : vector<8x32xf32>
    %271 = arith.addf %267, %270 : vector<8x32xf32>
    %272 = math.tanh %271 : vector<8x32xf32>
    %cst_83 = arith.constant 1.000000e+00 : f32
    %273 = vector.broadcast %cst_83 : f32 to vector<8x32xf32>
    %274 = arith.subf %273, %266 : vector<8x32xf32>
    %275 = arith.mulf %274, %272 : vector<8x32xf32>
    %276 = arith.mulf %266, %212 : vector<8x32xf32>
    %277 = arith.addf %275, %276 : vector<8x32xf32>
    %c0_84 = arith.constant 0 : index
    %c0_85 = arith.constant 0 : index
    %278 = vector.load %arg6[%c0_84, %c0_85] : memref<32x384xf32, #tpu.memory_space<vmem>>, vector<32x384xf32>
    %cst_86 = arith.constant dense<0.000000e+00> : vector<8x384xf32>
    %279 = tpu.matmul %212, %278, %cst_86 {dimension_numbers = #tpu.dot_dimension_numbers<[1], [0], [0], [1], [0, 0, 1, 1], [], []>} : vector<8x32xf32>, vector<32x384xf32>, vector<8x384xf32> -> vector<8x384xf32>
    %280 = arith.addf %279, %15 : vector<8x384xf32>
    %c0_87 = arith.constant 0 : index
    %c0_88 = arith.constant 0 : index
    %281 = vector.load %arg7[%c0_87, %c0_88] : memref<32x384xf32, #tpu.memory_space<vmem>>, vector<32x384xf32>
    %cst_89 = arith.constant dense<0.000000e+00> : vector<8x384xf32>
    %282 = tpu.matmul %244, %281, %cst_89 {dimension_numbers = #tpu.dot_dimension_numbers<[1], [0], [0], [1], [0, 0, 1, 1], [], []>} : vector<8x32xf32>, vector<32x384xf32>, vector<8x384xf32> -> vector<8x384xf32>
    %283 = vector.extract_strided_slice %280 {offsets = [0, 0], sizes = [8, 32], strides = [1, 1]} : vector<8x384xf32> to vector<8x32xf32>
    %284 = vector.extract_strided_slice %282 {offsets = [0, 0], sizes = [8, 32], strides = [1, 1]} : vector<8x384xf32> to vector<8x32xf32>
    %285 = arith.addf %283, %284 : vector<8x32xf32>
    %286 = arith.negf %285 : vector<8x32xf32>
    %287 = math.exp %286 : vector<8x32xf32>
    %cst_90 = arith.constant 1.000000e+00 : f32
    %288 = vector.broadcast %cst_90 : f32 to vector<8x32xf32>
    %289 = arith.addf %288, %287 : vector<8x32xf32>
    %290 = arith.divf %288, %289 : vector<8x32xf32>
    %291 = vector.extract_strided_slice %280 {offsets = [0, 128], sizes = [8, 32], strides = [1, 1]} : vector<8x384xf32> to vector<8x32xf32>
    %292 = vector.extract_strided_slice %282 {offsets = [0, 128], sizes = [8, 32], strides = [1, 1]} : vector<8x384xf32> to vector<8x32xf32>
    %293 = arith.addf %291, %292 : vector<8x32xf32>
    %294 = arith.negf %293 : vector<8x32xf32>
    %295 = math.exp %294 : vector<8x32xf32>
    %cst_91 = arith.constant 1.000000e+00 : f32
    %296 = vector.broadcast %cst_91 : f32 to vector<8x32xf32>
    %297 = arith.addf %296, %295 : vector<8x32xf32>
    %298 = arith.divf %296, %297 : vector<8x32xf32>
    %299 = vector.extract_strided_slice %280 {offsets = [0, 256], sizes = [8, 32], strides = [1, 1]} : vector<8x384xf32> to vector<8x32xf32>
    %300 = vector.extract_strided_slice %282 {offsets = [0, 256], sizes = [8, 32], strides = [1, 1]} : vector<8x384xf32> to vector<8x32xf32>
    %301 = arith.addf %300, %12 : vector<8x32xf32>
    %302 = arith.mulf %290, %301 : vector<8x32xf32>
    %303 = arith.addf %299, %302 : vector<8x32xf32>
    %304 = math.tanh %303 : vector<8x32xf32>
    %cst_92 = arith.constant 1.000000e+00 : f32
    %305 = vector.broadcast %cst_92 : f32 to vector<8x32xf32>
    %306 = arith.subf %305, %298 : vector<8x32xf32>
    %307 = arith.mulf %306, %304 : vector<8x32xf32>
    %308 = arith.mulf %298, %244 : vector<8x32xf32>
    %309 = arith.addf %307, %308 : vector<8x32xf32>
    %c5_i32 = arith.constant 5 : i32
    %c8_i32_93 = arith.constant 8 : i32
    %310 = arith.muli %c5_i32, %c8_i32_93 : i32
    %311 = tpu.assume_multiple %310, 8 : i32
    %312 = arith.index_cast %311 : i32 to index
    %c0_94 = arith.constant 0 : index
    %313 = vector.load %arg14[%312, %c0_94] : memref<64x384xf32, #tpu.memory_space<vmem>>, vector<8x384xf32>
    %c0_95 = arith.constant 0 : index
    %c0_96 = arith.constant 0 : index
    %314 = vector.load %arg3[%c0_95, %c0_96] : memref<32x384xf32, #tpu.memory_space<vmem>>, vector<32x384xf32>
    %cst_97 = arith.constant dense<0.000000e+00> : vector<8x384xf32>
    %315 = tpu.matmul %277, %314, %cst_97 {dimension_numbers = #tpu.dot_dimension_numbers<[1], [0], [0], [1], [0, 0, 1, 1], [], []>} : vector<8x32xf32>, vector<32x384xf32>, vector<8x384xf32> -> vector<8x384xf32>
    %316 = vector.extract_strided_slice %313 {offsets = [0, 0], sizes = [8, 32], strides = [1, 1]} : vector<8x384xf32> to vector<8x32xf32>
    %317 = vector.extract_strided_slice %315 {offsets = [0, 0], sizes = [8, 32], strides = [1, 1]} : vector<8x384xf32> to vector<8x32xf32>
    %318 = arith.addf %316, %317 : vector<8x32xf32>
    %319 = arith.negf %318 : vector<8x32xf32>
    %320 = math.exp %319 : vector<8x32xf32>
    %cst_98 = arith.constant 1.000000e+00 : f32
    %321 = vector.broadcast %cst_98 : f32 to vector<8x32xf32>
    %322 = arith.addf %321, %320 : vector<8x32xf32>
    %323 = arith.divf %321, %322 : vector<8x32xf32>
    %324 = vector.extract_strided_slice %313 {offsets = [0, 128], sizes = [8, 32], strides = [1, 1]} : vector<8x384xf32> to vector<8x32xf32>
    %325 = vector.extract_strided_slice %315 {offsets = [0, 128], sizes = [8, 32], strides = [1, 1]} : vector<8x384xf32> to vector<8x32xf32>
    %326 = arith.addf %324, %325 : vector<8x32xf32>
    %327 = arith.negf %326 : vector<8x32xf32>
    %328 = math.exp %327 : vector<8x32xf32>
    %cst_99 = arith.constant 1.000000e+00 : f32
    %329 = vector.broadcast %cst_99 : f32 to vector<8x32xf32>
    %330 = arith.addf %329, %328 : vector<8x32xf32>
    %331 = arith.divf %329, %330 : vector<8x32xf32>
    %332 = vector.extract_strided_slice %313 {offsets = [0, 256], sizes = [8, 32], strides = [1, 1]} : vector<8x384xf32> to vector<8x32xf32>
    %333 = vector.extract_strided_slice %315 {offsets = [0, 256], sizes = [8, 32], strides = [1, 1]} : vector<8x384xf32> to vector<8x32xf32>
    %334 = arith.addf %333, %9 : vector<8x32xf32>
    %335 = arith.mulf %323, %334 : vector<8x32xf32>
    %336 = arith.addf %332, %335 : vector<8x32xf32>
    %337 = math.tanh %336 : vector<8x32xf32>
    %cst_100 = arith.constant 1.000000e+00 : f32
    %338 = vector.broadcast %cst_100 : f32 to vector<8x32xf32>
    %339 = arith.subf %338, %331 : vector<8x32xf32>
    %340 = arith.mulf %339, %337 : vector<8x32xf32>
    %341 = arith.mulf %331, %277 : vector<8x32xf32>
    %342 = arith.addf %340, %341 : vector<8x32xf32>
    %c0_101 = arith.constant 0 : index
    %c0_102 = arith.constant 0 : index
    %343 = vector.load %arg6[%c0_101, %c0_102] : memref<32x384xf32, #tpu.memory_space<vmem>>, vector<32x384xf32>
    %cst_103 = arith.constant dense<0.000000e+00> : vector<8x384xf32>
    %344 = tpu.matmul %277, %343, %cst_103 {dimension_numbers = #tpu.dot_dimension_numbers<[1], [0], [0], [1], [0, 0, 1, 1], [], []>} : vector<8x32xf32>, vector<32x384xf32>, vector<8x384xf32> -> vector<8x384xf32>
    %345 = arith.addf %344, %15 : vector<8x384xf32>
    %c0_104 = arith.constant 0 : index
    %c0_105 = arith.constant 0 : index
    %346 = vector.load %arg7[%c0_104, %c0_105] : memref<32x384xf32, #tpu.memory_space<vmem>>, vector<32x384xf32>
    %cst_106 = arith.constant dense<0.000000e+00> : vector<8x384xf32>
    %347 = tpu.matmul %309, %346, %cst_106 {dimension_numbers = #tpu.dot_dimension_numbers<[1], [0], [0], [1], [0, 0, 1, 1], [], []>} : vector<8x32xf32>, vector<32x384xf32>, vector<8x384xf32> -> vector<8x384xf32>
    %348 = vector.extract_strided_slice %345 {offsets = [0, 0], sizes = [8, 32], strides = [1, 1]} : vector<8x384xf32> to vector<8x32xf32>
    %349 = vector.extract_strided_slice %347 {offsets = [0, 0], sizes = [8, 32], strides = [1, 1]} : vector<8x384xf32> to vector<8x32xf32>
    %350 = arith.addf %348, %349 : vector<8x32xf32>
    %351 = arith.negf %350 : vector<8x32xf32>
    %352 = math.exp %351 : vector<8x32xf32>
    %cst_107 = arith.constant 1.000000e+00 : f32
    %353 = vector.broadcast %cst_107 : f32 to vector<8x32xf32>
    %354 = arith.addf %353, %352 : vector<8x32xf32>
    %355 = arith.divf %353, %354 : vector<8x32xf32>
    %356 = vector.extract_strided_slice %345 {offsets = [0, 128], sizes = [8, 32], strides = [1, 1]} : vector<8x384xf32> to vector<8x32xf32>
    %357 = vector.extract_strided_slice %347 {offsets = [0, 128], sizes = [8, 32], strides = [1, 1]} : vector<8x384xf32> to vector<8x32xf32>
    %358 = arith.addf %356, %357 : vector<8x32xf32>
    %359 = arith.negf %358 : vector<8x32xf32>
    %360 = math.exp %359 : vector<8x32xf32>
    %cst_108 = arith.constant 1.000000e+00 : f32
    %361 = vector.broadcast %cst_108 : f32 to vector<8x32xf32>
    %362 = arith.addf %361, %360 : vector<8x32xf32>
    %363 = arith.divf %361, %362 : vector<8x32xf32>
    %364 = vector.extract_strided_slice %345 {offsets = [0, 256], sizes = [8, 32], strides = [1, 1]} : vector<8x384xf32> to vector<8x32xf32>
    %365 = vector.extract_strided_slice %347 {offsets = [0, 256], sizes = [8, 32], strides = [1, 1]} : vector<8x384xf32> to vector<8x32xf32>
    %366 = arith.addf %365, %12 : vector<8x32xf32>
    %367 = arith.mulf %355, %366 : vector<8x32xf32>
    %368 = arith.addf %364, %367 : vector<8x32xf32>
    %369 = math.tanh %368 : vector<8x32xf32>
    %cst_109 = arith.constant 1.000000e+00 : f32
    %370 = vector.broadcast %cst_109 : f32 to vector<8x32xf32>
    %371 = arith.subf %370, %363 : vector<8x32xf32>
    %372 = arith.mulf %371, %369 : vector<8x32xf32>
    %373 = arith.mulf %363, %309 : vector<8x32xf32>
    %374 = arith.addf %372, %373 : vector<8x32xf32>
    %c6_i32 = arith.constant 6 : i32
    %c8_i32_110 = arith.constant 8 : i32
    %375 = arith.muli %c6_i32, %c8_i32_110 : i32
    %376 = tpu.assume_multiple %375, 8 : i32
    %377 = arith.index_cast %376 : i32 to index
    %c0_111 = arith.constant 0 : index
    %378 = vector.load %arg14[%377, %c0_111] : memref<64x384xf32, #tpu.memory_space<vmem>>, vector<8x384xf32>
    %c0_112 = arith.constant 0 : index
    %c0_113 = arith.constant 0 : index
    %379 = vector.load %arg3[%c0_112, %c0_113] : memref<32x384xf32, #tpu.memory_space<vmem>>, vector<32x384xf32>
    %cst_114 = arith.constant dense<0.000000e+00> : vector<8x384xf32>
    %380 = tpu.matmul %342, %379, %cst_114 {dimension_numbers = #tpu.dot_dimension_numbers<[1], [0], [0], [1], [0, 0, 1, 1], [], []>} : vector<8x32xf32>, vector<32x384xf32>, vector<8x384xf32> -> vector<8x384xf32>
    %381 = vector.extract_strided_slice %378 {offsets = [0, 0], sizes = [8, 32], strides = [1, 1]} : vector<8x384xf32> to vector<8x32xf32>
    %382 = vector.extract_strided_slice %380 {offsets = [0, 0], sizes = [8, 32], strides = [1, 1]} : vector<8x384xf32> to vector<8x32xf32>
    %383 = arith.addf %381, %382 : vector<8x32xf32>
    %384 = arith.negf %383 : vector<8x32xf32>
    %385 = math.exp %384 : vector<8x32xf32>
    %cst_115 = arith.constant 1.000000e+00 : f32
    %386 = vector.broadcast %cst_115 : f32 to vector<8x32xf32>
    %387 = arith.addf %386, %385 : vector<8x32xf32>
    %388 = arith.divf %386, %387 : vector<8x32xf32>
    %389 = vector.extract_strided_slice %378 {offsets = [0, 128], sizes = [8, 32], strides = [1, 1]} : vector<8x384xf32> to vector<8x32xf32>
    %390 = vector.extract_strided_slice %380 {offsets = [0, 128], sizes = [8, 32], strides = [1, 1]} : vector<8x384xf32> to vector<8x32xf32>
    %391 = arith.addf %389, %390 : vector<8x32xf32>
    %392 = arith.negf %391 : vector<8x32xf32>
    %393 = math.exp %392 : vector<8x32xf32>
    %cst_116 = arith.constant 1.000000e+00 : f32
    %394 = vector.broadcast %cst_116 : f32 to vector<8x32xf32>
    %395 = arith.addf %394, %393 : vector<8x32xf32>
    %396 = arith.divf %394, %395 : vector<8x32xf32>
    %397 = vector.extract_strided_slice %378 {offsets = [0, 256], sizes = [8, 32], strides = [1, 1]} : vector<8x384xf32> to vector<8x32xf32>
    %398 = vector.extract_strided_slice %380 {offsets = [0, 256], sizes = [8, 32], strides = [1, 1]} : vector<8x384xf32> to vector<8x32xf32>
    %399 = arith.addf %398, %9 : vector<8x32xf32>
    %400 = arith.mulf %388, %399 : vector<8x32xf32>
    %401 = arith.addf %397, %400 : vector<8x32xf32>
    %402 = math.tanh %401 : vector<8x32xf32>
    %cst_117 = arith.constant 1.000000e+00 : f32
    %403 = vector.broadcast %cst_117 : f32 to vector<8x32xf32>
    %404 = arith.subf %403, %396 : vector<8x32xf32>
    %405 = arith.mulf %404, %402 : vector<8x32xf32>
    %406 = arith.mulf %396, %342 : vector<8x32xf32>
    %407 = arith.addf %405, %406 : vector<8x32xf32>
    %c0_118 = arith.constant 0 : index
    %c0_119 = arith.constant 0 : index
    %408 = vector.load %arg6[%c0_118, %c0_119] : memref<32x384xf32, #tpu.memory_space<vmem>>, vector<32x384xf32>
    %cst_120 = arith.constant dense<0.000000e+00> : vector<8x384xf32>
    %409 = tpu.matmul %342, %408, %cst_120 {dimension_numbers = #tpu.dot_dimension_numbers<[1], [0], [0], [1], [0, 0, 1, 1], [], []>} : vector<8x32xf32>, vector<32x384xf32>, vector<8x384xf32> -> vector<8x384xf32>
    %410 = arith.addf %409, %15 : vector<8x384xf32>
    %c0_121 = arith.constant 0 : index
    %c0_122 = arith.constant 0 : index
    %411 = vector.load %arg7[%c0_121, %c0_122] : memref<32x384xf32, #tpu.memory_space<vmem>>, vector<32x384xf32>
    %cst_123 = arith.constant dense<0.000000e+00> : vector<8x384xf32>
    %412 = tpu.matmul %374, %411, %cst_123 {dimension_numbers = #tpu.dot_dimension_numbers<[1], [0], [0], [1], [0, 0, 1, 1], [], []>} : vector<8x32xf32>, vector<32x384xf32>, vector<8x384xf32> -> vector<8x384xf32>
    %413 = vector.extract_strided_slice %410 {offsets = [0, 0], sizes = [8, 32], strides = [1, 1]} : vector<8x384xf32> to vector<8x32xf32>
    %414 = vector.extract_strided_slice %412 {offsets = [0, 0], sizes = [8, 32], strides = [1, 1]} : vector<8x384xf32> to vector<8x32xf32>
    %415 = arith.addf %413, %414 : vector<8x32xf32>
    %416 = arith.negf %415 : vector<8x32xf32>
    %417 = math.exp %416 : vector<8x32xf32>
    %cst_124 = arith.constant 1.000000e+00 : f32
    %418 = vector.broadcast %cst_124 : f32 to vector<8x32xf32>
    %419 = arith.addf %418, %417 : vector<8x32xf32>
    %420 = arith.divf %418, %419 : vector<8x32xf32>
    %421 = vector.extract_strided_slice %410 {offsets = [0, 128], sizes = [8, 32], strides = [1, 1]} : vector<8x384xf32> to vector<8x32xf32>
    %422 = vector.extract_strided_slice %412 {offsets = [0, 128], sizes = [8, 32], strides = [1, 1]} : vector<8x384xf32> to vector<8x32xf32>
    %423 = arith.addf %421, %422 : vector<8x32xf32>
    %424 = arith.negf %423 : vector<8x32xf32>
    %425 = math.exp %424 : vector<8x32xf32>
    %cst_125 = arith.constant 1.000000e+00 : f32
    %426 = vector.broadcast %cst_125 : f32 to vector<8x32xf32>
    %427 = arith.addf %426, %425 : vector<8x32xf32>
    %428 = arith.divf %426, %427 : vector<8x32xf32>
    %429 = vector.extract_strided_slice %410 {offsets = [0, 256], sizes = [8, 32], strides = [1, 1]} : vector<8x384xf32> to vector<8x32xf32>
    %430 = vector.extract_strided_slice %412 {offsets = [0, 256], sizes = [8, 32], strides = [1, 1]} : vector<8x384xf32> to vector<8x32xf32>
    %431 = arith.addf %430, %12 : vector<8x32xf32>
    %432 = arith.mulf %420, %431 : vector<8x32xf32>
    %433 = arith.addf %429, %432 : vector<8x32xf32>
    %434 = math.tanh %433 : vector<8x32xf32>
    %cst_126 = arith.constant 1.000000e+00 : f32
    %435 = vector.broadcast %cst_126 : f32 to vector<8x32xf32>
    %436 = arith.subf %435, %428 : vector<8x32xf32>
    %437 = arith.mulf %436, %434 : vector<8x32xf32>
    %438 = arith.mulf %428, %374 : vector<8x32xf32>
    %439 = arith.addf %437, %438 : vector<8x32xf32>
    %c7_i32 = arith.constant 7 : i32
    %c8_i32_127 = arith.constant 8 : i32
    %440 = arith.muli %c7_i32, %c8_i32_127 : i32
    %441 = tpu.assume_multiple %440, 8 : i32
    %442 = arith.index_cast %441 : i32 to index
    %c0_128 = arith.constant 0 : index
    %443 = vector.load %arg14[%442, %c0_128] : memref<64x384xf32, #tpu.memory_space<vmem>>, vector<8x384xf32>
    %c0_129 = arith.constant 0 : index
    %c0_130 = arith.constant 0 : index
    %444 = vector.load %arg3[%c0_129, %c0_130] : memref<32x384xf32, #tpu.memory_space<vmem>>, vector<32x384xf32>
    %cst_131 = arith.constant dense<0.000000e+00> : vector<8x384xf32>
    %445 = tpu.matmul %407, %444, %cst_131 {dimension_numbers = #tpu.dot_dimension_numbers<[1], [0], [0], [1], [0, 0, 1, 1], [], []>} : vector<8x32xf32>, vector<32x384xf32>, vector<8x384xf32> -> vector<8x384xf32>
    %446 = vector.extract_strided_slice %443 {offsets = [0, 0], sizes = [8, 32], strides = [1, 1]} : vector<8x384xf32> to vector<8x32xf32>
    %447 = vector.extract_strided_slice %445 {offsets = [0, 0], sizes = [8, 32], strides = [1, 1]} : vector<8x384xf32> to vector<8x32xf32>
    %448 = arith.addf %446, %447 : vector<8x32xf32>
    %449 = arith.negf %448 : vector<8x32xf32>
    %450 = math.exp %449 : vector<8x32xf32>
    %cst_132 = arith.constant 1.000000e+00 : f32
    %451 = vector.broadcast %cst_132 : f32 to vector<8x32xf32>
    %452 = arith.addf %451, %450 : vector<8x32xf32>
    %453 = arith.divf %451, %452 : vector<8x32xf32>
    %454 = vector.extract_strided_slice %443 {offsets = [0, 128], sizes = [8, 32], strides = [1, 1]} : vector<8x384xf32> to vector<8x32xf32>
    %455 = vector.extract_strided_slice %445 {offsets = [0, 128], sizes = [8, 32], strides = [1, 1]} : vector<8x384xf32> to vector<8x32xf32>
    %456 = arith.addf %454, %455 : vector<8x32xf32>
    %457 = arith.negf %456 : vector<8x32xf32>
    %458 = math.exp %457 : vector<8x32xf32>
    %cst_133 = arith.constant 1.000000e+00 : f32
    %459 = vector.broadcast %cst_133 : f32 to vector<8x32xf32>
    %460 = arith.addf %459, %458 : vector<8x32xf32>
    %461 = arith.divf %459, %460 : vector<8x32xf32>
    %462 = vector.extract_strided_slice %443 {offsets = [0, 256], sizes = [8, 32], strides = [1, 1]} : vector<8x384xf32> to vector<8x32xf32>
    %463 = vector.extract_strided_slice %445 {offsets = [0, 256], sizes = [8, 32], strides = [1, 1]} : vector<8x384xf32> to vector<8x32xf32>
    %464 = arith.addf %463, %9 : vector<8x32xf32>
    %465 = arith.mulf %453, %464 : vector<8x32xf32>
    %466 = arith.addf %462, %465 : vector<8x32xf32>
    %467 = math.tanh %466 : vector<8x32xf32>
    %cst_134 = arith.constant 1.000000e+00 : f32
    %468 = vector.broadcast %cst_134 : f32 to vector<8x32xf32>
    %469 = arith.subf %468, %461 : vector<8x32xf32>
    %470 = arith.mulf %469, %467 : vector<8x32xf32>
    %471 = arith.mulf %461, %407 : vector<8x32xf32>
    %472 = arith.addf %470, %471 : vector<8x32xf32>
    %c0_135 = arith.constant 0 : index
    %c0_136 = arith.constant 0 : index
    %473 = vector.load %arg6[%c0_135, %c0_136] : memref<32x384xf32, #tpu.memory_space<vmem>>, vector<32x384xf32>
    %cst_137 = arith.constant dense<0.000000e+00> : vector<8x384xf32>
    %474 = tpu.matmul %407, %473, %cst_137 {dimension_numbers = #tpu.dot_dimension_numbers<[1], [0], [0], [1], [0, 0, 1, 1], [], []>} : vector<8x32xf32>, vector<32x384xf32>, vector<8x384xf32> -> vector<8x384xf32>
    %475 = arith.addf %474, %15 : vector<8x384xf32>
    %c0_138 = arith.constant 0 : index
    %c0_139 = arith.constant 0 : index
    %476 = vector.load %arg7[%c0_138, %c0_139] : memref<32x384xf32, #tpu.memory_space<vmem>>, vector<32x384xf32>
    %cst_140 = arith.constant dense<0.000000e+00> : vector<8x384xf32>
    %477 = tpu.matmul %439, %476, %cst_140 {dimension_numbers = #tpu.dot_dimension_numbers<[1], [0], [0], [1], [0, 0, 1, 1], [], []>} : vector<8x32xf32>, vector<32x384xf32>, vector<8x384xf32> -> vector<8x384xf32>
    %478 = vector.extract_strided_slice %475 {offsets = [0, 0], sizes = [8, 32], strides = [1, 1]} : vector<8x384xf32> to vector<8x32xf32>
    %479 = vector.extract_strided_slice %477 {offsets = [0, 0], sizes = [8, 32], strides = [1, 1]} : vector<8x384xf32> to vector<8x32xf32>
    %480 = arith.addf %478, %479 : vector<8x32xf32>
    %481 = arith.negf %480 : vector<8x32xf32>
    %482 = math.exp %481 : vector<8x32xf32>
    %cst_141 = arith.constant 1.000000e+00 : f32
    %483 = vector.broadcast %cst_141 : f32 to vector<8x32xf32>
    %484 = arith.addf %483, %482 : vector<8x32xf32>
    %485 = arith.divf %483, %484 : vector<8x32xf32>
    %486 = vector.extract_strided_slice %475 {offsets = [0, 128], sizes = [8, 32], strides = [1, 1]} : vector<8x384xf32> to vector<8x32xf32>
    %487 = vector.extract_strided_slice %477 {offsets = [0, 128], sizes = [8, 32], strides = [1, 1]} : vector<8x384xf32> to vector<8x32xf32>
    %488 = arith.addf %486, %487 : vector<8x32xf32>
    %489 = arith.negf %488 : vector<8x32xf32>
    %490 = math.exp %489 : vector<8x32xf32>
    %cst_142 = arith.constant 1.000000e+00 : f32
    %491 = vector.broadcast %cst_142 : f32 to vector<8x32xf32>
    %492 = arith.addf %491, %490 : vector<8x32xf32>
    %493 = arith.divf %491, %492 : vector<8x32xf32>
    %494 = vector.extract_strided_slice %475 {offsets = [0, 256], sizes = [8, 32], strides = [1, 1]} : vector<8x384xf32> to vector<8x32xf32>
    %495 = vector.extract_strided_slice %477 {offsets = [0, 256], sizes = [8, 32], strides = [1, 1]} : vector<8x384xf32> to vector<8x32xf32>
    %496 = arith.addf %495, %12 : vector<8x32xf32>
    %497 = arith.mulf %485, %496 : vector<8x32xf32>
    %498 = arith.addf %494, %497 : vector<8x32xf32>
    %499 = math.tanh %498 : vector<8x32xf32>
    %cst_143 = arith.constant 1.000000e+00 : f32
    %500 = vector.broadcast %cst_143 : f32 to vector<8x32xf32>
    %501 = arith.subf %500, %493 : vector<8x32xf32>
    %502 = arith.mulf %501, %499 : vector<8x32xf32>
    %503 = arith.mulf %493, %439 : vector<8x32xf32>
    %504 = arith.addf %502, %503 : vector<8x32xf32>
    %c7_i32_144 = arith.constant 7 : i32
    %c0_145 = arith.constant 0 : index
    %c0_146 = arith.constant 0 : index
    %505 = vector.load %arg6[%c0_145, %c0_146] : memref<32x384xf32, #tpu.memory_space<vmem>>, vector<32x384xf32>
    %cst_147 = arith.constant dense<0.000000e+00> : vector<8x384xf32>
    %506 = tpu.matmul %472, %505, %cst_147 {dimension_numbers = #tpu.dot_dimension_numbers<[1], [0], [0], [1], [0, 0, 1, 1], [], []>} : vector<8x32xf32>, vector<32x384xf32>, vector<8x384xf32> -> vector<8x384xf32>
    %507 = arith.addf %506, %15 : vector<8x384xf32>
    %c0_148 = arith.constant 0 : index
    %c0_149 = arith.constant 0 : index
    %508 = vector.load %arg7[%c0_148, %c0_149] : memref<32x384xf32, #tpu.memory_space<vmem>>, vector<32x384xf32>
    %cst_150 = arith.constant dense<0.000000e+00> : vector<8x384xf32>
    %509 = tpu.matmul %504, %508, %cst_150 {dimension_numbers = #tpu.dot_dimension_numbers<[1], [0], [0], [1], [0, 0, 1, 1], [], []>} : vector<8x32xf32>, vector<32x384xf32>, vector<8x384xf32> -> vector<8x384xf32>
    %510 = vector.extract_strided_slice %507 {offsets = [0, 0], sizes = [8, 32], strides = [1, 1]} : vector<8x384xf32> to vector<8x32xf32>
    %511 = vector.extract_strided_slice %509 {offsets = [0, 0], sizes = [8, 32], strides = [1, 1]} : vector<8x384xf32> to vector<8x32xf32>
    %512 = arith.addf %510, %511 : vector<8x32xf32>
    %513 = arith.negf %512 : vector<8x32xf32>
    %514 = math.exp %513 : vector<8x32xf32>
    %cst_151 = arith.constant 1.000000e+00 : f32
    %515 = vector.broadcast %cst_151 : f32 to vector<8x32xf32>
    %516 = arith.addf %515, %514 : vector<8x32xf32>
    %517 = arith.divf %515, %516 : vector<8x32xf32>
    %518 = vector.extract_strided_slice %507 {offsets = [0, 128], sizes = [8, 32], strides = [1, 1]} : vector<8x384xf32> to vector<8x32xf32>
    %519 = vector.extract_strided_slice %509 {offsets = [0, 128], sizes = [8, 32], strides = [1, 1]} : vector<8x384xf32> to vector<8x32xf32>
    %520 = arith.addf %518, %519 : vector<8x32xf32>
    %521 = arith.negf %520 : vector<8x32xf32>
    %522 = math.exp %521 : vector<8x32xf32>
    %cst_152 = arith.constant 1.000000e+00 : f32
    %523 = vector.broadcast %cst_152 : f32 to vector<8x32xf32>
    %524 = arith.addf %523, %522 : vector<8x32xf32>
    %525 = arith.divf %523, %524 : vector<8x32xf32>
    %526 = vector.extract_strided_slice %507 {offsets = [0, 256], sizes = [8, 32], strides = [1, 1]} : vector<8x384xf32> to vector<8x32xf32>
    %527 = vector.extract_strided_slice %509 {offsets = [0, 256], sizes = [8, 32], strides = [1, 1]} : vector<8x384xf32> to vector<8x32xf32>
    %528 = arith.addf %527, %12 : vector<8x32xf32>
    %529 = arith.mulf %517, %528 : vector<8x32xf32>
    %530 = arith.addf %526, %529 : vector<8x32xf32>
    %531 = math.tanh %530 : vector<8x32xf32>
    %cst_153 = arith.constant 1.000000e+00 : f32
    %532 = vector.broadcast %cst_153 : f32 to vector<8x32xf32>
    %533 = arith.subf %532, %525 : vector<8x32xf32>
    %534 = arith.mulf %533, %531 : vector<8x32xf32>
    %535 = arith.mulf %525, %504 : vector<8x32xf32>
    %536 = arith.addf %534, %535 : vector<8x32xf32>
    %c0_154 = arith.constant 0 : index
    %c0_155 = arith.constant 0 : index
    %c0_156 = arith.constant 0 : index
    %537 = vector.load %arg13[%c0_154, %c0_155, %c0_156] : memref<2x8x32xf32, #tpu.memory_space<vmem>>, vector<1x8x32xf32>
    %538 = vector.shape_cast %537 : vector<1x8x32xf32> to vector<8x32xf32>
    %539 = vector.shape_cast %472 : vector<8x32xf32> to vector<1x8x32xf32>
    tpu.vector_store %arg13[%c0_154, %c0_155, %c0_156], %539 {strides = array<i32>} : memref<2x8x32xf32, #tpu.memory_space<vmem>>, vector<1x8x32xf32>,
    %c1_157 = arith.constant 1 : index
    %c0_158 = arith.constant 0 : index
    %c0_159 = arith.constant 0 : index
    %540 = vector.load %arg13[%c1_157, %c0_158, %c0_159] : memref<2x8x32xf32, #tpu.memory_space<vmem>>, vector<1x8x32xf32>
    %541 = vector.shape_cast %540 : vector<1x8x32xf32> to vector<8x32xf32>
    %542 = vector.shape_cast %536 : vector<8x32xf32> to vector<1x8x32xf32>
    tpu.vector_store %arg13[%c1_157, %c0_158, %c0_159], %542 {strides = array<i32>} : memref<2x8x32xf32, #tpu.memory_space<vmem>>, vector<1x8x32xf32>,
    %cst_160 = arith.constant 0.000000e+00 : f32
    %543 = vector.broadcast %cst_160 : f32 to vector<8x32xf32>
    %544 = arith.maximumf %536, %543 : vector<8x32xf32>
    %c0_161 = arith.constant 0 : index
    %c0_162 = arith.constant 0 : index
    %545 = vector.load %arg10[%c0_161, %c0_162] : memref<32x4xf32, #tpu.memory_space<vmem>>, vector<32x4xf32>
    %cst_163 = arith.constant dense<0.000000e+00> : vector<8x4xf32>
    %546 = tpu.matmul %544, %545, %cst_163 {dimension_numbers = #tpu.dot_dimension_numbers<[1], [0], [0], [1], [0, 0, 1, 1], [], []>} : vector<8x32xf32>, vector<32x4xf32>, vector<8x4xf32> -> vector<8x4xf32>
    %c0_164 = arith.constant 0 : index
    %c0_165 = arith.constant 0 : index
    %547 = vector.load %arg11[%c0_164, %c0_165] : memref<1x4xf32, #tpu.memory_space<vmem>>, vector<1x4xf32>
    %548 = vector.broadcast %547 : vector<1x4xf32> to vector<8x4xf32>
    %549 = arith.addf %546, %548 : vector<8x4xf32>
    %c0_166 = arith.constant 0 : index
    %c0_167 = arith.constant 0 : index
    %550 = vector.load %arg12[%c0_166, %c0_167] : memref<8x4xf32, #tpu.memory_space<vmem>>, vector<8x4xf32>
    tpu.vector_store %arg12[%c0_166, %c0_167], %549 {strides = array<i32>} : memref<8x4xf32, #tpu.memory_space<vmem>>, vector<8x4xf32>,
    return
  }
}

</mosaic_0001>

<llo_original>
// kernel: grunet_forward.1
$region0: #{grunet_forward.1}
  #allocation0 [shape = 'u32[]', space=smem, size = 0x4, offset = 0x4, fixed_abs, tag = 'smem constant byte address 0x4 - core index']
  #allocation1 [shape = 'u32[72,128]{1,0:T(1,128)}', space=vmem, size = 0x9000, scoped, tag = 'internal scratch']
  #allocation2 [shape = 'f32[64,384]{1,0:T(8,128)}', space=vmem, size = 0x18000, scoped, tag = 'scratch operand']
  %s0 = inlined_call_operand.vmem [shape: f32[64,16], index: 0, kind: input, shape index: {}]
  %s1 = inlined_call_operand.vmem [shape: f32[2,8,32], index: 1, kind: input, shape index: {}]
  %s2 = inlined_call_operand.vmem [shape: f32[16,384], index: 2, kind: input, shape index: {}]
  %s3 = inlined_call_operand.vmem [shape: f32[32,384], index: 3, kind: input, shape index: {}]
  %s4 = inlined_call_operand.vmem [shape: f32[1,384], index: 4, kind: input, shape index: {}]
  %s5 = inlined_call_operand.vmem [shape: f32[1,32], index: 5, kind: input, shape index: {}]
  %s6 = inlined_call_operand.vmem [shape: f32[32,384], index: 6, kind: input, shape index: {}]
  %s7 = inlined_call_operand.vmem [shape: f32[32,384], index: 7, kind: input, shape index: {}]
  %s8 = inlined_call_operand.vmem [shape: f32[1,384], index: 8, kind: input, shape index: {}]
  %s9 = inlined_call_operand.vmem [shape: f32[1,32], index: 9, kind: input, shape index: {}]
  %s10 = inlined_call_operand.vmem [shape: f32[32,4], index: 10, kind: input, shape index: {}]
  %s11 = inlined_call_operand.vmem [shape: f32[1,4], index: 11, kind: input, shape index: {}]
  %s12 = inlined_call_operand.vmem [shape: f32[8,4], index: 12, kind: output, shape index: {0}]
  %s13 = inlined_call_operand.hbm [shape: f32[2,8,32], index: 13, kind: output, shape index: {1}]
  %14 = xla_tuple %s12, %s13
  %s15 = sld [smem:[#allocation0]]
  $region66: #{grunet_forward.1} parent=0
    _
  %s17 = ssub.s32 1, %s15
  %s18 = scalar_select 0, %s17, %s15
  $region1: #{grunet_forward.1} parent=0
    #allocation3 [shape = 'u8[8192]{0}', space=vmem, size = 0x2000, scoped, tag = 'output window, operand 1, single buffered']
    #allocation4 [shape = 's32[1]{0}', space=sflag, size = 0x4, scoped, tag = 'scoped memory for grunet_forward.1']
    %19 = vsyncpa [#allocation4], 0
    // Predicated region
    $region2: #{grunet_forward.1} parent=1 // pred_check
      _
    $region3: #{grunet_forward.1} parent=1 // pred_check_branch
      %21 = sbr.rel (0) target = $region5
    $region4: #{grunet_forward.1} parent=1 // pred_region
      _
    $region5: #{grunet_forward.1} parent=1 // pred_fallthru
      _
    // Predicated region
    $region6: #{grunet_forward.1} parent=1 // pred_check
      _
    $region7: #{grunet_forward.1} parent=1 // pred_check_branch
      %23 = sbr.rel (0) target = $region9
    $region8: #{grunet_forward.1} parent=1 // pred_region
      _
    $region9: #{grunet_forward.1} parent=1 // pred_fallthru
      _
    // Predicated region
    $region10: #{grunet_forward.1} parent=1 // pred_check
      _
    $region11: #{grunet_forward.1} parent=1 // pred_check_branch
      %25 = sbr.rel (0) target = $region13
    $region12: #{grunet_forward.1} parent=1 // pred_region
      _
    $region13: #{grunet_forward.1} parent=1 // pred_fallthru
      _
    // Predicated region
    $region14: #{grunet_forward.1} parent=1 // pred_check
      _
    $region15: #{grunet_forward.1} parent=1 // pred_check_branch
      %27 = sbr.rel (0) target = $region17
    $region16: #{grunet_forward.1} parent=1 // pred_region
      _
    $region17: #{grunet_forward.1} parent=1 // pred_fallthru
      _
    // Predicated region
    $region18: #{grunet_forward.1} parent=1 // pred_check
      _
    $region19: #{grunet_forward.1} parent=1 // pred_check_branch
      %29 = sbr.rel (0) target = $region21
    $region20: #{grunet_forward.1} parent=1 // pred_region
      _
    $region21: #{grunet_forward.1} parent=1 // pred_fallthru
      _
    // Predicated region
    $region22: #{grunet_forward.1} parent=1 // pred_check
      _
    $region23: #{grunet_forward.1} parent=1 // pred_check_branch
      %31 = sbr.rel (0) target = $region25
    $region24: #{grunet_forward.1} parent=1 // pred_region
      _
    $region25: #{grunet_forward.1} parent=1 // pred_fallthru
      _
    // Predicated region
    $region26: #{grunet_forward.1} parent=1 // pred_check
      _
    $region27: #{grunet_forward.1} parent=1 // pred_check_branch
      %33 = sbr.rel (0) target = $region29
    $region28: #{grunet_forward.1} parent=1 // pred_region
      _
    $region29: #{grunet_forward.1} parent=1 // pred_fallthru
      _
    // Predicated region
    $region30: #{grunet_forward.1} parent=1 // pred_check
      _
    $region31: #{grunet_forward.1} parent=1 // pred_check_branch
      %35 = sbr.rel (0) target = $region33
    $region32: #{grunet_forward.1} parent=1 // pred_region
      _
    $region33: #{grunet_forward.1} parent=1 // pred_fallthru
      _
    // Predicated region
    $region34: #{grunet_forward.1} parent=1 // pred_check
      _
    $region35: #{grunet_forward.1} parent=1 // pred_check_branch
      %37 = sbr.rel (0) target = $region37
    $region36: #{grunet_forward.1} parent=1 // pred_region
      _
    $region37: #{grunet_forward.1} parent=1 // pred_fallthru
      _
    // Predicated region
    $region38: #{grunet_forward.1} parent=1 // pred_check
      _
    $region39: #{grunet_forward.1} parent=1 // pred_check_branch
      %39 = sbr.rel (0) target = $region41
    $region40: #{grunet_forward.1} parent=1 // pred_region
      _
    $region41: #{grunet_forward.1} parent=1 // pred_fallthru
      _
    // Predicated region
    $region42: #{grunet_forward.1} parent=1 // pred_check
      _
    $region43: #{grunet_forward.1} parent=1 // pred_check_branch
      %41 = sbr.rel (0) target = $region45
    $region44: #{grunet_forward.1} parent=1 // pred_region
      _
    $region45: #{grunet_forward.1} parent=1 // pred_fallthru
      _
    // Predicated region
    $region46: #{grunet_forward.1} parent=1 // pred_check
      _
    $region47: #{grunet_forward.1} parent=1 // pred_check_branch
      %43 = sbr.rel (0) target = $region49
    $region48: #{grunet_forward.1} parent=1 // pred_region
      _
    $region49: #{grunet_forward.1} parent=1 // pred_fallthru
      _
    %v44 = vld [vmem:[%s0] sm:$0xff]
    %v45 = vld [vmem:[%s0 + $0x8] sm:$0xff]
    %v46 = vld [vmem:[%s0 + $0x10] sm:$0xff]
    %v47 = vld [vmem:[%s0 + $0x18] sm:$0xff]
    %v48 = vld [vmem:[%s0 + $0x20] sm:$0xff]
    %v49 = vld [vmem:[%s0 + $0x28] sm:$0xff]
    %v50 = vld [vmem:[%s0 + $0x30] sm:$0xff]
    %v51 = vld [vmem:[%s0 + $0x38] sm:$0xff]
    %v52 = vld [vmem:[%s2] sm:$0xff]
    %v53 = vld [vmem:[%s2 + $0x8] sm:$0xff]
    %v54 = vld [vmem:[%s2 + $0x10] sm:$0xff]
    %v55 = vld [vmem:[%s2 + $0x18] sm:$0xff]
    %v56 = vld [vmem:[%s2 + $0x20] sm:$0xff]
    %v57 = vld [vmem:[%s2 + $0x28] sm:$0xff]
    %v58 = vld [vmem:[%s4] sm:$0x7]
    %v60 = vperm.slane %v58, 0
    %v61 = vperm.slane %v58, 1
    %v62 = vperm.slane %v58, 2
    %vm66 = vcmask 130048
    %v68 = vsel %vm66, %v44, 0
    %v71 = vsel %vm66, %v45, 0
    %v74 = vsel %vm66, %v46, 0
    %v77 = vsel %vm66, %v47, 0
    %v80 = vsel %vm66, %v48, 0
    %v83 = vsel %vm66, %v49, 0
    %v86 = vsel %vm66, %v50, 0
    %v89 = vsel %vm66, %v51, 0
    %91 = vmatpush.msra.mxu0 0.0
    %92 = vmatpush.msra.mxu0 0.0
    %93 = vmatpush.msra.mxu0 0.0
    %94 = vmatpush.msra.mxu0 0.0
    %95 = vmatpush.msra.mxu0 0.0
    %96 = vmatpush.msra.mxu0 0.0
    %97 = vmatpush.msra.mxu0 0.0
    %98 = vmatpush.msra.mxu0 0.0
    %99 = vmatpush.msra.mxu0 0.0
    %100 = vmatpush.msra.mxu0 0.0
    %101 = vmatpush.msra.mxu0 0.0
    %102 = vmatpush.msra.mxu0 0.0
    %103 = vmatpush.msra.mxu0 0.0
    %104 = vmatpush.msra.mxu0 0.0
    %105 = vmatpush.msra.mxu0 %v55
    %106 = vmatpush.msra.mxu0 %v52
    %107 = vmatmul.f32.gmra.mxu0 %v68
    %v108 = vpop.f32.mrf.mxu0
    %v109 = vadd.f32 %v60, %v108
    %110 = vmatmul.f32.gmra.mxu0 %v71
    %v111 = vpop.f32.mrf.mxu0
    %v112 = vadd.f32 %v60, %v111
    %113 = vmatmul.f32.gmra.mxu0 %v74
    %v114 = vpop.f32.mrf.mxu0
    %v115 = vadd.f32 %v60, %v114
    %116 = vmatmul.f32.gmra.mxu0 %v77
    %v117 = vpop.f32.mrf.mxu0
    %v118 = vadd.f32 %v60, %v117
    %119 = vmatmul.f32.gmra.mxu0 %v80
    %v120 = vpop.f32.mrf.mxu0
    %v121 = vadd.f32 %v60, %v120
    %122 = vmatmul.f32.gmra.mxu0 %v83
    %v123 = vpop.f32.mrf.mxu0
    %v124 = vadd.f32 %v60, %v123
    %125 = vmatmul.f32.gmra.mxu0 %v86
    %v126 = vpop.f32.mrf.mxu0
    %v127 = vadd.f32 %v60, %v126
    %128 = vmatmul.f32.gmra.mxu0 %v89
    %v129 = vpop.f32.mrf.mxu0
    %v130 = vadd.f32 %v60, %v129
    %131 = vdwg.mxu0
    %132 = vmatpush.msra.mxu0 0.0
    %133 = vmatpush.msra.mxu0 0.0
    %134 = vmatpush.msra.mxu0 0.0
    %135 = vmatpush.msra.mxu0 0.0
    %136 = vmatpush.msra.mxu0 0.0
    %137 = vmatpush.msra.mxu0 0.0
    %138 = vmatpush.msra.mxu0 0.0
    %139 = vmatpush.msra.mxu0 0.0
    %140 = vmatpush.msra.mxu0 0.0
    %141 = vmatpush.msra.mxu0 0.0
    %142 = vmatpush.msra.mxu0 0.0
    %143 = vmatpush.msra.mxu0 0.0
    %144 = vmatpush.msra.mxu0 0.0
    %145 = vmatpush.msra.mxu0 0.0
    %146 = vmatpush.msra.mxu0 %v56
    %147 = vmatpush.msra.mxu0 %v53
    %148 = vmatmul.f32.gmra.mxu0 %v68
    %v149 = vpop.f32.mrf.mxu0
    %v150 = vadd.f32 %v61, %v149
    %151 = vmatmul.f32.gmra.mxu0 %v71
    %v152 = vpop.f32.mrf.mxu0
    %v153 = vadd.f32 %v61, %v152
    %154 = vmatmul.f32.gmra.mxu0 %v74
    %v155 = vpop.f32.mrf.mxu0
    %v156 = vadd.f32 %v61, %v155
    %157 = vmatmul.f32.gmra.mxu0 %v77
    %v158 = vpop.f32.mrf.mxu0
    %v159 = vadd.f32 %v61, %v158
    %160 = vmatmul.f32.gmra.mxu0 %v80
    %v161 = vpop.f32.mrf.mxu0
    %v162 = vadd.f32 %v61, %v161
    %163 = vmatmul.f32.gmra.mxu0 %v83
    %v164 = vpop.f32.mrf.mxu0
    %v165 = vadd.f32 %v61, %v164
    %166 = vmatmul.f32.gmra.mxu0 %v86
    %v167 = vpop.f32.mrf.mxu0
    %v168 = vadd.f32 %v61, %v167
    %169 = vmatmul.f32.gmra.mxu0 %v89
    %v170 = vpop.f32.mrf.mxu0
    %v171 = vadd.f32 %v61, %v170
    %172 = vdwg.mxu0
    %173 = vmatpush.msra.mxu0 0.0
    %174 = vmatpush.msra.mxu0 0.0
    %175 = vmatpush.msra.mxu0 0.0
    %176 = vmatpush.msra.mxu0 0.0
    %177 = vmatpush.msra.mxu0 0.0
    %178 = vmatpush.msra.mxu0 0.0
    %179 = vmatpush.msra.mxu0 0.0
    %180 = vmatpush.msra.mxu0 0.0
    %181 = vmatpush.msra.mxu0 0.0
    %182 = vmatpush.msra.mxu0 0.0
    %183 = vmatpush.msra.mxu0 0.0
    %184 = vmatpush.msra.mxu0 0.0
    %185 = vmatpush.msra.mxu0 0.0
    %186 = vmatpush.msra.mxu0 0.0
    %187 = vmatpush.msra.mxu0 %v57
    %188 = vmatpush.msra.mxu0 %v54
    %189 = vmatmul.f32.gmra.mxu0 %v68
    %v190 = vpop.f32.mrf.mxu0
    %v191 = vadd.f32 %v62, %v190
    %192 = vmatmul.f32.gmra.mxu0 %v71
    %v193 = vpop.f32.mrf.mxu0
    %v194 = vadd.f32 %v62, %v193
    %195 = vmatmul.f32.gmra.mxu0 %v74
    %v196 = vpop.f32.mrf.mxu0
    %v197 = vadd.f32 %v62, %v196
    %198 = vmatmul.f32.gmra.mxu0 %v77
    %v199 = vpop.f32.mrf.mxu0
    %v200 = vadd.f32 %v62, %v199
    %201 = vmatmul.f32.gmra.mxu0 %v80
    %v202 = vpop.f32.mrf.mxu0
    %v203 = vadd.f32 %v62, %v202
    %204 = vmatmul.f32.gmra.mxu0 %v83
    %v205 = vpop.f32.mrf.mxu0
    %v206 = vadd.f32 %v62, %v205
    %207 = vmatmul.f32.gmra.mxu0 %v86
    %v208 = vpop.f32.mrf.mxu0
    %v209 = vadd.f32 %v62, %v208
    %210 = vmatmul.f32.gmra.mxu0 %v89
    %v211 = vpop.f32.mrf.mxu0
    %v212 = vadd.f32 %v62, %v211
    %213 = vdwg.mxu0
    %214 = vst [vmem:[#allocation2] sm:$0xff] %v109
    %215 = vst [vmem:[#allocation2 + $0x8] sm:$0xff] %v150
    %216 = vst [vmem:[#allocation2 + $0x10] sm:$0xff] %v191
    %217 = vst [vmem:[#allocation2 + $0x18] sm:$0xff] %v112
    %218 = vst [vmem:[#allocation2 + $0x20] sm:$0xff] %v153
    %219 = vst [vmem:[#allocation2 + $0x28] sm:$0xff] %v194
    %220 = vst [vmem:[#allocation2 + $0x30] sm:$0xff] %v115
    %221 = vst [vmem:[#allocation2 + $0x38] sm:$0xff] %v156
    %222 = vst [vmem:[#allocation2 + $0x40] sm:$0xff] %v197
    %223 = vst [vmem:[#allocation2 + $0x48] sm:$0xff] %v118
    %224 = vst [vmem:[#allocation2 + $0x50] sm:$0xff] %v159
    %225 = vst [vmem:[#allocation2 + $0x58] sm:$0xff] %v200
    %226 = vst [vmem:[#allocation2 + $0x60] sm:$0xff] %v121
    %227 = vst [vmem:[#allocation2 + $0x68] sm:$0xff] %v162
    %228 = vst [vmem:[#allocation2 + $0x70] sm:$0xff] %v203
    %229 = vst [vmem:[#allocation2 + $0x78] sm:$0xff] %v124
    %230 = vst [vmem:[#allocation2 + $0x80] sm:$0xff] %v165
    %231 = vst [vmem:[#allocation2 + $0x88] sm:$0xff] %v206
    %232 = vst [vmem:[#allocation2 + $0x90] sm:$0xff] %v127
    %233 = vst [vmem:[#allocation2 + $0x98] sm:$0xff] %v168
    %234 = vst [vmem:[#allocation2 + $0xa0] sm:$0xff] %v209
    %235 = vst [vmem:[#allocation2 + $0xa8] sm:$0xff] %v130
    %236 = vst [vmem:[#allocation2 + $0xb0] sm:$0xff] %v171
    %237 = vst [vmem:[#allocation2 + $0xb8] sm:$0xff] %v212
    %v238 = vld [vmem:[%s5] sm:$0x1]
    %v240 = vperm.slane %v238, 0
    %v242 = vld [vmem:[%s9] sm:$0x1]
    %v244 = vperm.slane %v242, 0
    %v246 = vld [vmem:[%s8] sm:$0x7]
    %v248 = vperm.slane %v246, 0
    %v249 = vperm.slane %v246, 1
    %v250 = vperm.slane %v246, 2
    %v254 = vld [vmem:[%s1] sm:$0xff]
    %s255 = scalar_lea.vmem %s1, 8
    %v256 = vld [vmem:[%s255] sm:$0xff]
    %v257 = vld [vmem:[#allocation2] sm:$0xff]
    %v258 = vld [vmem:[#allocation2 + $0x8] sm:$0xff]
    %v259 = vld [vmem:[#allocation2 + $0x10] sm:$0xff]
    %v260 = vld [vmem:[%s3] sm:$0xff]
    %v261 = vld [vmem:[%s3 + $0x8] sm:$0xff]
    %v262 = vld [vmem:[%s3 + $0x10] sm:$0xff]
    %v263 = vld [vmem:[%s3 + $0x18] sm:$0xff]
    %v264 = vld [vmem:[%s3 + $0x20] sm:$0xff]
    %v265 = vld [vmem:[%s3 + $0x28] sm:$0xff]
    %v266 = vld [vmem:[%s3 + $0x30] sm:$0xff]
    %v267 = vld [vmem:[%s3 + $0x38] sm:$0xff]
    %v268 = vld [vmem:[%s3 + $0x40] sm:$0xff]
    %v269 = vld [vmem:[%s3 + $0x48] sm:$0xff]
    %v270 = vld [vmem:[%s3 + $0x50] sm:$0xff]
    %v271 = vld [vmem:[%s3 + $0x58] sm:$0xff]
    %vm272 = vcmask 261120
    %v274 = vsel %vm272, %v254, 0
    %276 = vmatpush.msra.mxu0 0.0
    %277 = vmatpush.msra.mxu0 0.0
    %278 = vmatpush.msra.mxu0 0.0
    %279 = vmatpush.msra.mxu0 0.0
    %280 = vmatpush.msra.mxu0 0.0
    %281 = vmatpush.msra.mxu0 0.0
    %282 = vmatpush.msra.mxu0 0.0
    %283 = vmatpush.msra.mxu0 0.0
    %284 = vmatpush.msra.mxu0 0.0
    %285 = vmatpush.msra.mxu0 0.0
    %286 = vmatpush.msra.mxu0 0.0
    %287 = vmatpush.msra.mxu0 0.0
    %288 = vmatpush.msra.mxu0 %v269
    %289 = vmatpush.msra.mxu0 %v266
    %290 = vmatpush.msra.mxu0 %v263
    %291 = vmatpush.msra.mxu0 %v260
    %292 = vmatmul.f32.gmra.mxu0 %v274
    %v293 = vpop.f32.mrf.mxu0
    %v294 = vadd.f32 0.0, %v293
    %295 = vdwg.mxu0
    %296 = vmatpush.msra.mxu0 0.0
    %297 = vmatpush.msra.mxu0 0.0
    %298 = vmatpush.msra.mxu0 0.0
    %299 = vmatpush.msra.mxu0 0.0
    %300 = vmatpush.msra.mxu0 0.0
    %301 = vmatpush.msra.mxu0 0.0
    %302 = vmatpush.msra.mxu0 0.0
    %303 = vmatpush.msra.mxu0 0.0
    %304 = vmatpush.msra.mxu0 0.0
    %305 = vmatpush.msra.mxu0 0.0
    %306 = vmatpush.msra.mxu0 0.0
    %307 = vmatpush.msra.mxu0 0.0
    %308 = vmatpush.msra.mxu0 %v270
    %309 = vmatpush.msra.mxu0 %v267
    %310 = vmatpush.msra.mxu0 %v264
    %311 = vmatpush.msra.mxu0 %v261
    %312 = vmatmul.f32.gmra.mxu0 %v274
    %v313 = vpop.f32.mrf.mxu0
    %v314 = vadd.f32 0.0, %v313
    %315 = vdwg.mxu0
    %316 = vmatpush.msra.mxu0 0.0
    %317 = vmatpush.msra.mxu0 0.0
    %318 = vmatpush.msra.mxu0 0.0
    %319 = vmatpush.msra.mxu0 0.0
    %320 = vmatpush.msra.mxu0 0.0
    %321 = vmatpush.msra.mxu0 0.0
    %322 = vmatpush.msra.mxu0 0.0
    %323 = vmatpush.msra.mxu0 0.0
    %324 = vmatpush.msra.mxu0 0.0
    %325 = vmatpush.msra.mxu0 0.0
    %326 = vmatpush.msra.mxu0 0.0
    %327 = vmatpush.msra.mxu0 0.0
    %328 = vmatpush.msra.mxu0 %v271
    %329 = vmatpush.msra.mxu0 %v268
    %330 = vmatpush.msra.mxu0 %v265
    %331 = vmatpush.msra.mxu0 %v262
    %332 = vmatmul.f32.gmra.mxu0 %v274
    %v333 = vpop.f32.mrf.mxu0
    %v334 = vadd.f32 0.0, %v333
    %335 = vdwg.mxu0
    %v336 = vadd.f32 %v257, %v294
    %v337 = vxor.u32 %v336, 2147483648
    %v338 = vmul.f32 %v337, 1.442695
    %v339 = vpow.pop %v338
    %v340 = vadd.f32 %v339, 1.0
    %v341 = vrcp.pop %v340
    %v342 = vmul.f32 %v340, %v341
    %v343 = vsub.f32 1.0, %v342
    %v344 = vmul.f32 %v341, %v343
    %v345 = vadd.f32 %v341, %v344
    %vm346 = vweird.f32 %v340
    %vm347 = vweird.f32 %v341
    %vm348 = vmor %vm346, %vm347
    %v349 = vsel %vm348, %v341, %v345
    %v350 = vand.u32 2147483647, %v340
    %vm351 = vcmp.eq.f32.partialorder %v350, 8.507059e+37
    %v352 = vand.u32 %v340, 2147483648
    %v353 = vor.u32 1.1754944e-38, %v352
    %v354 = vsel %vm351, %v353, %v349
    %v355 = vmul.f32 1.0, %v354
    %v356 = vadd.f32 %v258, %v314
    %v357 = vxor.u32 %v356, 2147483648
    %v358 = vmul.f32 %v357, 1.442695
    %v359 = vpow.pop %v358
    %v360 = vadd.f32 %v359, 1.0
    %v361 = vrcp.pop %v360
    %v362 = vmul.f32 %v360, %v361
    %v363 = vsub.f32 1.0, %v362
    %v364 = vmul.f32 %v361, %v363
    %v365 = vadd.f32 %v361, %v364
    %vm366 = vweird.f32 %v360
    %vm367 = vweird.f32 %v361
    %vm368 = vmor %vm366, %vm367
    %v369 = vsel %vm368, %v361, %v365
    %v370 = vand.u32 2147483647, %v360
    %vm371 = vcmp.eq.f32.partialorder %v370, 8.507059e+37
    %v372 = vand.u32 %v360, 2147483648
    %v373 = vor.u32 1.1754944e-38, %v372
    %v374 = vsel %vm371, %v373, %v369
    %v375 = vmul.f32 1.0, %v374
    %v376 = vadd.f32 %v334, %v240
    %v377 = vmul.f32 %v355, %v376
    %v378 = vadd.f32 %v259, %v377
    %v379 = vtanh.pop %v378
    %v380 = vsub.f32 1.0, %v375
    %v381 = vmul.f32 %v380, %v379
    %v382 = vmul.f32 %v375, %v254
    %v383 = vadd.f32 %v381, %v382
    %s384 = smul.u32 1, 3
    %s385 = smul.addr %s384, 8
    %s386 = scalar_lea.vmem [#allocation2], %s385
    %v387 = vld [vmem:[%s386] sm:$0xff]
    %v388 = vld [vmem:[%s386 + $0x8] sm:$0xff]
    %v389 = vld [vmem:[%s386 + $0x10] sm:$0xff]
    %v391 = vsel %vm272, %v383, 0
    %393 = vmatpush.msra.mxu0 0.0
    %394 = vmatpush.msra.mxu0 0.0
    %395 = vmatpush.msra.mxu0 0.0
    %396 = vmatpush.msra.mxu0 0.0
    %397 = vmatpush.msra.mxu0 0.0
    %398 = vmatpush.msra.mxu0 0.0
    %399 = vmatpush.msra.mxu0 0.0
    %400 = vmatpush.msra.mxu0 0.0
    %401 = vmatpush.msra.mxu0 0.0
    %402 = vmatpush.msra.mxu0 0.0
    %403 = vmatpush.msra.mxu0 0.0
    %404 = vmatpush.msra.mxu0 0.0
    %405 = vmatpush.msra.mxu0 %v269
    %406 = vmatpush.msra.mxu0 %v266
    %407 = vmatpush.msra.mxu0 %v263
    %408 = vmatpush.msra.mxu0 %v260
    %409 = vmatmul.f32.gmra.mxu0 %v391
    %v410 = vpop.f32.mrf.mxu0
    %v411 = vadd.f32 0.0, %v410
    %412 = vdwg.mxu0
    %413 = vmatpush.msra.mxu0 0.0
    %414 = vmatpush.msra.mxu0 0.0
    %415 = vmatpush.msra.mxu0 0.0
    %416 = vmatpush.msra.mxu0 0.0
    %417 = vmatpush.msra.mxu0 0.0
    %418 = vmatpush.msra.mxu0 0.0
    %419 = vmatpush.msra.mxu0 0.0
    %420 = vmatpush.msra.mxu0 0.0
    %421 = vmatpush.msra.mxu0 0.0
    %422 = vmatpush.msra.mxu0 0.0
    %423 = vmatpush.msra.mxu0 0.0
    %424 = vmatpush.msra.mxu0 0.0
    %425 = vmatpush.msra.mxu0 %v270
    %426 = vmatpush.msra.mxu0 %v267
    %427 = vmatpush.msra.mxu0 %v264
    %428 = vmatpush.msra.mxu0 %v261
    %429 = vmatmul.f32.gmra.mxu0 %v391
    %v430 = vpop.f32.mrf.mxu0
    %v431 = vadd.f32 0.0, %v430
    %432 = vdwg.mxu0
    %433 = vmatpush.msra.mxu0 0.0
    %434 = vmatpush.msra.mxu0 0.0
    %435 = vmatpush.msra.mxu0 0.0
    %436 = vmatpush.msra.mxu0 0.0
    %437 = vmatpush.msra.mxu0 0.0
    %438 = vmatpush.msra.mxu0 0.0
    %439 = vmatpush.msra.mxu0 0.0
    %440 = vmatpush.msra.mxu0 0.0
    %441 = vmatpush.msra.mxu0 0.0
    %442 = vmatpush.msra.mxu0 0.0
    %443 = vmatpush.msra.mxu0 0.0
    %444 = vmatpush.msra.mxu0 0.0
    %445 = vmatpush.msra.mxu0 %v271
    %446 = vmatpush.msra.mxu0 %v268
    %447 = vmatpush.msra.mxu0 %v265
    %448 = vmatpush.msra.mxu0 %v262
    %449 = vmatmul.f32.gmra.mxu0 %v391
    %v450 = vpop.f32.mrf.mxu0
    %v451 = vadd.f32 0.0, %v450
    %452 = vdwg.mxu0
    %v453 = vadd.f32 %v387, %v411
    %v454 = vxor.u32 %v453, 2147483648
    %v455 = vmul.f32 %v454, 1.442695
    %v456 = vpow.pop %v455
    %v457 = vadd.f32 %v456, 1.0
    %v458 = vrcp.pop %v457
    %v459 = vmul.f32 %v457, %v458
    %v460 = vsub.f32 1.0, %v459
    %v461 = vmul.f32 %v458, %v460
    %v462 = vadd.f32 %v458, %v461
    %vm463 = vweird.f32 %v457
    %vm464 = vweird.f32 %v458
    %vm465 = vmor %vm463, %vm464
    %v466 = vsel %vm465, %v458, %v462
    %v467 = vand.u32 2147483647, %v457
    %vm468 = vcmp.eq.f32.partialorder %v467, 8.507059e+37
    %v469 = vand.u32 %v457, 2147483648
    %v470 = vor.u32 1.1754944e-38, %v469
    %v471 = vsel %vm468, %v470, %v466
    %v472 = vmul.f32 1.0, %v471
    %v473 = vadd.f32 %v388, %v431
    %v474 = vxor.u32 %v473, 2147483648
    %v475 = vmul.f32 %v474, 1.442695
    %v476 = vpow.pop %v475
    %v477 = vadd.f32 %v476, 1.0
    %v478 = vrcp.pop %v477
    %v479 = vmul.f32 %v477, %v478
    %v480 = vsub.f32 1.0, %v479
    %v481 = vmul.f32 %v478, %v480
    %v482 = vadd.f32 %v478, %v481
    %vm483 = vweird.f32 %v477
    %vm484 = vweird.f32 %v478
    %vm485 = vmor %vm483, %vm484
    %v486 = vsel %vm485, %v478, %v482
    %v487 = vand.u32 2147483647, %v477
    %vm488 = vcmp.eq.f32.partialorder %v487, 8.507059e+37
    %v489 = vand.u32 %v477, 2147483648
    %v490 = vor.u32 1.1754944e-38, %v489
    %v491 = vsel %vm488, %v490, %v486
    %v492 = vmul.f32 1.0, %v491
    %v493 = vadd.f32 %v451, %v240
    %v494 = vmul.f32 %v472, %v493
    %v495 = vadd.f32 %v389, %v494
    %v496 = vtanh.pop %v495
    %v497 = vsub.f32 1.0, %v492
    %v498 = vmul.f32 %v497, %v496
    %v499 = vmul.f32 %v492, %v383
    %v500 = vadd.f32 %v498, %v499
    %v501 = vld [vmem:[%s6] sm:$0xff]
    %v502 = vld [vmem:[%s6 + $0x8] sm:$0xff]
    %v503 = vld [vmem:[%s6 + $0x10] sm:$0xff]
    %v504 = vld [vmem:[%s6 + $0x18] sm:$0xff]
    %v505 = vld [vmem:[%s6 + $0x20] sm:$0xff]
    %v506 = vld [vmem:[%s6 + $0x28] sm:$0xff]
    %v507 = vld [vmem:[%s6 + $0x30] sm:$0xff]
    %v508 = vld [vmem:[%s6 + $0x38] sm:$0xff]
    %v509 = vld [vmem:[%s6 + $0x40] sm:$0xff]
    %v510 = vld [vmem:[%s6 + $0x48] sm:$0xff]
    %v511 = vld [vmem:[%s6 + $0x50] sm:$0xff]
    %v512 = vld [vmem:[%s6 + $0x58] sm:$0xff]
    %513 = vmatpush.msra.mxu0 0.0
    %514 = vmatpush.msra.mxu0 0.0
    %515 = vmatpush.msra.mxu0 0.0
    %516 = vmatpush.msra.mxu0 0.0
    %517 = vmatpush.msra.mxu0 0.0
    %518 = vmatpush.msra.mxu0 0.0
    %519 = vmatpush.msra.mxu0 0.0
    %520 = vmatpush.msra.mxu0 0.0
    %521 = vmatpush.msra.mxu0 0.0
    %522 = vmatpush.msra.mxu0 0.0
    %523 = vmatpush.msra.mxu0 0.0
    %524 = vmatpush.msra.mxu0 0.0
    %525 = vmatpush.msra.mxu0 %v510
    %526 = vmatpush.msra.mxu0 %v507
    %527 = vmatpush.msra.mxu0 %v504
    %528 = vmatpush.msra.mxu0 %v501
    %529 = vmatmul.f32.gmra.mxu0 %v391
    %v530 = vpop.f32.mrf.mxu0
    %v531 = vadd.f32 %v248, %v530
    %532 = vdwg.mxu0
    %533 = vmatpush.msra.mxu0 0.0
    %534 = vmatpush.msra.mxu0 0.0
    %535 = vmatpush.msra.mxu0 0.0
    %536 = vmatpush.msra.mxu0 0.0
    %537 = vmatpush.msra.mxu0 0.0
    %538 = vmatpush.msra.mxu0 0.0
    %539 = vmatpush.msra.mxu0 0.0
    %540 = vmatpush.msra.mxu0 0.0
    %541 = vmatpush.msra.mxu0 0.0
    %542 = vmatpush.msra.mxu0 0.0
    %543 = vmatpush.msra.mxu0 0.0
    %544 = vmatpush.msra.mxu0 0.0
    %545 = vmatpush.msra.mxu0 %v511
    %546 = vmatpush.msra.mxu0 %v508
    %547 = vmatpush.msra.mxu0 %v505
    %548 = vmatpush.msra.mxu0 %v502
    %549 = vmatmul.f32.gmra.mxu0 %v391
    %v550 = vpop.f32.mrf.mxu0
    %v551 = vadd.f32 %v249, %v550
    %552 = vdwg.mxu0
    %553 = vmatpush.msra.mxu0 0.0
    %554 = vmatpush.msra.mxu0 0.0
    %555 = vmatpush.msra.mxu0 0.0
    %556 = vmatpush.msra.mxu0 0.0
    %557 = vmatpush.msra.mxu0 0.0
    %558 = vmatpush.msra.mxu0 0.0
    %559 = vmatpush.msra.mxu0 0.0
    %560 = vmatpush.msra.mxu0 0.0
    %561 = vmatpush.msra.mxu0 0.0
    %562 = vmatpush.msra.mxu0 0.0
    %563 = vmatpush.msra.mxu0 0.0
    %564 = vmatpush.msra.mxu0 0.0
    %565 = vmatpush.msra.mxu0 %v512
    %566 = vmatpush.msra.mxu0 %v509
    %567 = vmatpush.msra.mxu0 %v506
    %568 = vmatpush.msra.mxu0 %v503
    %569 = vmatmul.f32.gmra.mxu0 %v391
    %v570 = vpop.f32.mrf.mxu0
    %v571 = vadd.f32 %v250, %v570
    %572 = vdwg.mxu0
    %v573 = vld [vmem:[%s7] sm:$0xff]
    %v574 = vld [vmem:[%s7 + $0x8] sm:$0xff]
    %v575 = vld [vmem:[%s7 + $0x10] sm:$0xff]
    %v576 = vld [vmem:[%s7 + $0x18] sm:$0xff]
    %v577 = vld [vmem:[%s7 + $0x20] sm:$0xff]
    %v578 = vld [vmem:[%s7 + $0x28] sm:$0xff]
    %v579 = vld [vmem:[%s7 + $0x30] sm:$0xff]
    %v580 = vld [vmem:[%s7 + $0x38] sm:$0xff]
    %v581 = vld [vmem:[%s7 + $0x40] sm:$0xff]
    %v582 = vld [vmem:[%s7 + $0x48] sm:$0xff]
    %v583 = vld [vmem:[%s7 + $0x50] sm:$0xff]
    %v584 = vld [vmem:[%s7 + $0x58] sm:$0xff]
    %v586 = vsel %vm272, %v256, 0
    %588 = vmatpush.msra.mxu0 0.0
    %589 = vmatpush.msra.mxu0 0.0
    %590 = vmatpush.msra.mxu0 0.0
    %591 = vmatpush.msra.mxu0 0.0
    %592 = vmatpush.msra.mxu0 0.0
    %593 = vmatpush.msra.mxu0 0.0
    %594 = vmatpush.msra.mxu0 0.0
    %595 = vmatpush.msra.mxu0 0.0
    %596 = vmatpush.msra.mxu0 0.0
    %597 = vmatpush.msra.mxu0 0.0
    %598 = vmatpush.msra.mxu0 0.0
    %599 = vmatpush.msra.mxu0 0.0
    %600 = vmatpush.msra.mxu0 %v582
    %601 = vmatpush.msra.mxu0 %v579
    %602 = vmatpush.msra.mxu0 %v576
    %603 = vmatpush.msra.mxu0 %v573
    %604 = vmatmul.f32.gmra.mxu0 %v586
    %v605 = vpop.f32.mrf.mxu0
    %v606 = vadd.f32 0.0, %v605
    %607 = vdwg.mxu0
    %608 = vmatpush.msra.mxu0 0.0
    %609 = vmatpush.msra.mxu0 0.0
    %610 = vmatpush.msra.mxu0 0.0
    %611 = vmatpush.msra.mxu0 0.0
    %612 = vmatpush.msra.mxu0 0.0
    %613 = vmatpush.msra.mxu0 0.0
    %614 = vmatpush.msra.mxu0 0.0
    %615 = vmatpush.msra.mxu0 0.0
    %616 = vmatpush.msra.mxu0 0.0
    %617 = vmatpush.msra.mxu0 0.0
    %618 = vmatpush.msra.mxu0 0.0
    %619 = vmatpush.msra.mxu0 0.0
    %620 = vmatpush.msra.mxu0 %v583
    %621 = vmatpush.msra.mxu0 %v580
    %622 = vmatpush.msra.mxu0 %v577
    %623 = vmatpush.msra.mxu0 %v574
    %624 = vmatmul.f32.gmra.mxu0 %v586
    %v625 = vpop.f32.mrf.mxu0
    %v626 = vadd.f32 0.0, %v625
    %627 = vdwg.mxu0
    %628 = vmatpush.msra.mxu0 0.0
    %629 = vmatpush.msra.mxu0 0.0
    %630 = vmatpush.msra.mxu0 0.0
    %631 = vmatpush.msra.mxu0 0.0
    %632 = vmatpush.msra.mxu0 0.0
    %633 = vmatpush.msra.mxu0 0.0
    %634 = vmatpush.msra.mxu0 0.0
    %635 = vmatpush.msra.mxu0 0.0
    %636 = vmatpush.msra.mxu0 0.0
    %637 = vmatpush.msra.mxu0 0.0
    %638 = vmatpush.msra.mxu0 0.0
    %639 = vmatpush.msra.mxu0 0.0
    %640 = vmatpush.msra.mxu0 %v584
    %641 = vmatpush.msra.mxu0 %v581
    %642 = vmatpush.msra.mxu0 %v578
    %643 = vmatpush.msra.mxu0 %v575
    %644 = vmatmul.f32.gmra.mxu0 %v586
    %v645 = vpop.f32.mrf.mxu0
    %v646 = vadd.f32 0.0, %v645
    %647 = vdwg.mxu0
    %v648 = vadd.f32 %v531, %v606
    %v649 = vxor.u32 %v648, 2147483648
    %v650 = vmul.f32 %v649, 1.442695
    %v651 = vpow.pop %v650
    %v652 = vadd.f32 %v651, 1.0
    %v653 = vrcp.pop %v652
    %v654 = vmul.f32 %v652, %v653
    %v655 = vsub.f32 1.0, %v654
    %v656 = vmul.f32 %v653, %v655
    %v657 = vadd.f32 %v653, %v656
    %vm658 = vweird.f32 %v652
    %vm659 = vweird.f32 %v653
    %vm660 = vmor %vm658, %vm659
    %v661 = vsel %vm660, %v653, %v657
    %v662 = vand.u32 2147483647, %v652
    %vm663 = vcmp.eq.f32.partialorder %v662, 8.507059e+37
    %v664 = vand.u32 %v652, 2147483648
    %v665 = vor.u32 1.1754944e-38, %v664
    %v666 = vsel %vm663, %v665, %v661
    %v667 = vmul.f32 1.0, %v666
    %v668 = vadd.f32 %v551, %v626
    %v669 = vxor.u32 %v668, 2147483648
    %v670 = vmul.f32 %v669, 1.442695
    %v671 = vpow.pop %v670
    %v672 = vadd.f32 %v671, 1.0
    %v673 = vrcp.pop %v672
    %v674 = vmul.f32 %v672, %v673
    %v675 = vsub.f32 1.0, %v674
    %v676 = vmul.f32 %v673, %v675
    %v677 = vadd.f32 %v673, %v676
    %vm678 = vweird.f32 %v672
    %vm679 = vweird.f32 %v673
    %vm680 = vmor %vm678, %vm679
    %v681 = vsel %vm680, %v673, %v677
    %v682 = vand.u32 2147483647, %v672
    %vm683 = vcmp.eq.f32.partialorder %v682, 8.507059e+37
    %v684 = vand.u32 %v672, 2147483648
    %v685 = vor.u32 1.1754944e-38, %v684
    %v686 = vsel %vm683, %v685, %v681
    %v687 = vmul.f32 1.0, %v686
    %v688 = vadd.f32 %v646, %v244
    %v689 = vmul.f32 %v667, %v688
    %v690 = vadd.f32 %v571, %v689
    %v691 = vtanh.pop %v690
    %v692 = vsub.f32 1.0, %v687
    %v693 = vmul.f32 %v692, %v691
    %v694 = vmul.f32 %v687, %v256
    %v695 = vadd.f32 %v693, %v694
    %s696 = smul.u32 2, 3
    %s697 = smul.addr %s696, 8
    %s698 = scalar_lea.vmem [#allocation2], %s697
    %v699 = vld [vmem:[%s698] sm:$0xff]
    %v700 = vld [vmem:[%s698 + $0x8] sm:$0xff]
    %v701 = vld [vmem:[%s698 + $0x10] sm:$0xff]
    %v703 = vsel %vm272, %v500, 0
    %705 = vmatpush.msra.mxu0 0.0
    %706 = vmatpush.msra.mxu0 0.0
    %707 = vmatpush.msra.mxu0 0.0
    %708 = vmatpush.msra.mxu0 0.0
    %709 = vmatpush.msra.mxu0 0.0
    %710 = vmatpush.msra.mxu0 0.0
    %711 = vmatpush.msra.mxu0 0.0
    %712 = vmatpush.msra.mxu0 0.0
    %713 = vmatpush.msra.mxu0 0.0
    %714 = vmatpush.msra.mxu0 0.0
    %715 = vmatpush.msra.mxu0 0.0
    %716 = vmatpush.msra.mxu0 0.0
    %717 = vmatpush.msra.mxu0 %v269
    %718 = vmatpush.msra.mxu0 %v266
    %719 = vmatpush.msra.mxu0 %v263
    %720 = vmatpush.msra.mxu0 %v260
    %721 = vmatmul.f32.gmra.mxu0 %v703
    %v722 = vpop.f32.mrf.mxu0
    %v723 = vadd.f32 0.0, %v722
    %724 = vdwg.mxu0
    %725 = vmatpush.msra.mxu0 0.0
    %726 = vmatpush.msra.mxu0 0.0
    %727 = vmatpush.msra.mxu0 0.0
    %728 = vmatpush.msra.mxu0 0.0
    %729 = vmatpush.msra.mxu0 0.0
    %730 = vmatpush.msra.mxu0 0.0
    %731 = vmatpush.msra.mxu0 0.0
    %732 = vmatpush.msra.mxu0 0.0
    %733 = vmatpush.msra.mxu0 0.0
    %734 = vmatpush.msra.mxu0 0.0
    %735 = vmatpush.msra.mxu0 0.0
    %736 = vmatpush.msra.mxu0 0.0
    %737 = vmatpush.msra.mxu0 %v270
    %738 = vmatpush.msra.mxu0 %v267
    %739 = vmatpush.msra.mxu0 %v264
    %740 = vmatpush.msra.mxu0 %v261
    %741 = vmatmul.f32.gmra.mxu0 %v703
    %v742 = vpop.f32.mrf.mxu0
    %v743 = vadd.f32 0.0, %v742
    %744 = vdwg.mxu0
    %745 = vmatpush.msra.mxu0 0.0
    %746 = vmatpush.msra.mxu0 0.0
    %747 = vmatpush.msra.mxu0 0.0
    %748 = vmatpush.msra.mxu0 0.0
    %749 = vmatpush.msra.mxu0 0.0
    %750 = vmatpush.msra.mxu0 0.0
    %751 = vmatpush.msra.mxu0 0.0
    %752 = vmatpush.msra.mxu0 0.0
    %753 = vmatpush.msra.mxu0 0.0
    %754 = vmatpush.msra.mxu0 0.0
    %755 = vmatpush.msra.mxu0 0.0
    %756 = vmatpush.msra.mxu0 0.0
    %757 = vmatpush.msra.mxu0 %v271
    %758 = vmatpush.msra.mxu0 %v268
    %759 = vmatpush.msra.mxu0 %v265
    %760 = vmatpush.msra.mxu0 %v262
    %761 = vmatmul.f32.gmra.mxu0 %v703
    %v762 = vpop.f32.mrf.mxu0
    %v763 = vadd.f32 0.0, %v762
    %764 = vdwg.mxu0
    %v765 = vadd.f32 %v699, %v723
    %v766 = vxor.u32 %v765, 2147483648
    %v767 = vmul.f32 %v766, 1.442695
    %v768 = vpow.pop %v767
    %v769 = vadd.f32 %v768, 1.0
    %v770 = vrcp.pop %v769
    %v771 = vmul.f32 %v769, %v770
    %v772 = vsub.f32 1.0, %v771
    %v773 = vmul.f32 %v770, %v772
    %v774 = vadd.f32 %v770, %v773
    %vm775 = vweird.f32 %v769
    %vm776 = vweird.f32 %v770
    %vm777 = vmor %vm775, %vm776
    %v778 = vsel %vm777, %v770, %v774
    %v779 = vand.u32 2147483647, %v769
    %vm780 = vcmp.eq.f32.partialorder %v779, 8.507059e+37
    %v781 = vand.u32 %v769, 2147483648
    %v782 = vor.u32 1.1754944e-38, %v781
    %v783 = vsel %vm780, %v782, %v778
    %v784 = vmul.f32 1.0, %v783
    %v785 = vadd.f32 %v700, %v743
    %v786 = vxor.u32 %v785, 2147483648
    %v787 = vmul.f32 %v786, 1.442695
    %v788 = vpow.pop %v787
    %v789 = vadd.f32 %v788, 1.0
    %v790 = vrcp.pop %v789
    %v791 = vmul.f32 %v789, %v790
    %v792 = vsub.f32 1.0, %v791
    %v793 = vmul.f32 %v790, %v792
    %v794 = vadd.f32 %v790, %v793
    %vm795 = vweird.f32 %v789
    %vm796 = vweird.f32 %v790
    %vm797 = vmor %vm795, %vm796
    %v798 = vsel %vm797, %v790, %v794
    %v799 = vand.u32 2147483647, %v789
    %vm800 = vcmp.eq.f32.partialorder %v799, 8.507059e+37
    %v801 = vand.u32 %v789, 2147483648
    %v802 = vor.u32 1.1754944e-38, %v801
    %v803 = vsel %vm800, %v802, %v798
    %v804 = vmul.f32 1.0, %v803
    %v805 = vadd.f32 %v763, %v240
    %v806 = vmul.f32 %v784, %v805
    %v807 = vadd.f32 %v701, %v806
    %v808 = vtanh.pop %v807
    %v809 = vsub.f32 1.0, %v804
    %v810 = vmul.f32 %v809, %v808
    %v811 = vmul.f32 %v804, %v500
    %v812 = vadd.f32 %v810, %v811
    %813 = vmatpush.msra.mxu0 0.0
    %814 = vmatpush.msra.mxu0 0.0
    %815 = vmatpush.msra.mxu0 0.0
    %816 = vmatpush.msra.mxu0 0.0
    %817 = vmatpush.msra.mxu0 0.0
    %818 = vmatpush.msra.mxu0 0.0
    %819 = vmatpush.msra.mxu0 0.0
    %820 = vmatpush.msra.mxu0 0.0
    %821 = vmatpush.msra.mxu0 0.0
    %822 = vmatpush.msra.mxu0 0.0
    %823 = vmatpush.msra.mxu0 0.0
    %824 = vmatpush.msra.mxu0 0.0
    %825 = vmatpush.msra.mxu0 %v510
    %826 = vmatpush.msra.mxu0 %v507
    %827 = vmatpush.msra.mxu0 %v504
    %828 = vmatpush.msra.mxu0 %v501
    %829 = vmatmul.f32.gmra.mxu0 %v703
    %v830 = vpop.f32.mrf.mxu0
    %v831 = vadd.f32 %v248, %v830
    %832 = vdwg.mxu0
    %833 = vmatpush.msra.mxu0 0.0
    %834 = vmatpush.msra.mxu0 0.0
    %835 = vmatpush.msra.mxu0 0.0
    %836 = vmatpush.msra.mxu0 0.0
    %837 = vmatpush.msra.mxu0 0.0
    %838 = vmatpush.msra.mxu0 0.0
    %839 = vmatpush.msra.mxu0 0.0
    %840 = vmatpush.msra.mxu0 0.0
    %841 = vmatpush.msra.mxu0 0.0
    %842 = vmatpush.msra.mxu0 0.0
    %843 = vmatpush.msra.mxu0 0.0
    %844 = vmatpush.msra.mxu0 0.0
    %845 = vmatpush.msra.mxu0 %v511
    %846 = vmatpush.msra.mxu0 %v508
    %847 = vmatpush.msra.mxu0 %v505
    %848 = vmatpush.msra.mxu0 %v502
    %849 = vmatmul.f32.gmra.mxu0 %v703
    %v850 = vpop.f32.mrf.mxu0
    %v851 = vadd.f32 %v249, %v850
    %852 = vdwg.mxu0
    %853 = vmatpush.msra.mxu0 0.0
    %854 = vmatpush.msra.mxu0 0.0
    %855 = vmatpush.msra.mxu0 0.0
    %856 = vmatpush.msra.mxu0 0.0
    %857 = vmatpush.msra.mxu0 0.0
    %858 = vmatpush.msra.mxu0 0.0
    %859 = vmatpush.msra.mxu0 0.0
    %860 = vmatpush.msra.mxu0 0.0
    %861 = vmatpush.msra.mxu0 0.0
    %862 = vmatpush.msra.mxu0 0.0
    %863 = vmatpush.msra.mxu0 0.0
    %864 = vmatpush.msra.mxu0 0.0
    %865 = vmatpush.msra.mxu0 %v512
    %866 = vmatpush.msra.mxu0 %v509
    %867 = vmatpush.msra.mxu0 %v506
    %868 = vmatpush.msra.mxu0 %v503
    %869 = vmatmul.f32.gmra.mxu0 %v703
    %v870 = vpop.f32.mrf.mxu0
    %v871 = vadd.f32 %v250, %v870
    %872 = vdwg.mxu0
    %v874 = vsel %vm272, %v695, 0
    %876 = vmatpush.msra.mxu0 0.0
    %877 = vmatpush.msra.mxu0 0.0
    %878 = vmatpush.msra.mxu0 0.0
    %879 = vmatpush.msra.mxu0 0.0
    %880 = vmatpush.msra.mxu0 0.0
    %881 = vmatpush.msra.mxu0 0.0
    %882 = vmatpush.msra.mxu0 0.0
    %883 = vmatpush.msra.mxu0 0.0
    %884 = vmatpush.msra.mxu0 0.0
    %885 = vmatpush.msra.mxu0 0.0
    %886 = vmatpush.msra.mxu0 0.0
    %887 = vmatpush.msra.mxu0 0.0
    %888 = vmatpush.msra.mxu0 %v582
    %889 = vmatpush.msra.mxu0 %v579
    %890 = vmatpush.msra.mxu0 %v576
    %891 = vmatpush.msra.mxu0 %v573
    %892 = vmatmul.f32.gmra.mxu0 %v874
    %v893 = vpop.f32.mrf.mxu0
    %v894 = vadd.f32 0.0, %v893
    %895 = vdwg.mxu0
    %896 = vmatpush.msra.mxu0 0.0
    %897 = vmatpush.msra.mxu0 0.0
    %898 = vmatpush.msra.mxu0 0.0
    %899 = vmatpush.msra.mxu0 0.0
    %900 = vmatpush.msra.mxu0 0.0
    %901 = vmatpush.msra.mxu0 0.0
    %902 = vmatpush.msra.mxu0 0.0
    %903 = vmatpush.msra.mxu0 0.0
    %904 = vmatpush.msra.mxu0 0.0
    %905 = vmatpush.msra.mxu0 0.0
    %906 = vmatpush.msra.mxu0 0.0
    %907 = vmatpush.msra.mxu0 0.0
    %908 = vmatpush.msra.mxu0 %v583
    %909 = vmatpush.msra.mxu0 %v580
    %910 = vmatpush.msra.mxu0 %v577
    %911 = vmatpush.msra.mxu0 %v574
    %912 = vmatmul.f32.gmra.mxu0 %v874
    %v913 = vpop.f32.mrf.mxu0
    %v914 = vadd.f32 0.0, %v913
    %915 = vdwg.mxu0
    %916 = vmatpush.msra.mxu0 0.0
    %917 = vmatpush.msra.mxu0 0.0
    %918 = vmatpush.msra.mxu0 0.0
    %919 = vmatpush.msra.mxu0 0.0
    %920 = vmatpush.msra.mxu0 0.0
    %921 = vmatpush.msra.mxu0 0.0
    %922 = vmatpush.msra.mxu0 0.0
    %923 = vmatpush.msra.mxu0 0.0
    %924 = vmatpush.msra.mxu0 0.0
    %925 = vmatpush.msra.mxu0 0.0
    %926 = vmatpush.msra.mxu0 0.0
    %927 = vmatpush.msra.mxu0 0.0
    %928 = vmatpush.msra.mxu0 %v584
    %929 = vmatpush.msra.mxu0 %v581
    %930 = vmatpush.msra.mxu0 %v578
    %931 = vmatpush.msra.mxu0 %v575
    %932 = vmatmul.f32.gmra.mxu0 %v874
    %v933 = vpop.f32.mrf.mxu0
    %v934 = vadd.f32 0.0, %v933
    %935 = vdwg.mxu0
    %v936 = vadd.f32 %v831, %v894
    %v937 = vxor.u32 %v936, 2147483648
    %v938 = vmul.f32 %v937, 1.442695
    %v939 = vpow.pop %v938
    %v940 = vadd.f32 %v939, 1.0
    %v941 = vrcp.pop %v940
    %v942 = vmul.f32 %v940, %v941
    %v943 = vsub.f32 1.0, %v942
    %v944 = vmul.f32 %v941, %v943
    %v945 = vadd.f32 %v941, %v944
    %vm946 = vweird.f32 %v940
    %vm947 = vweird.f32 %v941
    %vm948 = vmor %vm946, %vm947
    %v949 = vsel %vm948, %v941, %v945
    %v950 = vand.u32 2147483647, %v940
    %vm951 = vcmp.eq.f32.partialorder %v950, 8.507059e+37
    %v952 = vand.u32 %v940, 2147483648
    %v953 = vor.u32 1.1754944e-38, %v952
    %v954 = vsel %vm951, %v953, %v949
    %v955 = vmul.f32 1.0, %v954
    %v956 = vadd.f32 %v851, %v914
    %v957 = vxor.u32 %v956, 2147483648
    %v958 = vmul.f32 %v957, 1.442695
    %v959 = vpow.pop %v958
    %v960 = vadd.f32 %v959, 1.0
    %v961 = vrcp.pop %v960
    %v962 = vmul.f32 %v960, %v961
    %v963 = vsub.f32 1.0, %v962
    %v964 = vmul.f32 %v961, %v963
    %v965 = vadd.f32 %v961, %v964
    %vm966 = vweird.f32 %v960
    %vm967 = vweird.f32 %v961
    %vm968 = vmor %vm966, %vm967
    %v969 = vsel %vm968, %v961, %v965
    %v970 = vand.u32 2147483647, %v960
    %vm971 = vcmp.eq.f32.partialorder %v970, 8.507059e+37
    %v972 = vand.u32 %v960, 2147483648
    %v973 = vor.u32 1.1754944e-38, %v972
    %v974 = vsel %vm971, %v973, %v969
    %v975 = vmul.f32 1.0, %v974
    %v976 = vadd.f32 %v934, %v244
    %v977 = vmul.f32 %v955, %v976
    %v978 = vadd.f32 %v871, %v977
    %v979 = vtanh.pop %v978
    %v980 = vsub.f32 1.0, %v975
    %v981 = vmul.f32 %v980, %v979
    %v982 = vmul.f32 %v975, %v695
    %v983 = vadd.f32 %v981, %v982
    %s984 = smul.u32 3, 3
    %s985 = smul.addr %s984, 8
    %s986 = scalar_lea.vmem [#allocation2], %s985
    %v987 = vld [vmem:[%s986] sm:$0xff]
    %v988 = vld [vmem:[%s986 + $0x8] sm:$0xff]
    %v989 = vld [vmem:[%s986 + $0x10] sm:$0xff]
    %v991 = vsel %vm272, %v812, 0
    %993 = vmatpush.msra.mxu0 0.0
    %994 = vmatpush.msra.mxu0 0.0
    %995 = vmatpush.msra.mxu0 0.0
    %996 = vmatpush.msra.mxu0 0.0
    %997 = vmatpush.msra.mxu0 0.0
    %998 = vmatpush.msra.mxu0 0.0
    %999 = vmatpush.msra.mxu0 0.0
    %1000 = vmatpush.msra.mxu0 0.0
    %1001 = vmatpush.msra.mxu0 0.0
    %1002 = vmatpush.msra.mxu0 0.0
    %1003 = vmatpush.msra.mxu0 0.0
    %1004 = vmatpush.msra.mxu0 0.0
    %1005 = vmatpush.msra.mxu0 %v269
    %1006 = vmatpush.msra.mxu0 %v266
    %1007 = vmatpush.msra.mxu0 %v263
    %1008 = vmatpush.msra.mxu0 %v260
    %1009 = vmatmul.f32.gmra.mxu0 %v991
    %v1010 = vpop.f32.mrf.mxu0
    %v1011 = vadd.f32 0.0, %v1010
    %1012 = vdwg.mxu0
    %1013 = vmatpush.msra.mxu0 0.0
    %1014 = vmatpush.msra.mxu0 0.0
    %1015 = vmatpush.msra.mxu0 0.0
    %1016 = vmatpush.msra.mxu0 0.0
    %1017 = vmatpush.msra.mxu0 0.0
    %1018 = vmatpush.msra.mxu0 0.0
    %1019 = vmatpush.msra.mxu0 0.0
    %1020 = vmatpush.msra.mxu0 0.0
    %1021 = vmatpush.msra.mxu0 0.0
    %1022 = vmatpush.msra.mxu0 0.0
    %1023 = vmatpush.msra.mxu0 0.0
    %1024 = vmatpush.msra.mxu0 0.0
    %1025 = vmatpush.msra.mxu0 %v270
    %1026 = vmatpush.msra.mxu0 %v267
    %1027 = vmatpush.msra.mxu0 %v264
    %1028 = vmatpush.msra.mxu0 %v261
    %1029 = vmatmul.f32.gmra.mxu0 %v991
    %v1030 = vpop.f32.mrf.mxu0
    %v1031 = vadd.f32 0.0, %v1030
    %1032 = vdwg.mxu0
    %1033 = vmatpush.msra.mxu0 0.0
    %1034 = vmatpush.msra.mxu0 0.0
    %1035 = vmatpush.msra.mxu0 0.0
    %1036 = vmatpush.msra.mxu0 0.0
    %1037 = vmatpush.msra.mxu0 0.0
    %1038 = vmatpush.msra.mxu0 0.0
    %1039 = vmatpush.msra.mxu0 0.0
    %1040 = vmatpush.msra.mxu0 0.0
    %1041 = vmatpush.msra.mxu0 0.0
    %1042 = vmatpush.msra.mxu0 0.0
    %1043 = vmatpush.msra.mxu0 0.0
    %1044 = vmatpush.msra.mxu0 0.0
    %1045 = vmatpush.msra.mxu0 %v271
    %1046 = vmatpush.msra.mxu0 %v268
    %1047 = vmatpush.msra.mxu0 %v265
    %1048 = vmatpush.msra.mxu0 %v262
    %1049 = vmatmul.f32.gmra.mxu0 %v991
    %v1050 = vpop.f32.mrf.mxu0
    %v1051 = vadd.f32 0.0, %v1050
    %1052 = vdwg.mxu0
    %v1053 = vadd.f32 %v987, %v1011
    %v1054 = vxor.u32 %v1053, 2147483648
    %v1055 = vmul.f32 %v1054, 1.442695
    %v1056 = vpow.pop %v1055
    %v1057 = vadd.f32 %v1056, 1.0
    %v1058 = vrcp.pop %v1057
    %v1059 = vmul.f32 %v1057, %v1058
    %v1060 = vsub.f32 1.0, %v1059
    %v1061 = vmul.f32 %v1058, %v1060
    %v1062 = vadd.f32 %v1058, %v1061
    %vm1063 = vweird.f32 %v1057
    %vm1064 = vweird.f32 %v1058
    %vm1065 = vmor %vm1063, %vm1064
    %v1066 = vsel %vm1065, %v1058, %v1062
    %v1067 = vand.u32 2147483647, %v1057
    %vm1068 = vcmp.eq.f32.partialorder %v1067, 8.507059e+37
    %v1069 = vand.u32 %v1057, 2147483648
    %v1070 = vor.u32 1.1754944e-38, %v1069
    %v1071 = vsel %vm1068, %v1070, %v1066
    %v1072 = vmul.f32 1.0, %v1071
    %v1073 = vadd.f32 %v988, %v1031
    %v1074 = vxor.u32 %v1073, 2147483648
    %v1075 = vmul.f32 %v1074, 1.442695
    %v1076 = vpow.pop %v1075
    %v1077 = vadd.f32 %v1076, 1.0
    %v1078 = vrcp.pop %v1077
    %v1079 = vmul.f32 %v1077, %v1078
    %v1080 = vsub.f32 1.0, %v1079
    %v1081 = vmul.f32 %v1078, %v1080
    %v1082 = vadd.f32 %v1078, %v1081
    %vm1083 = vweird.f32 %v1077
    %vm1084 = vweird.f32 %v1078
    %vm1085 = vmor %vm1083, %vm1084
    %v1086 = vsel %vm1085, %v1078, %v1082
    %v1087 = vand.u32 2147483647, %v1077
    %vm1088 = vcmp.eq.f32.partialorder %v1087, 8.507059e+37
    %v1089 = vand.u32 %v1077, 2147483648
    %v1090 = vor.u32 1.1754944e-38, %v1089
    %v1091 = vsel %vm1088, %v1090, %v1086
    %v1092 = vmul.f32 1.0, %v1091
    %v1093 = vadd.f32 %v1051, %v240
    %v1094 = vmul.f32 %v1072, %v1093
    %v1095 = vadd.f32 %v989, %v1094
    %v1096 = vtanh.pop %v1095
    %v1097 = vsub.f32 1.0, %v1092
    %v1098 = vmul.f32 %v1097, %v1096
    %v1099 = vmul.f32 %v1092, %v812
    %v1100 = vadd.f32 %v1098, %v1099
    %1101 = vmatpush.msra.mxu0 0.0
    %1102 = vmatpush.msra.mxu0 0.0
    %1103 = vmatpush.msra.mxu0 0.0
    %1104 = vmatpush.msra.mxu0 0.0
    %1105 = vmatpush.msra.mxu0 0.0
    %1106 = vmatpush.msra.mxu0 0.0
    %1107 = vmatpush.msra.mxu0 0.0
    %1108 = vmatpush.msra.mxu0 0.0
    %1109 = vmatpush.msra.mxu0 0.0
    %1110 = vmatpush.msra.mxu0 0.0
    %1111 = vmatpush.msra.mxu0 0.0
    %1112 = vmatpush.msra.mxu0 0.0
    %1113 = vmatpush.msra.mxu0 %v510
    %1114 = vmatpush.msra.mxu0 %v507
    %1115 = vmatpush.msra.mxu0 %v504
    %1116 = vmatpush.msra.mxu0 %v501
    %1117 = vmatmul.f32.gmra.mxu0 %v991
    %v1118 = vpop.f32.mrf.mxu0
    %v1119 = vadd.f32 %v248, %v1118
    %1120 = vdwg.mxu0
    %1121 = vmatpush.msra.mxu0 0.0
    %1122 = vmatpush.msra.mxu0 0.0
    %1123 = vmatpush.msra.mxu0 0.0
    %1124 = vmatpush.msra.mxu0 0.0
    %1125 = vmatpush.msra.mxu0 0.0
    %1126 = vmatpush.msra.mxu0 0.0
    %1127 = vmatpush.msra.mxu0 0.0
    %1128 = vmatpush.msra.mxu0 0.0
    %1129 = vmatpush.msra.mxu0 0.0
    %1130 = vmatpush.msra.mxu0 0.0
    %1131 = vmatpush.msra.mxu0 0.0
    %1132 = vmatpush.msra.mxu0 0.0
    %1133 = vmatpush.msra.mxu0 %v511
    %1134 = vmatpush.msra.mxu0 %v508
    %1135 = vmatpush.msra.mxu0 %v505
    %1136 = vmatpush.msra.mxu0 %v502
    %1137 = vmatmul.f32.gmra.mxu0 %v991
    %v1138 = vpop.f32.mrf.mxu0
    %v1139 = vadd.f32 %v249, %v1138
    %1140 = vdwg.mxu0
    %1141 = vmatpush.msra.mxu0 0.0
    %1142 = vmatpush.msra.mxu0 0.0
    %1143 = vmatpush.msra.mxu0 0.0
    %1144 = vmatpush.msra.mxu0 0.0
    %1145 = vmatpush.msra.mxu0 0.0
    %1146 = vmatpush.msra.mxu0 0.0
    %1147 = vmatpush.msra.mxu0 0.0
    %1148 = vmatpush.msra.mxu0 0.0
    %1149 = vmatpush.msra.mxu0 0.0
    %1150 = vmatpush.msra.mxu0 0.0
    %1151 = vmatpush.msra.mxu0 0.0
    %1152 = vmatpush.msra.mxu0 0.0
    %1153 = vmatpush.msra.mxu0 %v512
    %1154 = vmatpush.msra.mxu0 %v509
    %1155 = vmatpush.msra.mxu0 %v506
    %1156 = vmatpush.msra.mxu0 %v503
    %1157 = vmatmul.f32.gmra.mxu0 %v991
    %v1158 = vpop.f32.mrf.mxu0
    %v1159 = vadd.f32 %v250, %v1158
    %1160 = vdwg.mxu0
    %v1162 = vsel %vm272, %v983, 0
    %1164 = vmatpush.msra.mxu0 0.0
    %1165 = vmatpush.msra.mxu0 0.0
    %1166 = vmatpush.msra.mxu0 0.0
    %1167 = vmatpush.msra.mxu0 0.0
    %1168 = vmatpush.msra.mxu0 0.0
    %1169 = vmatpush.msra.mxu0 0.0
    %1170 = vmatpush.msra.mxu0 0.0
    %1171 = vmatpush.msra.mxu0 0.0
    %1172 = vmatpush.msra.mxu0 0.0
    %1173 = vmatpush.msra.mxu0 0.0
    %1174 = vmatpush.msra.mxu0 0.0
    %1175 = vmatpush.msra.mxu0 0.0
    %1176 = vmatpush.msra.mxu0 %v582
    %1177 = vmatpush.msra.mxu0 %v579
    %1178 = vmatpush.msra.mxu0 %v576
    %1179 = vmatpush.msra.mxu0 %v573
    %1180 = vmatmul.f32.gmra.mxu0 %v1162
    %v1181 = vpop.f32.mrf.mxu0
    %v1182 = vadd.f32 0.0, %v1181
    %1183 = vdwg.mxu0
    %1184 = vmatpush.msra.mxu0 0.0
    %1185 = vmatpush.msra.mxu0 0.0
    %1186 = vmatpush.msra.mxu0 0.0
    %1187 = vmatpush.msra.mxu0 0.0
    %1188 = vmatpush.msra.mxu0 0.0
    %1189 = vmatpush.msra.mxu0 0.0
    %1190 = vmatpush.msra.mxu0 0.0
    %1191 = vmatpush.msra.mxu0 0.0
    %1192 = vmatpush.msra.mxu0 0.0
    %1193 = vmatpush.msra.mxu0 0.0
    %1194 = vmatpush.msra.mxu0 0.0
    %1195 = vmatpush.msra.mxu0 0.0
    %1196 = vmatpush.msra.mxu0 %v583
    %1197 = vmatpush.msra.mxu0 %v580
    %1198 = vmatpush.msra.mxu0 %v577
    %1199 = vmatpush.msra.mxu0 %v574
    %1200 = vmatmul.f32.gmra.mxu0 %v1162
    %v1201 = vpop.f32.mrf.mxu0
    %v1202 = vadd.f32 0.0, %v1201
    %1203 = vdwg.mxu0
    %1204 = vmatpush.msra.mxu0 0.0
    %1205 = vmatpush.msra.mxu0 0.0
    %1206 = vmatpush.msra.mxu0 0.0
    %1207 = vmatpush.msra.mxu0 0.0
    %1208 = vmatpush.msra.mxu0 0.0
    %1209 = vmatpush.msra.mxu0 0.0
    %1210 = vmatpush.msra.mxu0 0.0
    %1211 = vmatpush.msra.mxu0 0.0
    %1212 = vmatpush.msra.mxu0 0.0
    %1213 = vmatpush.msra.mxu0 0.0
    %1214 = vmatpush.msra.mxu0 0.0
    %1215 = vmatpush.msra.mxu0 0.0
    %1216 = vmatpush.msra.mxu0 %v584
    %1217 = vmatpush.msra.mxu0 %v581
    %1218 = vmatpush.msra.mxu0 %v578
    %1219 = vmatpush.msra.mxu0 %v575
    %1220 = vmatmul.f32.gmra.mxu0 %v1162
    %v1221 = vpop.f32.mrf.mxu0
    %v1222 = vadd.f32 0.0, %v1221
    %1223 = vdwg.mxu0
    %v1224 = vadd.f32 %v1119, %v1182
    %v1225 = vxor.u32 %v1224, 2147483648
    %v1226 = vmul.f32 %v1225, 1.442695
    %v1227 = vpow.pop %v1226
    %v1228 = vadd.f32 %v1227, 1.0
    %v1229 = vrcp.pop %v1228
    %v1230 = vmul.f32 %v1228, %v1229
    %v1231 = vsub.f32 1.0, %v1230
    %v1232 = vmul.f32 %v1229, %v1231
    %v1233 = vadd.f32 %v1229, %v1232
    %vm1234 = vweird.f32 %v1228
    %vm1235 = vweird.f32 %v1229
    %vm1236 = vmor %vm1234, %vm1235
    %v1237 = vsel %vm1236, %v1229, %v1233
    %v1238 = vand.u32 2147483647, %v1228
    %vm1239 = vcmp.eq.f32.partialorder %v1238, 8.507059e+37
    %v1240 = vand.u32 %v1228, 2147483648
    %v1241 = vor.u32 1.1754944e-38, %v1240
    %v1242 = vsel %vm1239, %v1241, %v1237
    %v1243 = vmul.f32 1.0, %v1242
    %v1244 = vadd.f32 %v1139, %v1202
    %v1245 = vxor.u32 %v1244, 2147483648
    %v1246 = vmul.f32 %v1245, 1.442695
    %v1247 = vpow.pop %v1246
    %v1248 = vadd.f32 %v1247, 1.0
    %v1249 = vrcp.pop %v1248
    %v1250 = vmul.f32 %v1248, %v1249
    %v1251 = vsub.f32 1.0, %v1250
    %v1252 = vmul.f32 %v1249, %v1251
    %v1253 = vadd.f32 %v1249, %v1252
    %vm1254 = vweird.f32 %v1248
    %vm1255 = vweird.f32 %v1249
    %vm1256 = vmor %vm1254, %vm1255
    %v1257 = vsel %vm1256, %v1249, %v1253
    %v1258 = vand.u32 2147483647, %v1248
    %vm1259 = vcmp.eq.f32.partialorder %v1258, 8.507059e+37
    %v1260 = vand.u32 %v1248, 2147483648
    %v1261 = vor.u32 1.1754944e-38, %v1260
    %v1262 = vsel %vm1259, %v1261, %v1257
    %v1263 = vmul.f32 1.0, %v1262
    %v1264 = vadd.f32 %v1222, %v244
    %v1265 = vmul.f32 %v1243, %v1264
    %v1266 = vadd.f32 %v1159, %v1265
    %v1267 = vtanh.pop %v1266
    %v1268 = vsub.f32 1.0, %v1263
    %v1269 = vmul.f32 %v1268, %v1267
    %v1270 = vmul.f32 %v1263, %v983
    %v1271 = vadd.f32 %v1269, %v1270
    %s1272 = smul.u32 4, 3
    %s1273 = smul.addr %s1272, 8
    %s1274 = scalar_lea.vmem [#allocation2], %s1273
    %v1275 = vld [vmem:[%s1274] sm:$0xff]
    %v1276 = vld [vmem:[%s1274 + $0x8] sm:$0xff]
    %v1277 = vld [vmem:[%s1274 + $0x10] sm:$0xff]
    %v1279 = vsel %vm272, %v1100, 0
    %1281 = vmatpush.msra.mxu0 0.0
    %1282 = vmatpush.msra.mxu0 0.0
    %1283 = vmatpush.msra.mxu0 0.0
    %1284 = vmatpush.msra.mxu0 0.0
    %1285 = vmatpush.msra.mxu0 0.0
    %1286 = vmatpush.msra.mxu0 0.0
    %1287 = vmatpush.msra.mxu0 0.0
    %1288 = vmatpush.msra.mxu0 0.0
    %1289 = vmatpush.msra.mxu0 0.0
    %1290 = vmatpush.msra.mxu0 0.0
    %1291 = vmatpush.msra.mxu0 0.0
    %1292 = vmatpush.msra.mxu0 0.0
    %1293 = vmatpush.msra.mxu0 %v269
    %1294 = vmatpush.msra.mxu0 %v266
    %1295 = vmatpush.msra.mxu0 %v263
    %1296 = vmatpush.msra.mxu0 %v260
    %1297 = vmatmul.f32.gmra.mxu0 %v1279
    %v1298 = vpop.f32.mrf.mxu0
    %v1299 = vadd.f32 0.0, %v1298
    %1300 = vdwg.mxu0
    %1301 = vmatpush.msra.mxu0 0.0
    %1302 = vmatpush.msra.mxu0 0.0
    %1303 = vmatpush.msra.mxu0 0.0
    %1304 = vmatpush.msra.mxu0 0.0
    %1305 = vmatpush.msra.mxu0 0.0
    %1306 = vmatpush.msra.mxu0 0.0
    %1307 = vmatpush.msra.mxu0 0.0
    %1308 = vmatpush.msra.mxu0 0.0
    %1309 = vmatpush.msra.mxu0 0.0
    %1310 = vmatpush.msra.mxu0 0.0
    %1311 = vmatpush.msra.mxu0 0.0
    %1312 = vmatpush.msra.mxu0 0.0
    %1313 = vmatpush.msra.mxu0 %v270
    %1314 = vmatpush.msra.mxu0 %v267
    %1315 = vmatpush.msra.mxu0 %v264
    %1316 = vmatpush.msra.mxu0 %v261
    %1317 = vmatmul.f32.gmra.mxu0 %v1279
    %v1318 = vpop.f32.mrf.mxu0
    %v1319 = vadd.f32 0.0, %v1318
    %1320 = vdwg.mxu0
    %1321 = vmatpush.msra.mxu0 0.0
    %1322 = vmatpush.msra.mxu0 0.0
    %1323 = vmatpush.msra.mxu0 0.0
    %1324 = vmatpush.msra.mxu0 0.0
    %1325 = vmatpush.msra.mxu0 0.0
    %1326 = vmatpush.msra.mxu0 0.0
    %1327 = vmatpush.msra.mxu0 0.0
    %1328 = vmatpush.msra.mxu0 0.0
    %1329 = vmatpush.msra.mxu0 0.0
    %1330 = vmatpush.msra.mxu0 0.0
    %1331 = vmatpush.msra.mxu0 0.0
    %1332 = vmatpush.msra.mxu0 0.0
    %1333 = vmatpush.msra.mxu0 %v271
    %1334 = vmatpush.msra.mxu0 %v268
    %1335 = vmatpush.msra.mxu0 %v265
    %1336 = vmatpush.msra.mxu0 %v262
    %1337 = vmatmul.f32.gmra.mxu0 %v1279
    %v1338 = vpop.f32.mrf.mxu0
    %v1339 = vadd.f32 0.0, %v1338
    %1340 = vdwg.mxu0
    %v1341 = vadd.f32 %v1275, %v1299
    %v1342 = vxor.u32 %v1341, 2147483648
    %v1343 = vmul.f32 %v1342, 1.442695
    %v1344 = vpow.pop %v1343
    %v1345 = vadd.f32 %v1344, 1.0
    %v1346 = vrcp.pop %v1345
    %v1347 = vmul.f32 %v1345, %v1346
    %v1348 = vsub.f32 1.0, %v1347
    %v1349 = vmul.f32 %v1346, %v1348
    %v1350 = vadd.f32 %v1346, %v1349
    %vm1351 = vweird.f32 %v1345
    %vm1352 = vweird.f32 %v1346
    %vm1353 = vmor %vm1351, %vm1352
    %v1354 = vsel %vm1353, %v1346, %v1350
    %v1355 = vand.u32 2147483647, %v1345
    %vm1356 = vcmp.eq.f32.partialorder %v1355, 8.507059e+37
    %v1357 = vand.u32 %v1345, 2147483648
    %v1358 = vor.u32 1.1754944e-38, %v1357
    %v1359 = vsel %vm1356, %v1358, %v1354
    %v1360 = vmul.f32 1.0, %v1359
    %v1361 = vadd.f32 %v1276, %v1319
    %v1362 = vxor.u32 %v1361, 2147483648
    %v1363 = vmul.f32 %v1362, 1.442695
    %v1364 = vpow.pop %v1363
    %v1365 = vadd.f32 %v1364, 1.0
    %v1366 = vrcp.pop %v1365
    %v1367 = vmul.f32 %v1365, %v1366
    %v1368 = vsub.f32 1.0, %v1367
    %v1369 = vmul.f32 %v1366, %v1368
    %v1370 = vadd.f32 %v1366, %v1369
    %vm1371 = vweird.f32 %v1365
    %vm1372 = vweird.f32 %v1366
    %vm1373 = vmor %vm1371, %vm1372
    %v1374 = vsel %vm1373, %v1366, %v1370
    %v1375 = vand.u32 2147483647, %v1365
    %vm1376 = vcmp.eq.f32.partialorder %v1375, 8.507059e+37
    %v1377 = vand.u32 %v1365, 2147483648
    %v1378 = vor.u32 1.1754944e-38, %v1377
    %v1379 = vsel %vm1376, %v1378, %v1374
    %v1380 = vmul.f32 1.0, %v1379
    %v1381 = vadd.f32 %v1339, %v240
    %v1382 = vmul.f32 %v1360, %v1381
    %v1383 = vadd.f32 %v1277, %v1382
    %v1384 = vtanh.pop %v1383
    %v1385 = vsub.f32 1.0, %v1380
    %v1386 = vmul.f32 %v1385, %v1384
    %v1387 = vmul.f32 %v1380, %v1100
    %v1388 = vadd.f32 %v1386, %v1387
    %1389 = vmatpush.msra.mxu0 0.0
    %1390 = vmatpush.msra.mxu0 0.0
    %1391 = vmatpush.msra.mxu0 0.0
    %1392 = vmatpush.msra.mxu0 0.0
    %1393 = vmatpush.msra.mxu0 0.0
    %1394 = vmatpush.msra.mxu0 0.0
    %1395 = vmatpush.msra.mxu0 0.0
    %1396 = vmatpush.msra.mxu0 0.0
    %1397 = vmatpush.msra.mxu0 0.0
    %1398 = vmatpush.msra.mxu0 0.0
    %1399 = vmatpush.msra.mxu0 0.0
    %1400 = vmatpush.msra.mxu0 0.0
    %1401 = vmatpush.msra.mxu0 %v510
    %1402 = vmatpush.msra.mxu0 %v507
    %1403 = vmatpush.msra.mxu0 %v504
    %1404 = vmatpush.msra.mxu0 %v501
    %1405 = vmatmul.f32.gmra.mxu0 %v1279
    %v1406 = vpop.f32.mrf.mxu0
    %v1407 = vadd.f32 %v248, %v1406
    %1408 = vdwg.mxu0
    %1409 = vmatpush.msra.mxu0 0.0
    %1410 = vmatpush.msra.mxu0 0.0
    %1411 = vmatpush.msra.mxu0 0.0
    %1412 = vmatpush.msra.mxu0 0.0
    %1413 = vmatpush.msra.mxu0 0.0
    %1414 = vmatpush.msra.mxu0 0.0
    %1415 = vmatpush.msra.mxu0 0.0
    %1416 = vmatpush.msra.mxu0 0.0
    %1417 = vmatpush.msra.mxu0 0.0
    %1418 = vmatpush.msra.mxu0 0.0
    %1419 = vmatpush.msra.mxu0 0.0
    %1420 = vmatpush.msra.mxu0 0.0
    %1421 = vmatpush.msra.mxu0 %v511
    %1422 = vmatpush.msra.mxu0 %v508
    %1423 = vmatpush.msra.mxu0 %v505
    %1424 = vmatpush.msra.mxu0 %v502
    %1425 = vmatmul.f32.gmra.mxu0 %v1279
    %v1426 = vpop.f32.mrf.mxu0
    %v1427 = vadd.f32 %v249, %v1426
    %1428 = vdwg.mxu0
    %1429 = vmatpush.msra.mxu0 0.0
    %1430 = vmatpush.msra.mxu0 0.0
    %1431 = vmatpush.msra.mxu0 0.0
    %1432 = vmatpush.msra.mxu0 0.0
    %1433 = vmatpush.msra.mxu0 0.0
    %1434 = vmatpush.msra.mxu0 0.0
    %1435 = vmatpush.msra.mxu0 0.0
    %1436 = vmatpush.msra.mxu0 0.0
    %1437 = vmatpush.msra.mxu0 0.0
    %1438 = vmatpush.msra.mxu0 0.0
    %1439 = vmatpush.msra.mxu0 0.0
    %1440 = vmatpush.msra.mxu0 0.0
    %1441 = vmatpush.msra.mxu0 %v512
    %1442 = vmatpush.msra.mxu0 %v509
    %1443 = vmatpush.msra.mxu0 %v506
    %1444 = vmatpush.msra.mxu0 %v503
    %1445 = vmatmul.f32.gmra.mxu0 %v1279
    %v1446 = vpop.f32.mrf.mxu0
    %v1447 = vadd.f32 %v250, %v1446
    %1448 = vdwg.mxu0
    %v1450 = vsel %vm272, %v1271, 0
    %1452 = vmatpush.msra.mxu0 0.0
    %1453 = vmatpush.msra.mxu0 0.0
    %1454 = vmatpush.msra.mxu0 0.0
    %1455 = vmatpush.msra.mxu0 0.0
    %1456 = vmatpush.msra.mxu0 0.0
    %1457 = vmatpush.msra.mxu0 0.0
    %1458 = vmatpush.msra.mxu0 0.0
    %1459 = vmatpush.msra.mxu0 0.0
    %1460 = vmatpush.msra.mxu0 0.0
    %1461 = vmatpush.msra.mxu0 0.0
    %1462 = vmatpush.msra.mxu0 0.0
    %1463 = vmatpush.msra.mxu0 0.0
    %1464 = vmatpush.msra.mxu0 %v582
    %1465 = vmatpush.msra.mxu0 %v579
    %1466 = vmatpush.msra.mxu0 %v576
    %1467 = vmatpush.msra.mxu0 %v573
    %1468 = vmatmul.f32.gmra.mxu0 %v1450
    %v1469 = vpop.f32.mrf.mxu0
    %v1470 = vadd.f32 0.0, %v1469
    %1471 = vdwg.mxu0
    %1472 = vmatpush.msra.mxu0 0.0
    %1473 = vmatpush.msra.mxu0 0.0
    %1474 = vmatpush.msra.mxu0 0.0
    %1475 = vmatpush.msra.mxu0 0.0
    %1476 = vmatpush.msra.mxu0 0.0
    %1477 = vmatpush.msra.mxu0 0.0
    %1478 = vmatpush.msra.mxu0 0.0
    %1479 = vmatpush.msra.mxu0 0.0
    %1480 = vmatpush.msra.mxu0 0.0
    %1481 = vmatpush.msra.mxu0 0.0
    %1482 = vmatpush.msra.mxu0 0.0
    %1483 = vmatpush.msra.mxu0 0.0
    %1484 = vmatpush.msra.mxu0 %v583
    %1485 = vmatpush.msra.mxu0 %v580
    %1486 = vmatpush.msra.mxu0 %v577
    %1487 = vmatpush.msra.mxu0 %v574
    %1488 = vmatmul.f32.gmra.mxu0 %v1450
    %v1489 = vpop.f32.mrf.mxu0
    %v1490 = vadd.f32 0.0, %v1489
    %1491 = vdwg.mxu0
    %1492 = vmatpush.msra.mxu0 0.0
    %1493 = vmatpush.msra.mxu0 0.0
    %1494 = vmatpush.msra.mxu0 0.0
    %1495 = vmatpush.msra.mxu0 0.0
    %1496 = vmatpush.msra.mxu0 0.0
    %1497 = vmatpush.msra.mxu0 0.0
    %1498 = vmatpush.msra.mxu0 0.0
    %1499 = vmatpush.msra.mxu0 0.0
    %1500 = vmatpush.msra.mxu0 0.0
    %1501 = vmatpush.msra.mxu0 0.0
    %1502 = vmatpush.msra.mxu0 0.0
    %1503 = vmatpush.msra.mxu0 0.0
    %1504 = vmatpush.msra.mxu0 %v584
    %1505 = vmatpush.msra.mxu0 %v581
    %1506 = vmatpush.msra.mxu0 %v578
    %1507 = vmatpush.msra.mxu0 %v575
    %1508 = vmatmul.f32.gmra.mxu0 %v1450
    %v1509 = vpop.f32.mrf.mxu0
    %v1510 = vadd.f32 0.0, %v1509
    %1511 = vdwg.mxu0
    %v1512 = vadd.f32 %v1407, %v1470
    %v1513 = vxor.u32 %v1512, 2147483648
    %v1514 = vmul.f32 %v1513, 1.442695
    %v1515 = vpow.pop %v1514
    %v1516 = vadd.f32 %v1515, 1.0
    %v1517 = vrcp.pop %v1516
    %v1518 = vmul.f32 %v1516, %v1517
    %v1519 = vsub.f32 1.0, %v1518
    %v1520 = vmul.f32 %v1517, %v1519
    %v1521 = vadd.f32 %v1517, %v1520
    %vm1522 = vweird.f32 %v1516
    %vm1523 = vweird.f32 %v1517
    %vm1524 = vmor %vm1522, %vm1523
    %v1525 = vsel %vm1524, %v1517, %v1521
    %v1526 = vand.u32 2147483647, %v1516
    %vm1527 = vcmp.eq.f32.partialorder %v1526, 8.507059e+37
    %v1528 = vand.u32 %v1516, 2147483648
    %v1529 = vor.u32 1.1754944e-38, %v1528
    %v1530 = vsel %vm1527, %v1529, %v1525
    %v1531 = vmul.f32 1.0, %v1530
    %v1532 = vadd.f32 %v1427, %v1490
    %v1533 = vxor.u32 %v1532, 2147483648
    %v1534 = vmul.f32 %v1533, 1.442695
    %v1535 = vpow.pop %v1534
    %v1536 = vadd.f32 %v1535, 1.0
    %v1537 = vrcp.pop %v1536
    %v1538 = vmul.f32 %v1536, %v1537
    %v1539 = vsub.f32 1.0, %v1538
    %v1540 = vmul.f32 %v1537, %v1539
    %v1541 = vadd.f32 %v1537, %v1540
    %vm1542 = vweird.f32 %v1536
    %vm1543 = vweird.f32 %v1537
    %vm1544 = vmor %vm1542, %vm1543
    %v1545 = vsel %vm1544, %v1537, %v1541
    %v1546 = vand.u32 2147483647, %v1536
    %vm1547 = vcmp.eq.f32.partialorder %v1546, 8.507059e+37
    %v1548 = vand.u32 %v1536, 2147483648
    %v1549 = vor.u32 1.1754944e-38, %v1548
    %v1550 = vsel %vm1547, %v1549, %v1545
    %v1551 = vmul.f32 1.0, %v1550
    %v1552 = vadd.f32 %v1510, %v244
    %v1553 = vmul.f32 %v1531, %v1552
    %v1554 = vadd.f32 %v1447, %v1553
    %v1555 = vtanh.pop %v1554
    %v1556 = vsub.f32 1.0, %v1551
    %v1557 = vmul.f32 %v1556, %v1555
    %v1558 = vmul.f32 %v1551, %v1271
    %v1559 = vadd.f32 %v1557, %v1558
    %s1560 = smul.u32 5, 3
    %s1561 = smul.addr %s1560, 8
    %s1562 = scalar_lea.vmem [#allocation2], %s1561
    %v1563 = vld [vmem:[%s1562] sm:$0xff]
    %v1564 = vld [vmem:[%s1562 + $0x8] sm:$0xff]
    %v1565 = vld [vmem:[%s1562 + $0x10] sm:$0xff]
    %v1567 = vsel %vm272, %v1388, 0
    %1569 = vmatpush.msra.mxu0 0.0
    %1570 = vmatpush.msra.mxu0 0.0
    %1571 = vmatpush.msra.mxu0 0.0
    %1572 = vmatpush.msra.mxu0 0.0
    %1573 = vmatpush.msra.mxu0 0.0
    %1574 = vmatpush.msra.mxu0 0.0
    %1575 = vmatpush.msra.mxu0 0.0
    %1576 = vmatpush.msra.mxu0 0.0
    %1577 = vmatpush.msra.mxu0 0.0
    %1578 = vmatpush.msra.mxu0 0.0
    %1579 = vmatpush.msra.mxu0 0.0
    %1580 = vmatpush.msra.mxu0 0.0
    %1581 = vmatpush.msra.mxu0 %v269
    %1582 = vmatpush.msra.mxu0 %v266
    %1583 = vmatpush.msra.mxu0 %v263
    %1584 = vmatpush.msra.mxu0 %v260
    %1585 = vmatmul.f32.gmra.mxu0 %v1567
    %v1586 = vpop.f32.mrf.mxu0
    %v1587 = vadd.f32 0.0, %v1586
    %1588 = vdwg.mxu0
    %1589 = vmatpush.msra.mxu0 0.0
    %1590 = vmatpush.msra.mxu0 0.0
    %1591 = vmatpush.msra.mxu0 0.0
    %1592 = vmatpush.msra.mxu0 0.0
    %1593 = vmatpush.msra.mxu0 0.0
    %1594 = vmatpush.msra.mxu0 0.0
    %1595 = vmatpush.msra.mxu0 0.0
    %1596 = vmatpush.msra.mxu0 0.0
    %1597 = vmatpush.msra.mxu0 0.0
    %1598 = vmatpush.msra.mxu0 0.0
    %1599 = vmatpush.msra.mxu0 0.0
    %1600 = vmatpush.msra.mxu0 0.0
    %1601 = vmatpush.msra.mxu0 %v270
    %1602 = vmatpush.msra.mxu0 %v267
    %1603 = vmatpush.msra.mxu0 %v264
    %1604 = vmatpush.msra.mxu0 %v261
    %1605 = vmatmul.f32.gmra.mxu0 %v1567
    %v1606 = vpop.f32.mrf.mxu0
    %v1607 = vadd.f32 0.0, %v1606
    %1608 = vdwg.mxu0
    %1609 = vmatpush.msra.mxu0 0.0
    %1610 = vmatpush.msra.mxu0 0.0
    %1611 = vmatpush.msra.mxu0 0.0
    %1612 = vmatpush.msra.mxu0 0.0
    %1613 = vmatpush.msra.mxu0 0.0
    %1614 = vmatpush.msra.mxu0 0.0
    %1615 = vmatpush.msra.mxu0 0.0
    %1616 = vmatpush.msra.mxu0 0.0
    %1617 = vmatpush.msra.mxu0 0.0
    %1618 = vmatpush.msra.mxu0 0.0
    %1619 = vmatpush.msra.mxu0 0.0
    %1620 = vmatpush.msra.mxu0 0.0
    %1621 = vmatpush.msra.mxu0 %v271
    %1622 = vmatpush.msra.mxu0 %v268
    %1623 = vmatpush.msra.mxu0 %v265
    %1624 = vmatpush.msra.mxu0 %v262
    %1625 = vmatmul.f32.gmra.mxu0 %v1567
    %v1626 = vpop.f32.mrf.mxu0
    %v1627 = vadd.f32 0.0, %v1626
    %1628 = vdwg.mxu0
    %v1629 = vadd.f32 %v1563, %v1587
    %v1630 = vxor.u32 %v1629, 2147483648
    %v1631 = vmul.f32 %v1630, 1.442695
    %v1632 = vpow.pop %v1631
    %v1633 = vadd.f32 %v1632, 1.0
    %v1634 = vrcp.pop %v1633
    %v1635 = vmul.f32 %v1633, %v1634
    %v1636 = vsub.f32 1.0, %v1635
    %v1637 = vmul.f32 %v1634, %v1636
    %v1638 = vadd.f32 %v1634, %v1637
    %vm1639 = vweird.f32 %v1633
    %vm1640 = vweird.f32 %v1634
    %vm1641 = vmor %vm1639, %vm1640
    %v1642 = vsel %vm1641, %v1634, %v1638
    %v1643 = vand.u32 2147483647, %v1633
    %vm1644 = vcmp.eq.f32.partialorder %v1643, 8.507059e+37
    %v1645 = vand.u32 %v1633, 2147483648
    %v1646 = vor.u32 1.1754944e-38, %v1645
    %v1647 = vsel %vm1644, %v1646, %v1642
    %v1648 = vmul.f32 1.0, %v1647
    %v1649 = vadd.f32 %v1564, %v1607
    %v1650 = vxor.u32 %v1649, 2147483648
    %v1651 = vmul.f32 %v1650, 1.442695
    %v1652 = vpow.pop %v1651
    %v1653 = vadd.f32 %v1652, 1.0
    %v1654 = vrcp.pop %v1653
    %v1655 = vmul.f32 %v1653, %v1654
    %v1656 = vsub.f32 1.0, %v1655
    %v1657 = vmul.f32 %v1654, %v1656
    %v1658 = vadd.f32 %v1654, %v1657
    %vm1659 = vweird.f32 %v1653
    %vm1660 = vweird.f32 %v1654
    %vm1661 = vmor %vm1659, %vm1660
    %v1662 = vsel %vm1661, %v1654, %v1658
    %v1663 = vand.u32 2147483647, %v1653
    %vm1664 = vcmp.eq.f32.partialorder %v1663, 8.507059e+37
    %v1665 = vand.u32 %v1653, 2147483648
    %v1666 = vor.u32 1.1754944e-38, %v1665
    %v1667 = vsel %vm1664, %v1666, %v1662
    %v1668 = vmul.f32 1.0, %v1667
    %v1669 = vadd.f32 %v1627, %v240
    %v1670 = vmul.f32 %v1648, %v1669
    %v1671 = vadd.f32 %v1565, %v1670
    %v1672 = vtanh.pop %v1671
    %v1673 = vsub.f32 1.0, %v1668
    %v1674 = vmul.f32 %v1673, %v1672
    %v1675 = vmul.f32 %v1668, %v1388
    %v1676 = vadd.f32 %v1674, %v1675
    %1677 = vmatpush.msra.mxu0 0.0
    %1678 = vmatpush.msra.mxu0 0.0
    %1679 = vmatpush.msra.mxu0 0.0
    %1680 = vmatpush.msra.mxu0 0.0
    %1681 = vmatpush.msra.mxu0 0.0
    %1682 = vmatpush.msra.mxu0 0.0
    %1683 = vmatpush.msra.mxu0 0.0
    %1684 = vmatpush.msra.mxu0 0.0
    %1685 = vmatpush.msra.mxu0 0.0
    %1686 = vmatpush.msra.mxu0 0.0
    %1687 = vmatpush.msra.mxu0 0.0
    %1688 = vmatpush.msra.mxu0 0.0
    %1689 = vmatpush.msra.mxu0 %v510
    %1690 = vmatpush.msra.mxu0 %v507
    %1691 = vmatpush.msra.mxu0 %v504
    %1692 = vmatpush.msra.mxu0 %v501
    %1693 = vmatmul.f32.gmra.mxu0 %v1567
    %v1694 = vpop.f32.mrf.mxu0
    %v1695 = vadd.f32 %v248, %v1694
    %1696 = vdwg.mxu0
    %1697 = vmatpush.msra.mxu0 0.0
    %1698 = vmatpush.msra.mxu0 0.0
    %1699 = vmatpush.msra.mxu0 0.0
    %1700 = vmatpush.msra.mxu0 0.0
    %1701 = vmatpush.msra.mxu0 0.0
    %1702 = vmatpush.msra.mxu0 0.0
    %1703 = vmatpush.msra.mxu0 0.0
    %1704 = vmatpush.msra.mxu0 0.0
    %1705 = vmatpush.msra.mxu0 0.0
    %1706 = vmatpush.msra.mxu0 0.0
    %1707 = vmatpush.msra.mxu0 0.0
    %1708 = vmatpush.msra.mxu0 0.0
    %1709 = vmatpush.msra.mxu0 %v511
    %1710 = vmatpush.msra.mxu0 %v508
    %1711 = vmatpush.msra.mxu0 %v505
    %1712 = vmatpush.msra.mxu0 %v502
    %1713 = vmatmul.f32.gmra.mxu0 %v1567
    %v1714 = vpop.f32.mrf.mxu0
    %v1715 = vadd.f32 %v249, %v1714
    %1716 = vdwg.mxu0
    %1717 = vmatpush.msra.mxu0 0.0
    %1718 = vmatpush.msra.mxu0 0.0
    %1719 = vmatpush.msra.mxu0 0.0
    %1720 = vmatpush.msra.mxu0 0.0
    %1721 = vmatpush.msra.mxu0 0.0
    %1722 = vmatpush.msra.mxu0 0.0
    %1723 = vmatpush.msra.mxu0 0.0
    %1724 = vmatpush.msra.mxu0 0.0
    %1725 = vmatpush.msra.mxu0 0.0
    %1726 = vmatpush.msra.mxu0 0.0
    %1727 = vmatpush.msra.mxu0 0.0
    %1728 = vmatpush.msra.mxu0 0.0
    %1729 = vmatpush.msra.mxu0 %v512
    %1730 = vmatpush.msra.mxu0 %v509
    %1731 = vmatpush.msra.mxu0 %v506
    %1732 = vmatpush.msra.mxu0 %v503
    %1733 = vmatmul.f32.gmra.mxu0 %v1567
    %v1734 = vpop.f32.mrf.mxu0
    %v1735 = vadd.f32 %v250, %v1734
    %1736 = vdwg.mxu0
    %v1738 = vsel %vm272, %v1559, 0
    %1740 = vmatpush.msra.mxu0 0.0
    %1741 = vmatpush.msra.mxu0 0.0
    %1742 = vmatpush.msra.mxu0 0.0
    %1743 = vmatpush.msra.mxu0 0.0
    %1744 = vmatpush.msra.mxu0 0.0
    %1745 = vmatpush.msra.mxu0 0.0
    %1746 = vmatpush.msra.mxu0 0.0
    %1747 = vmatpush.msra.mxu0 0.0
    %1748 = vmatpush.msra.mxu0 0.0
    %1749 = vmatpush.msra.mxu0 0.0
    %1750 = vmatpush.msra.mxu0 0.0
    %1751 = vmatpush.msra.mxu0 0.0
    %1752 = vmatpush.msra.mxu0 %v582
    %1753 = vmatpush.msra.mxu0 %v579
    %1754 = vmatpush.msra.mxu0 %v576
    %1755 = vmatpush.msra.mxu0 %v573
    %1756 = vmatmul.f32.gmra.mxu0 %v1738
    %v1757 = vpop.f32.mrf.mxu0
    %v1758 = vadd.f32 0.0, %v1757
    %1759 = vdwg.mxu0
    %1760 = vmatpush.msra.mxu0 0.0
    %1761 = vmatpush.msra.mxu0 0.0
    %1762 = vmatpush.msra.mxu0 0.0
    %1763 = vmatpush.msra.mxu0 0.0
    %1764 = vmatpush.msra.mxu0 0.0
    %1765 = vmatpush.msra.mxu0 0.0
    %1766 = vmatpush.msra.mxu0 0.0
    %1767 = vmatpush.msra.mxu0 0.0
    %1768 = vmatpush.msra.mxu0 0.0
    %1769 = vmatpush.msra.mxu0 0.0
    %1770 = vmatpush.msra.mxu0 0.0
    %1771 = vmatpush.msra.mxu0 0.0
    %1772 = vmatpush.msra.mxu0 %v583
    %1773 = vmatpush.msra.mxu0 %v580
    %1774 = vmatpush.msra.mxu0 %v577
    %1775 = vmatpush.msra.mxu0 %v574
    %1776 = vmatmul.f32.gmra.mxu0 %v1738
    %v1777 = vpop.f32.mrf.mxu0
    %v1778 = vadd.f32 0.0, %v1777
    %1779 = vdwg.mxu0
    %1780 = vmatpush.msra.mxu0 0.0
    %1781 = vmatpush.msra.mxu0 0.0
    %1782 = vmatpush.msra.mxu0 0.0
    %1783 = vmatpush.msra.mxu0 0.0
    %1784 = vmatpush.msra.mxu0 0.0
    %1785 = vmatpush.msra.mxu0 0.0
    %1786 = vmatpush.msra.mxu0 0.0
    %1787 = vmatpush.msra.mxu0 0.0
    %1788 = vmatpush.msra.mxu0 0.0
    %1789 = vmatpush.msra.mxu0 0.0
    %1790 = vmatpush.msra.mxu0 0.0
    %1791 = vmatpush.msra.mxu0 0.0
    %1792 = vmatpush.msra.mxu0 %v584
    %1793 = vmatpush.msra.mxu0 %v581
    %1794 = vmatpush.msra.mxu0 %v578
    %1795 = vmatpush.msra.mxu0 %v575
    %1796 = vmatmul.f32.gmra.mxu0 %v1738
    %v1797 = vpop.f32.mrf.mxu0
    %v1798 = vadd.f32 0.0, %v1797
    %1799 = vdwg.mxu0
    %v1800 = vadd.f32 %v1695, %v1758
    %v1801 = vxor.u32 %v1800, 2147483648
    %v1802 = vmul.f32 %v1801, 1.442695
    %v1803 = vpow.pop %v1802
    %v1804 = vadd.f32 %v1803, 1.0
    %v1805 = vrcp.pop %v1804
    %v1806 = vmul.f32 %v1804, %v1805
    %v1807 = vsub.f32 1.0, %v1806
    %v1808 = vmul.f32 %v1805, %v1807
    %v1809 = vadd.f32 %v1805, %v1808
    %vm1810 = vweird.f32 %v1804
    %vm1811 = vweird.f32 %v1805
    %vm1812 = vmor %vm1810, %vm1811
    %v1813 = vsel %vm1812, %v1805, %v1809
    %v1814 = vand.u32 2147483647, %v1804
    %vm1815 = vcmp.eq.f32.partialorder %v1814, 8.507059e+37
    %v1816 = vand.u32 %v1804, 2147483648
    %v1817 = vor.u32 1.1754944e-38, %v1816
    %v1818 = vsel %vm1815, %v1817, %v1813
    %v1819 = vmul.f32 1.0, %v1818
    %v1820 = vadd.f32 %v1715, %v1778
    %v1821 = vxor.u32 %v1820, 2147483648
    %v1822 = vmul.f32 %v1821, 1.442695
    %v1823 = vpow.pop %v1822
    %v1824 = vadd.f32 %v1823, 1.0
    %v1825 = vrcp.pop %v1824
    %v1826 = vmul.f32 %v1824, %v1825
    %v1827 = vsub.f32 1.0, %v1826
    %v1828 = vmul.f32 %v1825, %v1827
    %v1829 = vadd.f32 %v1825, %v1828
    %vm1830 = vweird.f32 %v1824
    %vm1831 = vweird.f32 %v1825
    %vm1832 = vmor %vm1830, %vm1831
    %v1833 = vsel %vm1832, %v1825, %v1829
    %v1834 = vand.u32 2147483647, %v1824
    %vm1835 = vcmp.eq.f32.partialorder %v1834, 8.507059e+37
    %v1836 = vand.u32 %v1824, 2147483648
    %v1837 = vor.u32 1.1754944e-38, %v1836
    %v1838 = vsel %vm1835, %v1837, %v1833
    %v1839 = vmul.f32 1.0, %v1838
    %v1840 = vadd.f32 %v1798, %v244
    %v1841 = vmul.f32 %v1819, %v1840
    %v1842 = vadd.f32 %v1735, %v1841
    %v1843 = vtanh.pop %v1842
    %v1844 = vsub.f32 1.0, %v1839
    %v1845 = vmul.f32 %v1844, %v1843
    %v1846 = vmul.f32 %v1839, %v1559
    %v1847 = vadd.f32 %v1845, %v1846
    %s1848 = smul.u32 6, 3
    %s1849 = smul.addr %s1848, 8
    %s1850 = scalar_lea.vmem [#allocation2], %s1849
    %v1851 = vld [vmem:[%s1850] sm:$0xff]
    %v1852 = vld [vmem:[%s1850 + $0x8] sm:$0xff]
    %v1853 = vld [vmem:[%s1850 + $0x10] sm:$0xff]
    %v1855 = vsel %vm272, %v1676, 0
    %1857 = vmatpush.msra.mxu0 0.0
    %1858 = vmatpush.msra.mxu0 0.0
    %1859 = vmatpush.msra.mxu0 0.0
    %1860 = vmatpush.msra.mxu0 0.0
    %1861 = vmatpush.msra.mxu0 0.0
    %1862 = vmatpush.msra.mxu0 0.0
    %1863 = vmatpush.msra.mxu0 0.0
    %1864 = vmatpush.msra.mxu0 0.0
    %1865 = vmatpush.msra.mxu0 0.0
    %1866 = vmatpush.msra.mxu0 0.0
    %1867 = vmatpush.msra.mxu0 0.0
    %1868 = vmatpush.msra.mxu0 0.0
    %1869 = vmatpush.msra.mxu0 %v269
    %1870 = vmatpush.msra.mxu0 %v266
    %1871 = vmatpush.msra.mxu0 %v263
    %1872 = vmatpush.msra.mxu0 %v260
    %1873 = vmatmul.f32.gmra.mxu0 %v1855
    %v1874 = vpop.f32.mrf.mxu0
    %v1875 = vadd.f32 0.0, %v1874
    %1876 = vdwg.mxu0
    %1877 = vmatpush.msra.mxu0 0.0
    %1878 = vmatpush.msra.mxu0 0.0
    %1879 = vmatpush.msra.mxu0 0.0
    %1880 = vmatpush.msra.mxu0 0.0
    %1881 = vmatpush.msra.mxu0 0.0
    %1882 = vmatpush.msra.mxu0 0.0
    %1883 = vmatpush.msra.mxu0 0.0
    %1884 = vmatpush.msra.mxu0 0.0
    %1885 = vmatpush.msra.mxu0 0.0
    %1886 = vmatpush.msra.mxu0 0.0
    %1887 = vmatpush.msra.mxu0 0.0
    %1888 = vmatpush.msra.mxu0 0.0
    %1889 = vmatpush.msra.mxu0 %v270
    %1890 = vmatpush.msra.mxu0 %v267
    %1891 = vmatpush.msra.mxu0 %v264
    %1892 = vmatpush.msra.mxu0 %v261
    %1893 = vmatmul.f32.gmra.mxu0 %v1855
    %v1894 = vpop.f32.mrf.mxu0
    %v1895 = vadd.f32 0.0, %v1894
    %1896 = vdwg.mxu0
    %1897 = vmatpush.msra.mxu0 0.0
    %1898 = vmatpush.msra.mxu0 0.0
    %1899 = vmatpush.msra.mxu0 0.0
    %1900 = vmatpush.msra.mxu0 0.0
    %1901 = vmatpush.msra.mxu0 0.0
    %1902 = vmatpush.msra.mxu0 0.0
    %1903 = vmatpush.msra.mxu0 0.0
    %1904 = vmatpush.msra.mxu0 0.0
    %1905 = vmatpush.msra.mxu0 0.0
    %1906 = vmatpush.msra.mxu0 0.0
    %1907 = vmatpush.msra.mxu0 0.0
    %1908 = vmatpush.msra.mxu0 0.0
    %1909 = vmatpush.msra.mxu0 %v271
    %1910 = vmatpush.msra.mxu0 %v268
    %1911 = vmatpush.msra.mxu0 %v265
    %1912 = vmatpush.msra.mxu0 %v262
    %1913 = vmatmul.f32.gmra.mxu0 %v1855
    %v1914 = vpop.f32.mrf.mxu0
    %v1915 = vadd.f32 0.0, %v1914
    %1916 = vdwg.mxu0
    %v1917 = vadd.f32 %v1851, %v1875
    %v1918 = vxor.u32 %v1917, 2147483648
    %v1919 = vmul.f32 %v1918, 1.442695
    %v1920 = vpow.pop %v1919
    %v1921 = vadd.f32 %v1920, 1.0
    %v1922 = vrcp.pop %v1921
    %v1923 = vmul.f32 %v1921, %v1922
    %v1924 = vsub.f32 1.0, %v1923
    %v1925 = vmul.f32 %v1922, %v1924
    %v1926 = vadd.f32 %v1922, %v1925
    %vm1927 = vweird.f32 %v1921
    %vm1928 = vweird.f32 %v1922
    %vm1929 = vmor %vm1927, %vm1928
    %v1930 = vsel %vm1929, %v1922, %v1926
    %v1931 = vand.u32 2147483647, %v1921
    %vm1932 = vcmp.eq.f32.partialorder %v1931, 8.507059e+37
    %v1933 = vand.u32 %v1921, 2147483648
    %v1934 = vor.u32 1.1754944e-38, %v1933
    %v1935 = vsel %vm1932, %v1934, %v1930
    %v1936 = vmul.f32 1.0, %v1935
    %v1937 = vadd.f32 %v1852, %v1895
    %v1938 = vxor.u32 %v1937, 2147483648
    %v1939 = vmul.f32 %v1938, 1.442695
    %v1940 = vpow.pop %v1939
    %v1941 = vadd.f32 %v1940, 1.0
    %v1942 = vrcp.pop %v1941
    %v1943 = vmul.f32 %v1941, %v1942
    %v1944 = vsub.f32 1.0, %v1943
    %v1945 = vmul.f32 %v1942, %v1944
    %v1946 = vadd.f32 %v1942, %v1945
    %vm1947 = vweird.f32 %v1941
    %vm1948 = vweird.f32 %v1942
    %vm1949 = vmor %vm1947, %vm1948
    %v1950 = vsel %vm1949, %v1942, %v1946
    %v1951 = vand.u32 2147483647, %v1941
    %vm1952 = vcmp.eq.f32.partialorder %v1951, 8.507059e+37
    %v1953 = vand.u32 %v1941, 2147483648
    %v1954 = vor.u32 1.1754944e-38, %v1953
    %v1955 = vsel %vm1952, %v1954, %v1950
    %v1956 = vmul.f32 1.0, %v1955
    %v1957 = vadd.f32 %v1915, %v240
    %v1958 = vmul.f32 %v1936, %v1957
    %v1959 = vadd.f32 %v1853, %v1958
    %v1960 = vtanh.pop %v1959
    %v1961 = vsub.f32 1.0, %v1956
    %v1962 = vmul.f32 %v1961, %v1960
    %v1963 = vmul.f32 %v1956, %v1676
    %v1964 = vadd.f32 %v1962, %v1963
    %1965 = vmatpush.msra.mxu0 0.0
    %1966 = vmatpush.msra.mxu0 0.0
    %1967 = vmatpush.msra.mxu0 0.0
    %1968 = vmatpush.msra.mxu0 0.0
    %1969 = vmatpush.msra.mxu0 0.0
    %1970 = vmatpush.msra.mxu0 0.0
    %1971 = vmatpush.msra.mxu0 0.0
    %1972 = vmatpush.msra.mxu0 0.0
    %1973 = vmatpush.msra.mxu0 0.0
    %1974 = vmatpush.msra.mxu0 0.0
    %1975 = vmatpush.msra.mxu0 0.0
    %1976 = vmatpush.msra.mxu0 0.0
    %1977 = vmatpush.msra.mxu0 %v510
    %1978 = vmatpush.msra.mxu0 %v507
    %1979 = vmatpush.msra.mxu0 %v504
    %1980 = vmatpush.msra.mxu0 %v501
    %1981 = vmatmul.f32.gmra.mxu0 %v1855
    %v1982 = vpop.f32.mrf.mxu0
    %v1983 = vadd.f32 %v248, %v1982
    %1984 = vdwg.mxu0
    %1985 = vmatpush.msra.mxu0 0.0
    %1986 = vmatpush.msra.mxu0 0.0
    %1987 = vmatpush.msra.mxu0 0.0
    %1988 = vmatpush.msra.mxu0 0.0
    %1989 = vmatpush.msra.mxu0 0.0
    %1990 = vmatpush.msra.mxu0 0.0
    %1991 = vmatpush.msra.mxu0 0.0
    %1992 = vmatpush.msra.mxu0 0.0
    %1993 = vmatpush.msra.mxu0 0.0
    %1994 = vmatpush.msra.mxu0 0.0
    %1995 = vmatpush.msra.mxu0 0.0
    %1996 = vmatpush.msra.mxu0 0.0
    %1997 = vmatpush.msra.mxu0 %v511
    %1998 = vmatpush.msra.mxu0 %v508
    %1999 = vmatpush.msra.mxu0 %v505
    %2000 = vmatpush.msra.mxu0 %v502
    %2001 = vmatmul.f32.gmra.mxu0 %v1855
    %v2002 = vpop.f32.mrf.mxu0
    %v2003 = vadd.f32 %v249, %v2002
    %2004 = vdwg.mxu0
    %2005 = vmatpush.msra.mxu0 0.0
    %2006 = vmatpush.msra.mxu0 0.0
    %2007 = vmatpush.msra.mxu0 0.0
    %2008 = vmatpush.msra.mxu0 0.0
    %2009 = vmatpush.msra.mxu0 0.0
    %2010 = vmatpush.msra.mxu0 0.0
    %2011 = vmatpush.msra.mxu0 0.0
    %2012 = vmatpush.msra.mxu0 0.0
    %2013 = vmatpush.msra.mxu0 0.0
    %2014 = vmatpush.msra.mxu0 0.0
    %2015 = vmatpush.msra.mxu0 0.0
    %2016 = vmatpush.msra.mxu0 0.0
    %2017 = vmatpush.msra.mxu0 %v512
    %2018 = vmatpush.msra.mxu0 %v509
    %2019 = vmatpush.msra.mxu0 %v506
    %2020 = vmatpush.msra.mxu0 %v503
    %2021 = vmatmul.f32.gmra.mxu0 %v1855
    %v2022 = vpop.f32.mrf.mxu0
    %v2023 = vadd.f32 %v250, %v2022
    %2024 = vdwg.mxu0
    %v2026 = vsel %vm272, %v1847, 0
    %2028 = vmatpush.msra.mxu0 0.0
    %2029 = vmatpush.msra.mxu0 0.0
    %2030 = vmatpush.msra.mxu0 0.0
    %2031 = vmatpush.msra.mxu0 0.0
    %2032 = vmatpush.msra.mxu0 0.0
    %2033 = vmatpush.msra.mxu0 0.0
    %2034 = vmatpush.msra.mxu0 0.0
    %2035 = vmatpush.msra.mxu0 0.0
    %2036 = vmatpush.msra.mxu0 0.0
    %2037 = vmatpush.msra.mxu0 0.0
    %2038 = vmatpush.msra.mxu0 0.0
    %2039 = vmatpush.msra.mxu0 0.0
    %2040 = vmatpush.msra.mxu0 %v582
    %2041 = vmatpush.msra.mxu0 %v579
    %2042 = vmatpush.msra.mxu0 %v576
    %2043 = vmatpush.msra.mxu0 %v573
    %2044 = vmatmul.f32.gmra.mxu0 %v2026
    %v2045 = vpop.f32.mrf.mxu0
    %v2046 = vadd.f32 0.0, %v2045
    %2047 = vdwg.mxu0
    %2048 = vmatpush.msra.mxu0 0.0
    %2049 = vmatpush.msra.mxu0 0.0
    %2050 = vmatpush.msra.mxu0 0.0
    %2051 = vmatpush.msra.mxu0 0.0
    %2052 = vmatpush.msra.mxu0 0.0
    %2053 = vmatpush.msra.mxu0 0.0
    %2054 = vmatpush.msra.mxu0 0.0
    %2055 = vmatpush.msra.mxu0 0.0
    %2056 = vmatpush.msra.mxu0 0.0
    %2057 = vmatpush.msra.mxu0 0.0
    %2058 = vmatpush.msra.mxu0 0.0
    %2059 = vmatpush.msra.mxu0 0.0
    %2060 = vmatpush.msra.mxu0 %v583
    %2061 = vmatpush.msra.mxu0 %v580
    %2062 = vmatpush.msra.mxu0 %v577
    %2063 = vmatpush.msra.mxu0 %v574
    %2064 = vmatmul.f32.gmra.mxu0 %v2026
    %v2065 = vpop.f32.mrf.mxu0
    %v2066 = vadd.f32 0.0, %v2065
    %2067 = vdwg.mxu0
    %2068 = vmatpush.msra.mxu0 0.0
    %2069 = vmatpush.msra.mxu0 0.0
    %2070 = vmatpush.msra.mxu0 0.0
    %2071 = vmatpush.msra.mxu0 0.0
    %2072 = vmatpush.msra.mxu0 0.0
    %2073 = vmatpush.msra.mxu0 0.0
    %2074 = vmatpush.msra.mxu0 0.0
    %2075 = vmatpush.msra.mxu0 0.0
    %2076 = vmatpush.msra.mxu0 0.0
    %2077 = vmatpush.msra.mxu0 0.0
    %2078 = vmatpush.msra.mxu0 0.0
    %2079 = vmatpush.msra.mxu0 0.0
    %2080 = vmatpush.msra.mxu0 %v584
    %2081 = vmatpush.msra.mxu0 %v581
    %2082 = vmatpush.msra.mxu0 %v578
    %2083 = vmatpush.msra.mxu0 %v575
    %2084 = vmatmul.f32.gmra.mxu0 %v2026
    %v2085 = vpop.f32.mrf.mxu0
    %v2086 = vadd.f32 0.0, %v2085
    %2087 = vdwg.mxu0
    %v2088 = vadd.f32 %v1983, %v2046
    %v2089 = vxor.u32 %v2088, 2147483648
    %v2090 = vmul.f32 %v2089, 1.442695
    %v2091 = vpow.pop %v2090
    %v2092 = vadd.f32 %v2091, 1.0
    %v2093 = vrcp.pop %v2092
    %v2094 = vmul.f32 %v2092, %v2093
    %v2095 = vsub.f32 1.0, %v2094
    %v2096 = vmul.f32 %v2093, %v2095
    %v2097 = vadd.f32 %v2093, %v2096
    %vm2098 = vweird.f32 %v2092
    %vm2099 = vweird.f32 %v2093
    %vm2100 = vmor %vm2098, %vm2099
    %v2101 = vsel %vm2100, %v2093, %v2097
    %v2102 = vand.u32 2147483647, %v2092
    %vm2103 = vcmp.eq.f32.partialorder %v2102, 8.507059e+37
    %v2104 = vand.u32 %v2092, 2147483648
    %v2105 = vor.u32 1.1754944e-38, %v2104
    %v2106 = vsel %vm2103, %v2105, %v2101
    %v2107 = vmul.f32 1.0, %v2106
    %v2108 = vadd.f32 %v2003, %v2066
    %v2109 = vxor.u32 %v2108, 2147483648
    %v2110 = vmul.f32 %v2109, 1.442695
    %v2111 = vpow.pop %v2110
    %v2112 = vadd.f32 %v2111, 1.0
    %v2113 = vrcp.pop %v2112
    %v2114 = vmul.f32 %v2112, %v2113
    %v2115 = vsub.f32 1.0, %v2114
    %v2116 = vmul.f32 %v2113, %v2115
    %v2117 = vadd.f32 %v2113, %v2116
    %vm2118 = vweird.f32 %v2112
    %vm2119 = vweird.f32 %v2113
    %vm2120 = vmor %vm2118, %vm2119
    %v2121 = vsel %vm2120, %v2113, %v2117
    %v2122 = vand.u32 2147483647, %v2112
    %vm2123 = vcmp.eq.f32.partialorder %v2122, 8.507059e+37
    %v2124 = vand.u32 %v2112, 2147483648
    %v2125 = vor.u32 1.1754944e-38, %v2124
    %v2126 = vsel %vm2123, %v2125, %v2121
    %v2127 = vmul.f32 1.0, %v2126
    %v2128 = vadd.f32 %v2086, %v244
    %v2129 = vmul.f32 %v2107, %v2128
    %v2130 = vadd.f32 %v2023, %v2129
    %v2131 = vtanh.pop %v2130
    %v2132 = vsub.f32 1.0, %v2127
    %v2133 = vmul.f32 %v2132, %v2131
    %v2134 = vmul.f32 %v2127, %v1847
    %v2135 = vadd.f32 %v2133, %v2134
    %s2136 = smul.u32 7, 3
    %s2137 = smul.addr %s2136, 8
    %s2138 = scalar_lea.vmem [#allocation2], %s2137
    %v2139 = vld [vmem:[%s2138] sm:$0xff]
    %v2140 = vld [vmem:[%s2138 + $0x8] sm:$0xff]
    %v2141 = vld [vmem:[%s2138 + $0x10] sm:$0xff]
    %v2143 = vsel %vm272, %v1964, 0
    %2145 = vmatpush.msra.mxu0 0.0
    %2146 = vmatpush.msra.mxu0 0.0
    %2147 = vmatpush.msra.mxu0 0.0
    %2148 = vmatpush.msra.mxu0 0.0
    %2149 = vmatpush.msra.mxu0 0.0
    %2150 = vmatpush.msra.mxu0 0.0
    %2151 = vmatpush.msra.mxu0 0.0
    %2152 = vmatpush.msra.mxu0 0.0
    %2153 = vmatpush.msra.mxu0 0.0
    %2154 = vmatpush.msra.mxu0 0.0
    %2155 = vmatpush.msra.mxu0 0.0
    %2156 = vmatpush.msra.mxu0 0.0
    %2157 = vmatpush.msra.mxu0 %v269
    %2158 = vmatpush.msra.mxu0 %v266
    %2159 = vmatpush.msra.mxu0 %v263
    %2160 = vmatpush.msra.mxu0 %v260
    %2161 = vmatmul.f32.gmra.mxu0 %v2143
    %v2162 = vpop.f32.mrf.mxu0
    %v2163 = vadd.f32 0.0, %v2162
    %2164 = vdwg.mxu0
    %2165 = vmatpush.msra.mxu0 0.0
    %2166 = vmatpush.msra.mxu0 0.0
    %2167 = vmatpush.msra.mxu0 0.0
    %2168 = vmatpush.msra.mxu0 0.0
    %2169 = vmatpush.msra.mxu0 0.0
    %2170 = vmatpush.msra.mxu0 0.0
    %2171 = vmatpush.msra.mxu0 0.0
    %2172 = vmatpush.msra.mxu0 0.0
    %2173 = vmatpush.msra.mxu0 0.0
    %2174 = vmatpush.msra.mxu0 0.0
    %2175 = vmatpush.msra.mxu0 0.0
    %2176 = vmatpush.msra.mxu0 0.0
    %2177 = vmatpush.msra.mxu0 %v270
    %2178 = vmatpush.msra.mxu0 %v267
    %2179 = vmatpush.msra.mxu0 %v264
    %2180 = vmatpush.msra.mxu0 %v261
    %2181 = vmatmul.f32.gmra.mxu0 %v2143
    %v2182 = vpop.f32.mrf.mxu0
    %v2183 = vadd.f32 0.0, %v2182
    %2184 = vdwg.mxu0
    %2185 = vmatpush.msra.mxu0 0.0
    %2186 = vmatpush.msra.mxu0 0.0
    %2187 = vmatpush.msra.mxu0 0.0
    %2188 = vmatpush.msra.mxu0 0.0
    %2189 = vmatpush.msra.mxu0 0.0
    %2190 = vmatpush.msra.mxu0 0.0
    %2191 = vmatpush.msra.mxu0 0.0
    %2192 = vmatpush.msra.mxu0 0.0
    %2193 = vmatpush.msra.mxu0 0.0
    %2194 = vmatpush.msra.mxu0 0.0
    %2195 = vmatpush.msra.mxu0 0.0
    %2196 = vmatpush.msra.mxu0 0.0
    %2197 = vmatpush.msra.mxu0 %v271
    %2198 = vmatpush.msra.mxu0 %v268
    %2199 = vmatpush.msra.mxu0 %v265
    %2200 = vmatpush.msra.mxu0 %v262
    %2201 = vmatmul.f32.gmra.mxu0 %v2143
    %v2202 = vpop.f32.mrf.mxu0
    %v2203 = vadd.f32 0.0, %v2202
    %2204 = vdwg.mxu0
    %v2205 = vadd.f32 %v2139, %v2163
    %v2206 = vxor.u32 %v2205, 2147483648
    %v2207 = vmul.f32 %v2206, 1.442695
    %v2208 = vpow.pop %v2207
    %v2209 = vadd.f32 %v2208, 1.0
    %v2210 = vrcp.pop %v2209
    %v2211 = vmul.f32 %v2209, %v2210
    %v2212 = vsub.f32 1.0, %v2211
    %v2213 = vmul.f32 %v2210, %v2212
    %v2214 = vadd.f32 %v2210, %v2213
    %vm2215 = vweird.f32 %v2209
    %vm2216 = vweird.f32 %v2210
    %vm2217 = vmor %vm2215, %vm2216
    %v2218 = vsel %vm2217, %v2210, %v2214
    %v2219 = vand.u32 2147483647, %v2209
    %vm2220 = vcmp.eq.f32.partialorder %v2219, 8.507059e+37
    %v2221 = vand.u32 %v2209, 2147483648
    %v2222 = vor.u32 1.1754944e-38, %v2221
    %v2223 = vsel %vm2220, %v2222, %v2218
    %v2224 = vmul.f32 1.0, %v2223
    %v2225 = vadd.f32 %v2140, %v2183
    %v2226 = vxor.u32 %v2225, 2147483648
    %v2227 = vmul.f32 %v2226, 1.442695
    %v2228 = vpow.pop %v2227
    %v2229 = vadd.f32 %v2228, 1.0
    %v2230 = vrcp.pop %v2229
    %v2231 = vmul.f32 %v2229, %v2230
    %v2232 = vsub.f32 1.0, %v2231
    %v2233 = vmul.f32 %v2230, %v2232
    %v2234 = vadd.f32 %v2230, %v2233
    %vm2235 = vweird.f32 %v2229
    %vm2236 = vweird.f32 %v2230
    %vm2237 = vmor %vm2235, %vm2236
    %v2238 = vsel %vm2237, %v2230, %v2234
    %v2239 = vand.u32 2147483647, %v2229
    %vm2240 = vcmp.eq.f32.partialorder %v2239, 8.507059e+37
    %v2241 = vand.u32 %v2229, 2147483648
    %v2242 = vor.u32 1.1754944e-38, %v2241
    %v2243 = vsel %vm2240, %v2242, %v2238
    %v2244 = vmul.f32 1.0, %v2243
    %v2245 = vadd.f32 %v2203, %v240
    %v2246 = vmul.f32 %v2224, %v2245
    %v2247 = vadd.f32 %v2141, %v2246
    %v2248 = vtanh.pop %v2247
    %v2249 = vsub.f32 1.0, %v2244
    %v2250 = vmul.f32 %v2249, %v2248
    %v2251 = vmul.f32 %v2244, %v1964
    %v2252 = vadd.f32 %v2250, %v2251
    %2253 = vmatpush.msra.mxu0 0.0
    %2254 = vmatpush.msra.mxu0 0.0
    %2255 = vmatpush.msra.mxu0 0.0
    %2256 = vmatpush.msra.mxu0 0.0
    %2257 = vmatpush.msra.mxu0 0.0
    %2258 = vmatpush.msra.mxu0 0.0
    %2259 = vmatpush.msra.mxu0 0.0
    %2260 = vmatpush.msra.mxu0 0.0
    %2261 = vmatpush.msra.mxu0 0.0
    %2262 = vmatpush.msra.mxu0 0.0
    %2263 = vmatpush.msra.mxu0 0.0
    %2264 = vmatpush.msra.mxu0 0.0
    %2265 = vmatpush.msra.mxu0 %v510
    %2266 = vmatpush.msra.mxu0 %v507
    %2267 = vmatpush.msra.mxu0 %v504
    %2268 = vmatpush.msra.mxu0 %v501
    %2269 = vmatmul.f32.gmra.mxu0 %v2143
    %v2270 = vpop.f32.mrf.mxu0
    %v2271 = vadd.f32 %v248, %v2270
    %2272 = vdwg.mxu0
    %2273 = vmatpush.msra.mxu0 0.0
    %2274 = vmatpush.msra.mxu0 0.0
    %2275 = vmatpush.msra.mxu0 0.0
    %2276 = vmatpush.msra.mxu0 0.0
    %2277 = vmatpush.msra.mxu0 0.0
    %2278 = vmatpush.msra.mxu0 0.0
    %2279 = vmatpush.msra.mxu0 0.0
    %2280 = vmatpush.msra.mxu0 0.0
    %2281 = vmatpush.msra.mxu0 0.0
    %2282 = vmatpush.msra.mxu0 0.0
    %2283 = vmatpush.msra.mxu0 0.0
    %2284 = vmatpush.msra.mxu0 0.0
    %2285 = vmatpush.msra.mxu0 %v511
    %2286 = vmatpush.msra.mxu0 %v508
    %2287 = vmatpush.msra.mxu0 %v505
    %2288 = vmatpush.msra.mxu0 %v502
    %2289 = vmatmul.f32.gmra.mxu0 %v2143
    %v2290 = vpop.f32.mrf.mxu0
    %v2291 = vadd.f32 %v249, %v2290
    %2292 = vdwg.mxu0
    %2293 = vmatpush.msra.mxu0 0.0
    %2294 = vmatpush.msra.mxu0 0.0
    %2295 = vmatpush.msra.mxu0 0.0
    %2296 = vmatpush.msra.mxu0 0.0
    %2297 = vmatpush.msra.mxu0 0.0
    %2298 = vmatpush.msra.mxu0 0.0
    %2299 = vmatpush.msra.mxu0 0.0
    %2300 = vmatpush.msra.mxu0 0.0
    %2301 = vmatpush.msra.mxu0 0.0
    %2302 = vmatpush.msra.mxu0 0.0
    %2303 = vmatpush.msra.mxu0 0.0
    %2304 = vmatpush.msra.mxu0 0.0
    %2305 = vmatpush.msra.mxu0 %v512
    %2306 = vmatpush.msra.mxu0 %v509
    %2307 = vmatpush.msra.mxu0 %v506
    %2308 = vmatpush.msra.mxu0 %v503
    %2309 = vmatmul.f32.gmra.mxu0 %v2143
    %v2310 = vpop.f32.mrf.mxu0
    %v2311 = vadd.f32 %v250, %v2310
    %2312 = vdwg.mxu0
    %v2314 = vsel %vm272, %v2135, 0
    %2316 = vmatpush.msra.mxu0 0.0
    %2317 = vmatpush.msra.mxu0 0.0
    %2318 = vmatpush.msra.mxu0 0.0
    %2319 = vmatpush.msra.mxu0 0.0
    %2320 = vmatpush.msra.mxu0 0.0
    %2321 = vmatpush.msra.mxu0 0.0
    %2322 = vmatpush.msra.mxu0 0.0
    %2323 = vmatpush.msra.mxu0 0.0
    %2324 = vmatpush.msra.mxu0 0.0
    %2325 = vmatpush.msra.mxu0 0.0
    %2326 = vmatpush.msra.mxu0 0.0
    %2327 = vmatpush.msra.mxu0 0.0
    %2328 = vmatpush.msra.mxu0 %v582
    %2329 = vmatpush.msra.mxu0 %v579
    %2330 = vmatpush.msra.mxu0 %v576
    %2331 = vmatpush.msra.mxu0 %v573
    %2332 = vmatmul.f32.gmra.mxu0 %v2314
    %v2333 = vpop.f32.mrf.mxu0
    %v2334 = vadd.f32 0.0, %v2333
    %2335 = vdwg.mxu0
    %2336 = vmatpush.msra.mxu0 0.0
    %2337 = vmatpush.msra.mxu0 0.0
    %2338 = vmatpush.msra.mxu0 0.0
    %2339 = vmatpush.msra.mxu0 0.0
    %2340 = vmatpush.msra.mxu0 0.0
    %2341 = vmatpush.msra.mxu0 0.0
    %2342 = vmatpush.msra.mxu0 0.0
    %2343 = vmatpush.msra.mxu0 0.0
    %2344 = vmatpush.msra.mxu0 0.0
    %2345 = vmatpush.msra.mxu0 0.0
    %2346 = vmatpush.msra.mxu0 0.0
    %2347 = vmatpush.msra.mxu0 0.0
    %2348 = vmatpush.msra.mxu0 %v583
    %2349 = vmatpush.msra.mxu0 %v580
    %2350 = vmatpush.msra.mxu0 %v577
    %2351 = vmatpush.msra.mxu0 %v574
    %2352 = vmatmul.f32.gmra.mxu0 %v2314
    %v2353 = vpop.f32.mrf.mxu0
    %v2354 = vadd.f32 0.0, %v2353
    %2355 = vdwg.mxu0
    %2356 = vmatpush.msra.mxu0 0.0
    %2357 = vmatpush.msra.mxu0 0.0
    %2358 = vmatpush.msra.mxu0 0.0
    %2359 = vmatpush.msra.mxu0 0.0
    %2360 = vmatpush.msra.mxu0 0.0
    %2361 = vmatpush.msra.mxu0 0.0
    %2362 = vmatpush.msra.mxu0 0.0
    %2363 = vmatpush.msra.mxu0 0.0
    %2364 = vmatpush.msra.mxu0 0.0
    %2365 = vmatpush.msra.mxu0 0.0
    %2366 = vmatpush.msra.mxu0 0.0
    %2367 = vmatpush.msra.mxu0 0.0
    %2368 = vmatpush.msra.mxu0 %v584
    %2369 = vmatpush.msra.mxu0 %v581
    %2370 = vmatpush.msra.mxu0 %v578
    %2371 = vmatpush.msra.mxu0 %v575
    %2372 = vmatmul.f32.gmra.mxu0 %v2314
    %v2373 = vpop.f32.mrf.mxu0
    %v2374 = vadd.f32 0.0, %v2373
    %2375 = vdwg.mxu0
    %v2376 = vadd.f32 %v2271, %v2334
    %v2377 = vxor.u32 %v2376, 2147483648
    %v2378 = vmul.f32 %v2377, 1.442695
    %v2379 = vpow.pop %v2378
    %v2380 = vadd.f32 %v2379, 1.0
    %v2381 = vrcp.pop %v2380
    %v2382 = vmul.f32 %v2380, %v2381
    %v2383 = vsub.f32 1.0, %v2382
    %v2384 = vmul.f32 %v2381, %v2383
    %v2385 = vadd.f32 %v2381, %v2384
    %vm2386 = vweird.f32 %v2380
    %vm2387 = vweird.f32 %v2381
    %vm2388 = vmor %vm2386, %vm2387
    %v2389 = vsel %vm2388, %v2381, %v2385
    %v2390 = vand.u32 2147483647, %v2380
    %vm2391 = vcmp.eq.f32.partialorder %v2390, 8.507059e+37
    %v2392 = vand.u32 %v2380, 2147483648
    %v2393 = vor.u32 1.1754944e-38, %v2392
    %v2394 = vsel %vm2391, %v2393, %v2389
    %v2395 = vmul.f32 1.0, %v2394
    %v2396 = vadd.f32 %v2291, %v2354
    %v2397 = vxor.u32 %v2396, 2147483648
    %v2398 = vmul.f32 %v2397, 1.442695
    %v2399 = vpow.pop %v2398
    %v2400 = vadd.f32 %v2399, 1.0
    %v2401 = vrcp.pop %v2400
    %v2402 = vmul.f32 %v2400, %v2401
    %v2403 = vsub.f32 1.0, %v2402
    %v2404 = vmul.f32 %v2401, %v2403
    %v2405 = vadd.f32 %v2401, %v2404
    %vm2406 = vweird.f32 %v2400
    %vm2407 = vweird.f32 %v2401
    %vm2408 = vmor %vm2406, %vm2407
    %v2409 = vsel %vm2408, %v2401, %v2405
    %v2410 = vand.u32 2147483647, %v2400
    %vm2411 = vcmp.eq.f32.partialorder %v2410, 8.507059e+37
    %v2412 = vand.u32 %v2400, 2147483648
    %v2413 = vor.u32 1.1754944e-38, %v2412
    %v2414 = vsel %vm2411, %v2413, %v2409
    %v2415 = vmul.f32 1.0, %v2414
    %v2416 = vadd.f32 %v2374, %v244
    %v2417 = vmul.f32 %v2395, %v2416
    %v2418 = vadd.f32 %v2311, %v2417
    %v2419 = vtanh.pop %v2418
    %v2420 = vsub.f32 1.0, %v2415
    %v2421 = vmul.f32 %v2420, %v2419
    %v2422 = vmul.f32 %v2415, %v2135
    %v2423 = vadd.f32 %v2421, %v2422
    %v2425 = vsel %vm272, %v2252, 0
    %2427 = vmatpush.msra.mxu0 0.0
    %2428 = vmatpush.msra.mxu0 0.0
    %2429 = vmatpush.msra.mxu0 0.0
    %2430 = vmatpush.msra.mxu0 0.0
    %2431 = vmatpush.msra.mxu0 0.0
    %2432 = vmatpush.msra.mxu0 0.0
    %2433 = vmatpush.msra.mxu0 0.0
    %2434 = vmatpush.msra.mxu0 0.0
    %2435 = vmatpush.msra.mxu0 0.0
    %2436 = vmatpush.msra.mxu0 0.0
    %2437 = vmatpush.msra.mxu0 0.0
    %2438 = vmatpush.msra.mxu0 0.0
    %2439 = vmatpush.msra.mxu0 %v510
    %2440 = vmatpush.msra.mxu0 %v507
    %2441 = vmatpush.msra.mxu0 %v504
    %2442 = vmatpush.msra.mxu0 %v501
    %2443 = vmatmul.f32.gmra.mxu0 %v2425
    %v2444 = vpop.f32.mrf.mxu0
    %v2445 = vadd.f32 %v248, %v2444
    %2446 = vdwg.mxu0
    %2447 = vmatpush.msra.mxu0 0.0
    %2448 = vmatpush.msra.mxu0 0.0
    %2449 = vmatpush.msra.mxu0 0.0
    %2450 = vmatpush.msra.mxu0 0.0
    %2451 = vmatpush.msra.mxu0 0.0
    %2452 = vmatpush.msra.mxu0 0.0
    %2453 = vmatpush.msra.mxu0 0.0
    %2454 = vmatpush.msra.mxu0 0.0
    %2455 = vmatpush.msra.mxu0 0.0
    %2456 = vmatpush.msra.mxu0 0.0
    %2457 = vmatpush.msra.mxu0 0.0
    %2458 = vmatpush.msra.mxu0 0.0
    %2459 = vmatpush.msra.mxu0 %v511
    %2460 = vmatpush.msra.mxu0 %v508
    %2461 = vmatpush.msra.mxu0 %v505
    %2462 = vmatpush.msra.mxu0 %v502
    %2463 = vmatmul.f32.gmra.mxu0 %v2425
    %v2464 = vpop.f32.mrf.mxu0
    %v2465 = vadd.f32 %v249, %v2464
    %2466 = vdwg.mxu0
    %2467 = vmatpush.msra.mxu0 0.0
    %2468 = vmatpush.msra.mxu0 0.0
    %2469 = vmatpush.msra.mxu0 0.0
    %2470 = vmatpush.msra.mxu0 0.0
    %2471 = vmatpush.msra.mxu0 0.0
    %2472 = vmatpush.msra.mxu0 0.0
    %2473 = vmatpush.msra.mxu0 0.0
    %2474 = vmatpush.msra.mxu0 0.0
    %2475 = vmatpush.msra.mxu0 0.0
    %2476 = vmatpush.msra.mxu0 0.0
    %2477 = vmatpush.msra.mxu0 0.0
    %2478 = vmatpush.msra.mxu0 0.0
    %2479 = vmatpush.msra.mxu0 %v512
    %2480 = vmatpush.msra.mxu0 %v509
    %2481 = vmatpush.msra.mxu0 %v506
    %2482 = vmatpush.msra.mxu0 %v503
    %2483 = vmatmul.f32.gmra.mxu0 %v2425
    %v2484 = vpop.f32.mrf.mxu0
    %v2485 = vadd.f32 %v250, %v2484
    %2486 = vdwg.mxu0
    %v2488 = vsel %vm272, %v2423, 0
    %2490 = vmatpush.msra.mxu0 0.0
    %2491 = vmatpush.msra.mxu0 0.0
    %2492 = vmatpush.msra.mxu0 0.0
    %2493 = vmatpush.msra.mxu0 0.0
    %2494 = vmatpush.msra.mxu0 0.0
    %2495 = vmatpush.msra.mxu0 0.0
    %2496 = vmatpush.msra.mxu0 0.0
    %2497 = vmatpush.msra.mxu0 0.0
    %2498 = vmatpush.msra.mxu0 0.0
    %2499 = vmatpush.msra.mxu0 0.0
    %2500 = vmatpush.msra.mxu0 0.0
    %2501 = vmatpush.msra.mxu0 0.0
    %2502 = vmatpush.msra.mxu0 %v582
    %2503 = vmatpush.msra.mxu0 %v579
    %2504 = vmatpush.msra.mxu0 %v576
    %2505 = vmatpush.msra.mxu0 %v573
    %2506 = vmatmul.f32.gmra.mxu0 %v2488
    %v2507 = vpop.f32.mrf.mxu0
    %v2508 = vadd.f32 0.0, %v2507
    %2509 = vdwg.mxu0
    %2510 = vmatpush.msra.mxu0 0.0
    %2511 = vmatpush.msra.mxu0 0.0
    %2512 = vmatpush.msra.mxu0 0.0
    %2513 = vmatpush.msra.mxu0 0.0
    %2514 = vmatpush.msra.mxu0 0.0
    %2515 = vmatpush.msra.mxu0 0.0
    %2516 = vmatpush.msra.mxu0 0.0
    %2517 = vmatpush.msra.mxu0 0.0
    %2518 = vmatpush.msra.mxu0 0.0
    %2519 = vmatpush.msra.mxu0 0.0
    %2520 = vmatpush.msra.mxu0 0.0
    %2521 = vmatpush.msra.mxu0 0.0
    %2522 = vmatpush.msra.mxu0 %v583
    %2523 = vmatpush.msra.mxu0 %v580
    %2524 = vmatpush.msra.mxu0 %v577
    %2525 = vmatpush.msra.mxu0 %v574
    %2526 = vmatmul.f32.gmra.mxu0 %v2488
    %v2527 = vpop.f32.mrf.mxu0
    %v2528 = vadd.f32 0.0, %v2527
    %2529 = vdwg.mxu0
    %2530 = vmatpush.msra.mxu0 0.0
    %2531 = vmatpush.msra.mxu0 0.0
    %2532 = vmatpush.msra.mxu0 0.0
    %2533 = vmatpush.msra.mxu0 0.0
    %2534 = vmatpush.msra.mxu0 0.0
    %2535 = vmatpush.msra.mxu0 0.0
    %2536 = vmatpush.msra.mxu0 0.0
    %2537 = vmatpush.msra.mxu0 0.0
    %2538 = vmatpush.msra.mxu0 0.0
    %2539 = vmatpush.msra.mxu0 0.0
    %2540 = vmatpush.msra.mxu0 0.0
    %2541 = vmatpush.msra.mxu0 0.0
    %2542 = vmatpush.msra.mxu0 %v584
    %2543 = vmatpush.msra.mxu0 %v581
    %2544 = vmatpush.msra.mxu0 %v578
    %2545 = vmatpush.msra.mxu0 %v575
    %2546 = vmatmul.f32.gmra.mxu0 %v2488
    %v2547 = vpop.f32.mrf.mxu0
    %v2548 = vadd.f32 0.0, %v2547
    %2549 = vdwg.mxu0
    %v2550 = vadd.f32 %v2445, %v2508
    %v2551 = vxor.u32 %v2550, 2147483648
    %v2552 = vmul.f32 %v2551, 1.442695
    %v2553 = vpow.pop %v2552
    %v2554 = vadd.f32 %v2553, 1.0
    %v2555 = vrcp.pop %v2554
    %v2556 = vmul.f32 %v2554, %v2555
    %v2557 = vsub.f32 1.0, %v2556
    %v2558 = vmul.f32 %v2555, %v2557
    %v2559 = vadd.f32 %v2555, %v2558
    %vm2560 = vweird.f32 %v2554
    %vm2561 = vweird.f32 %v2555
    %vm2562 = vmor %vm2560, %vm2561
    %v2563 = vsel %vm2562, %v2555, %v2559
    %v2564 = vand.u32 2147483647, %v2554
    %vm2565 = vcmp.eq.f32.partialorder %v2564, 8.507059e+37
    %v2566 = vand.u32 %v2554, 2147483648
    %v2567 = vor.u32 1.1754944e-38, %v2566
    %v2568 = vsel %vm2565, %v2567, %v2563
    %v2569 = vmul.f32 1.0, %v2568
    %v2570 = vadd.f32 %v2465, %v2528
    %v2571 = vxor.u32 %v2570, 2147483648
    %v2572 = vmul.f32 %v2571, 1.442695
    %v2573 = vpow.pop %v2572
    %v2574 = vadd.f32 %v2573, 1.0
    %v2575 = vrcp.pop %v2574
    %v2576 = vmul.f32 %v2574, %v2575
    %v2577 = vsub.f32 1.0, %v2576
    %v2578 = vmul.f32 %v2575, %v2577
    %v2579 = vadd.f32 %v2575, %v2578
    %vm2580 = vweird.f32 %v2574
    %vm2581 = vweird.f32 %v2575
    %vm2582 = vmor %vm2580, %vm2581
    %v2583 = vsel %vm2582, %v2575, %v2579
    %v2584 = vand.u32 2147483647, %v2574
    %vm2585 = vcmp.eq.f32.partialorder %v2584, 8.507059e+37
    %v2586 = vand.u32 %v2574, 2147483648
    %v2587 = vor.u32 1.1754944e-38, %v2586
    %v2588 = vsel %vm2585, %v2587, %v2583
    %v2589 = vmul.f32 1.0, %v2588
    %v2590 = vadd.f32 %v2548, %v244
    %v2591 = vmul.f32 %v2569, %v2590
    %v2592 = vadd.f32 %v2485, %v2591
    %v2593 = vtanh.pop %v2592
    %v2594 = vsub.f32 1.0, %v2589
    %v2595 = vmul.f32 %v2594, %v2593
    %v2596 = vmul.f32 %v2589, %v2423
    %v2597 = vadd.f32 %v2595, %v2596
    %2598 = vst.msk [vmem:[#allocation3] sm:$0xff] %vm272, %v2252
    %s2599 = scalar_lea.vmem [#allocation3], 8
    %2600 = vst.msk [vmem:[%s2599] sm:$0xff] %vm272, %v2597
    %v2601 = vmax.f32 %v2597, 0.0
    %v2602 = vld [vmem:[%s10] sm:$0xff]
    %v2603 = vld [vmem:[%s10 + $0x8] sm:$0xff]
    %v2604 = vld [vmem:[%s10 + $0x10] sm:$0xff]
    %v2605 = vld [vmem:[%s10 + $0x18] sm:$0xff]
    %v2606 = vld [vmem:[%s11] sm:$0x1]
    %v2608 = vperm.slane %v2606, 0
    %v2611 = vsel %vm272, %v2601, 0
    %2613 = vmatpush.msra.mxu0 0.0
    %2614 = vmatpush.msra.mxu0 0.0
    %2615 = vmatpush.msra.mxu0 0.0
    %2616 = vmatpush.msra.mxu0 0.0
    %2617 = vmatpush.msra.mxu0 0.0
    %2618 = vmatpush.msra.mxu0 0.0
    %2619 = vmatpush.msra.mxu0 0.0
    %2620 = vmatpush.msra.mxu0 0.0
    %2621 = vmatpush.msra.mxu0 0.0
    %2622 = vmatpush.msra.mxu0 0.0
    %2623 = vmatpush.msra.mxu0 0.0
    %2624 = vmatpush.msra.mxu0 0.0
    %2625 = vmatpush.msra.mxu0 %v2605
    %2626 = vmatpush.msra.mxu0 %v2604
    %2627 = vmatpush.msra.mxu0 %v2603
    %2628 = vmatpush.msra.mxu0 %v2602
    %2629 = vmatmul.f32.gmra.mxu0 %v2611
    %v2630 = vpop.f32.mrf.mxu0
    %v2631 = vadd.f32 %v2608, %v2630
    %2632 = vdwg.mxu0
    %vm2633 = vcmask 31744
    %2634 = vst.msk [vmem:[%s12] sm:$0xff] %vm2633, %v2631
    // Predicated region
    $region50: #{grunet_forward.1} parent=1 // pred_check
      _
    $region51: #{grunet_forward.1} parent=1 // pred_check_branch
      %2636 = sbr.rel (0) target = $region53
    $region52: #{grunet_forward.1} parent=1 // pred_region
      _
    $region53: #{grunet_forward.1} parent=1 // pred_fallthru
      _
    // Predicated region
    $region54: #{grunet_forward.1} parent=1 // pred_check
      _
    $region55: #{grunet_forward.1} parent=1 // pred_check_branch
      %2638 = sbr.rel (0) target = $region57
    $region56: #{grunet_forward.1} parent=1 // pred_region
      %2640 = vsyncadd [#allocation4], 0
      %s2641 = sshll.u32 [#allocation3], 4
      %s2642 = int_to_ptr.vmem [resolvable:$true] %s2641
      %s2643 = sshll.u32 %s13, 4
      %s2644 = int_to_ptr.hbm [resolvable:$true] %s2643
      %2649 = dma.vmem_to_hbm [thread:$0]  %s2642, 256, %s2644, [#allocation4], 128, 128, 8
    $region57: #{grunet_forward.1} parent=1 // pred_fallthru
      _
    // Predicated region
    $region58: #{grunet_forward.1} parent=1 // pred_check
      _
    $region59: #{grunet_forward.1} parent=1 // pred_check_branch
      %2651 = sbr.rel (0) target = $region61
    $region60: #{grunet_forward.1} parent=1 // pred_region
      _
    $region61: #{grunet_forward.1} parent=1 // pred_fallthru
      _
    // Predicated region
    $region62: #{grunet_forward.1} parent=1 // pred_check
      _
    $region63: #{grunet_forward.1} parent=1 // pred_check_branch
      %2653 = sbr.rel (0) target = $region65
    $region64: #{grunet_forward.1} parent=1 // pred_region
      %2655 = dma.done [#allocation4], 256
    $region65: #{grunet_forward.1} parent=1 // pred_fallthru
      _
    %2656 = vsyncpa [#allocation4], 1

</llo_original>
